<compile_context>
chip_gen: v6e
topology: v6e:2x2x1
jax: 0.10.0
libtpu: 0.0.40
codegen_flags: <defaults>
</compile_context>

<pallas_src>
import jax
import jax.numpy as jnp
from jax.experimental import pallas as pl
from jax.experimental.pallas import tpu as pltpu


def _sigmoid(x):
    # exp + approx reciprocal both go to the EUP slot (otherwise idle here).
    return pl.reciprocal(1.0 + jnp.exp(-x), approx=True)


def lstm_fc_kernel(x_ref, w0_ref, w1_ref, b_ref, fc_ref, out_ref,
                   gproj_ref, h0_ref):
    # x_ref:  (T*Bp, D0p)           time-major, batch padded to Bp
    # w0_ref: (D0p + Hp, 4*Hp)      rows [0:D0p] = Wx0, rows [D0p:] = Wh0
    # w1_ref: (2*Hp, 4*Hp)          rows [0:Hp]  = Wx1, rows [Hp:]  = Wh1
    # b_ref:  (2, 4*Hp)             per-layer fused bias (b_ih + b_hh)
    # fc_ref: (2, Hp)               row 0 = fc weight, fc_ref[1,0] = fc bias
    # out_ref:(Bp, 1)
    # gproj_ref: (T*Bp, 4*Hp) VMEM scratch (input projections, reused per layer)
    # h0_ref:    (T*Bp, Hp)   VMEM scratch (layer-0 hidden states, all steps)
    TB, D0p = x_ref.shape
    Hp = w0_ref.shape[1] // 4
    Bp = out_ref.shape[0]
    T = TB // Bp

    def recurrence(wh, store_h):
        # Only the serial h @ Wh chain lives here (one fused matmul per step).
        h = jnp.zeros((Bp, Hp), jnp.float32)
        c = jnp.zeros((Bp, Hp), jnp.float32)
        for t in range(T):  # T is small & static -> unrolled
            gates = gproj_ref[t * Bp:(t + 1) * Bp, :] + jnp.dot(
                h, wh, preferred_element_type=jnp.float32)
            sig = _sigmoid(gates[:, :3 * Hp])      # i | f | o (contiguous)
            g = jnp.tanh(gates[:, 3 * Hp:])        # g
            c = sig[:, Hp:2 * Hp] * c + sig[:, :Hp] * g
            h = sig[:, 2 * Hp:] * jnp.tanh(c)
            if store_h:
                h0_ref[t * Bp:(t + 1) * Bp, :] = h
        return h

    # ---- layer 0: hoisted input projection (+ bias), then recurrence ----
    gproj_ref[...] = jnp.dot(x_ref[...], w0_ref[:D0p, :],
                             preferred_element_type=jnp.float32) + b_ref[0:1, :]
    recurrence(w0_ref[D0p:, :], store_h=True)

    # ---- layer 1: hoisted input projection over all layer-0 outputs ----
    gproj_ref[...] = jnp.dot(h0_ref[...], w1_ref[:Hp, :],
                             preferred_element_type=jnp.float32) + b_ref[1:2, :]
    h_last = recurrence(w1_ref[Hp:, :], store_h=False)

    # ---- FC head on the last timestep: VPU multiply + lane reduce ----
    out_ref[...] = (jnp.sum(h_last * fc_ref[0:1, :], axis=-1, keepdims=True)
                    + fc_ref[1:2, 0:1])


def net_forward(x, packed):
    """x: (B, T, D) float32. packed: (w0, w1, b01, fcp) from pack_params."""
    w0, w1, b01, fcp = packed
    B, T, D = x.shape
    Hp = w0.shape[1] // 4
    D0p = w0.shape[0] - Hp
    out_dim = 1
    Bp = max(8, ((B + 7) // 8) * 8)  # pad batch to a full sublane tile

    xp = jnp.zeros((Bp, T, D0p), jnp.float32).at[:B, :, :D].set(
        x.astype(jnp.float32))
    # time-major flat layout: timestep t occupies rows [t*Bp, (t+1)*Bp)
    x_flat = jnp.transpose(xp, (1, 0, 2)).reshape(T * Bp, D0p)

    vmem = lambda: pl.BlockSpec(memory_space=pltpu.MemorySpace.VMEM)
    out = pl.pallas_call(
        lstm_fc_kernel,
        out_shape=jax.ShapeDtypeStruct((Bp, out_dim), jnp.float32),
        in_specs=[vmem() for _ in range(5)],
        out_specs=vmem(),
        scratch_shapes=[
            pltpu.VMEM((T * Bp, 4 * Hp), jnp.float32),  # gate projections
            pltpu.VMEM((T * Bp, Hp), jnp.float32),      # layer-0 hidden states
        ],
    )(x_flat, w0, w1, b01, fcp)
    return out[:B]
    # TODO(synk): if B grows beyond toy scale, add a batch grid axis with
    # dimension_semantics=("parallel",) to use both v7x TensorCores.


def init_torch_params(key, input_dim, hidden_dim, output_dim):
    """Torch-layout LSTM/Linear params, U(-1/sqrt(H), 1/sqrt(H)) like PyTorch."""
    H, D = hidden_dim, input_dim
    ks = jax.random.split(key, 10)
    s = 1.0 / (H ** 0.5)

    def u(k, shape):
        return jax.random.uniform(k, shape, jnp.float32, -s, s)

    w_ih0 = u(ks[0], (4 * H, D))
    w_hh0 = u(ks[1], (4 * H, H))
    b_ih0 = u(ks[2], (4 * H,))
    b_hh0 = u(ks[3], (4 * H,))
    w_ih1 = u(ks[4], (4 * H, H))
    w_hh1 = u(ks[5], (4 * H, H))
    b_ih1 = u(ks[6], (4 * H,))
    b_hh1 = u(ks[7], (4 * H,))
    w_fc = u(ks[8], (output_dim, H))
    b_fc = u(ks[9], (output_dim,))
    return (w_ih0, w_hh0, b_ih0, b_hh0,
            w_ih1, w_hh1, b_ih1, b_hh1, w_fc, b_fc)


def pack_params(tp, input_dim, hidden_dim, output_dim, Hp=128):
    """Repack torch-layout params into the fused, lane-padded kernel layout."""
    (w_ih0, w_hh0, b_ih0, b_hh0,
     w_ih1, w_hh1, b_ih1, b_hh1, w_fc, b_fc) = tp
    assert output_dim == 1
    H = hidden_dim
    D0p = max(8, ((input_dim + 7) // 8) * 8)
    order = (0, 1, 3, 2)  # torch (i, f, g, o) -> kernel (i, f, o, g)

    def pack_layer(w_ih, w_hh, b_ih, b_hh, d_in, d_in_p):
        wx = jnp.zeros((d_in_p, 4 * Hp), jnp.float32)
        wh = jnp.zeros((Hp, 4 * Hp), jnp.float32)
        b = jnp.zeros((4 * Hp,), jnp.float32)
        for slot, g in enumerate(order):
            wx = wx.at[:d_in, slot * Hp:slot * Hp + H].set(
                w_ih[g * H:(g + 1) * H, :].T)
            wh = wh.at[:H, slot * Hp:slot * Hp + H].set(
                w_hh[g * H:(g + 1) * H, :].T)
            b = b.at[slot * Hp:slot * Hp + H].set(
                b_ih[g * H:(g + 1) * H] + b_hh[g * H:(g + 1) * H])
        return jnp.concatenate([wx, wh], axis=0), b

    w0, b0 = pack_layer(w_ih0, w_hh0, b_ih0, b_hh0, input_dim, D0p)
    w1, b1 = pack_layer(w_ih1, w_hh1, b_ih1, b_hh1, H, Hp)
    b01 = jnp.stack([b0, b1], axis=0)                 # (2, 4*Hp)
    fcp = jnp.zeros((2, Hp), jnp.float32)
    fcp = fcp.at[0, :H].set(w_fc[0, :])               # fc weight row
    fcp = fcp.at[1, 0].set(b_fc[0])                   # fc bias
    return (w0, w1, b01, fcp)


def reference_forward(x, tp, hidden_dim):
    """Pure-JAX reference computed from the torch-layout params."""
    (w_ih0, w_hh0, b_ih0, b_hh0,
     w_ih1, w_hh1, b_ih1, b_hh1, w_fc, b_fc) = tp
    B, T, D = x.shape
    H = hidden_dim

    def run_layer(seq, w_ih, w_hh, b_ih, b_hh):
        h = jnp.zeros((B, H), jnp.float32)
        c = jnp.zeros((B, H), jnp.float32)
        outs = []
        for t in range(T):
            gates = seq[t] @ w_ih.T + h @ w_hh.T + b_ih + b_hh
            i = jax.nn.sigmoid(gates[:, 0:H])
            f = jax.nn.sigmoid(gates[:, H:2 * H])
            g = jnp.tanh(gates[:, 2 * H:3 * H])
            o = jax.nn.sigmoid(gates[:, 3 * H:4 * H])
            c = f * c + i * g
            h = o * jnp.tanh(c)
            outs.append(h)
        return outs

    seq = [x[:, t, :] for t in range(T)]
    seq = run_layer(seq, w_ih0, w_hh0, b_ih0, b_hh0)
    seq = run_layer(seq, w_ih1, w_hh1, b_ih1, b_hh1)
    return seq[-1] @ w_fc.T + b_fc


if __name__ == "__main__":
    # Shapes consistent with Net(input_dim, hidden_dim=10, output_dim=1, layers=2)
    B, T, input_dim, hidden_dim, output_dim = 2, 8, 8, 10, 1

    key = jax.random.PRNGKey(0)
    kx, kp = jax.random.split(key)
    x = jax.random.normal(kx, (B, T, input_dim), dtype=jnp.float32)

    torch_params = init_torch_params(kp, input_dim, hidden_dim, output_dim)
    packed = pack_params(torch_params, input_dim, hidden_dim, output_dim)

    out = net_forward(x, packed)
    out = jax.block_until_ready(out)

    ref = reference_forward(x, torch_params, hidden_dim)
    assert out.shape == (B, output_dim)
    assert jnp.allclose(out, ref, rtol=1e-2, atol=1e-2), (out, ref)

    print("KERNEL_OK")
</pallas_src>

<mosaic_0001>
module attributes {stable_mosaic.version = 11 : i64} {
  func.func @lstm_fc_kernel(%arg0: memref<64x8xf32, #tpu.memory_space<vmem>>, %arg1: memref<136x512xf32, #tpu.memory_space<vmem>>, %arg2: memref<256x512xf32, #tpu.memory_space<vmem>>, %arg3: memref<2x512xf32, #tpu.memory_space<vmem>>, %arg4: memref<2x128xf32, #tpu.memory_space<vmem>>, %arg5: memref<8x1xf32, #tpu.memory_space<vmem>>, %arg6: memref<64x512xf32, #tpu.memory_space<vmem>>, %arg7: memref<64x128xf32, #tpu.memory_space<vmem>>) attributes {dimension_semantics = [], scalar_prefetch = 0 : i64, scratch_operands = 2 : i64, tpu.core_type = #tpu.core_type<tc>} {
    %c0 = arith.constant 0 : index
    %c0_0 = arith.constant 0 : index
    %0 = vector.load %arg0[%c0, %c0_0] : memref<64x8xf32, #tpu.memory_space<vmem>>, vector<64x8xf32>
    %c0_1 = arith.constant 0 : index
    %c0_2 = arith.constant 0 : index
    %1 = vector.load %arg1[%c0_1, %c0_2] : memref<136x512xf32, #tpu.memory_space<vmem>>, vector<8x512xf32>
    %cst = arith.constant dense<0.000000e+00> : vector<64x512xf32>
    %2 = tpu.matmul %0, %1, %cst {dimension_numbers = #tpu.dot_dimension_numbers<[1], [0], [0], [1], [0, 0, 1, 1], [], []>} : vector<64x8xf32>, vector<8x512xf32>, vector<64x512xf32> -> vector<64x512xf32>
    %c0_3 = arith.constant 0 : index
    %c0_4 = arith.constant 0 : index
    %3 = vector.load %arg3[%c0_3, %c0_4] : memref<2x512xf32, #tpu.memory_space<vmem>>, vector<1x512xf32>
    %4 = vector.broadcast %3 : vector<1x512xf32> to vector<64x512xf32>
    %5 = arith.addf %2, %4 : vector<64x512xf32>
    %c0_5 = arith.constant 0 : index
    %c0_6 = arith.constant 0 : index
    %6 = vector.load %arg6[%c0_5, %c0_6] : memref<64x512xf32, #tpu.memory_space<vmem>>, vector<64x512xf32>
    tpu.vector_store %arg6[%c0_5, %c0_6], %5 {strides = array<i32>} : memref<64x512xf32, #tpu.memory_space<vmem>>, vector<64x512xf32>,
    %c8 = arith.constant 8 : index
    %c0_7 = arith.constant 0 : index
    %7 = vector.load %arg1[%c8, %c0_7] : memref<136x512xf32, #tpu.memory_space<vmem>>, vector<128x512xf32>
    %cst_8 = arith.constant 0.000000e+00 : f32
    %8 = vector.broadcast %cst_8 : f32 to vector<8x128xf32>
    %cst_9 = arith.constant 0.000000e+00 : f32
    %9 = vector.broadcast %cst_9 : f32 to vector<8x128xf32>
    %c0_10 = arith.constant 0 : index
    %c0_11 = arith.constant 0 : index
    %10 = vector.load %arg6[%c0_10, %c0_11] : memref<64x512xf32, #tpu.memory_space<vmem>>, vector<8x512xf32>
    %cst_12 = arith.constant dense<0.000000e+00> : vector<8x512xf32>
    %11 = tpu.matmul %8, %7, %cst_12 {dimension_numbers = #tpu.dot_dimension_numbers<[1], [0], [0], [1], [0, 0, 1, 1], [], []>} : vector<8x128xf32>, vector<128x512xf32>, vector<8x512xf32> -> vector<8x512xf32>
    %12 = arith.addf %10, %11 : vector<8x512xf32>
    %13 = vector.extract_strided_slice %12 {offsets = [0, 0], sizes = [8, 384], strides = [1, 1]} : vector<8x512xf32> to vector<8x384xf32>
    %cst_13 = arith.constant 0.000000e+00 : f32
    %14 = vector.broadcast %cst_13 : f32 to vector<8x384xf32>
    %15 = arith.subf %14, %13 : vector<8x384xf32>
    %16 = math.exp %15 : vector<8x384xf32>
    %cst_14 = arith.constant 1.000000e+00 : f32
    %17 = vector.broadcast %cst_14 : f32 to vector<8x384xf32>
    %18 = arith.addf %17, %16 : vector<8x384xf32>
    %19 = tpu.reciprocal %18 {approx = true} : vector<8x384xf32> -> vector<8x384xf32>
    %20 = vector.extract_strided_slice %12 {offsets = [0, 384], sizes = [8, 128], strides = [1, 1]} : vector<8x512xf32> to vector<8x128xf32>
    %21 = math.tanh %20 : vector<8x128xf32>
    %22 = vector.extract_strided_slice %19 {offsets = [0, 128], sizes = [8, 128], strides = [1, 1]} : vector<8x384xf32> to vector<8x128xf32>
    %23 = arith.mulf %22, %9 : vector<8x128xf32>
    %24 = vector.extract_strided_slice %19 {offsets = [0, 0], sizes = [8, 128], strides = [1, 1]} : vector<8x384xf32> to vector<8x128xf32>
    %25 = arith.mulf %24, %21 : vector<8x128xf32>
    %26 = arith.addf %23, %25 : vector<8x128xf32>
    %27 = vector.extract_strided_slice %19 {offsets = [0, 256], sizes = [8, 128], strides = [1, 1]} : vector<8x384xf32> to vector<8x128xf32>
    %28 = math.tanh %26 : vector<8x128xf32>
    %29 = arith.mulf %27, %28 : vector<8x128xf32>
    %c0_15 = arith.constant 0 : index
    %c0_16 = arith.constant 0 : index
    %30 = vector.load %arg7[%c0_15, %c0_16] : memref<64x128xf32, #tpu.memory_space<vmem>>, vector<8x128xf32>
    tpu.vector_store %arg7[%c0_15, %c0_16], %29 {strides = array<i32>} : memref<64x128xf32, #tpu.memory_space<vmem>>, vector<8x128xf32>,
    %c8_17 = arith.constant 8 : index
    %c0_18 = arith.constant 0 : index
    %31 = vector.load %arg6[%c8_17, %c0_18] : memref<64x512xf32, #tpu.memory_space<vmem>>, vector<8x512xf32>
    %cst_19 = arith.constant dense<0.000000e+00> : vector<8x512xf32>
    %32 = tpu.matmul %29, %7, %cst_19 {dimension_numbers = #tpu.dot_dimension_numbers<[1], [0], [0], [1], [0, 0, 1, 1], [], []>} : vector<8x128xf32>, vector<128x512xf32>, vector<8x512xf32> -> vector<8x512xf32>
    %33 = arith.addf %31, %32 : vector<8x512xf32>
    %34 = vector.extract_strided_slice %33 {offsets = [0, 0], sizes = [8, 384], strides = [1, 1]} : vector<8x512xf32> to vector<8x384xf32>
    %cst_20 = arith.constant 0.000000e+00 : f32
    %35 = vector.broadcast %cst_20 : f32 to vector<8x384xf32>
    %36 = arith.subf %35, %34 : vector<8x384xf32>
    %37 = math.exp %36 : vector<8x384xf32>
    %cst_21 = arith.constant 1.000000e+00 : f32
    %38 = vector.broadcast %cst_21 : f32 to vector<8x384xf32>
    %39 = arith.addf %38, %37 : vector<8x384xf32>
    %40 = tpu.reciprocal %39 {approx = true} : vector<8x384xf32> -> vector<8x384xf32>
    %41 = vector.extract_strided_slice %33 {offsets = [0, 384], sizes = [8, 128], strides = [1, 1]} : vector<8x512xf32> to vector<8x128xf32>
    %42 = math.tanh %41 : vector<8x128xf32>
    %43 = vector.extract_strided_slice %40 {offsets = [0, 128], sizes = [8, 128], strides = [1, 1]} : vector<8x384xf32> to vector<8x128xf32>
    %44 = arith.mulf %43, %26 : vector<8x128xf32>
    %45 = vector.extract_strided_slice %40 {offsets = [0, 0], sizes = [8, 128], strides = [1, 1]} : vector<8x384xf32> to vector<8x128xf32>
    %46 = arith.mulf %45, %42 : vector<8x128xf32>
    %47 = arith.addf %44, %46 : vector<8x128xf32>
    %48 = vector.extract_strided_slice %40 {offsets = [0, 256], sizes = [8, 128], strides = [1, 1]} : vector<8x384xf32> to vector<8x128xf32>
    %49 = math.tanh %47 : vector<8x128xf32>
    %50 = arith.mulf %48, %49 : vector<8x128xf32>
    %c8_22 = arith.constant 8 : index
    %c0_23 = arith.constant 0 : index
    %51 = vector.load %arg7[%c8_22, %c0_23] : memref<64x128xf32, #tpu.memory_space<vmem>>, vector<8x128xf32>
    tpu.vector_store %arg7[%c8_22, %c0_23], %50 {strides = array<i32>} : memref<64x128xf32, #tpu.memory_space<vmem>>, vector<8x128xf32>,
    %c16 = arith.constant 16 : index
    %c0_24 = arith.constant 0 : index
    %52 = vector.load %arg6[%c16, %c0_24] : memref<64x512xf32, #tpu.memory_space<vmem>>, vector<8x512xf32>
    %cst_25 = arith.constant dense<0.000000e+00> : vector<8x512xf32>
    %53 = tpu.matmul %50, %7, %cst_25 {dimension_numbers = #tpu.dot_dimension_numbers<[1], [0], [0], [1], [0, 0, 1, 1], [], []>} : vector<8x128xf32>, vector<128x512xf32>, vector<8x512xf32> -> vector<8x512xf32>
    %54 = arith.addf %52, %53 : vector<8x512xf32>
    %55 = vector.extract_strided_slice %54 {offsets = [0, 0], sizes = [8, 384], strides = [1, 1]} : vector<8x512xf32> to vector<8x384xf32>
    %cst_26 = arith.constant 0.000000e+00 : f32
    %56 = vector.broadcast %cst_26 : f32 to vector<8x384xf32>
    %57 = arith.subf %56, %55 : vector<8x384xf32>
    %58 = math.exp %57 : vector<8x384xf32>
    %cst_27 = arith.constant 1.000000e+00 : f32
    %59 = vector.broadcast %cst_27 : f32 to vector<8x384xf32>
    %60 = arith.addf %59, %58 : vector<8x384xf32>
    %61 = tpu.reciprocal %60 {approx = true} : vector<8x384xf32> -> vector<8x384xf32>
    %62 = vector.extract_strided_slice %54 {offsets = [0, 384], sizes = [8, 128], strides = [1, 1]} : vector<8x512xf32> to vector<8x128xf32>
    %63 = math.tanh %62 : vector<8x128xf32>
    %64 = vector.extract_strided_slice %61 {offsets = [0, 128], sizes = [8, 128], strides = [1, 1]} : vector<8x384xf32> to vector<8x128xf32>
    %65 = arith.mulf %64, %47 : vector<8x128xf32>
    %66 = vector.extract_strided_slice %61 {offsets = [0, 0], sizes = [8, 128], strides = [1, 1]} : vector<8x384xf32> to vector<8x128xf32>
    %67 = arith.mulf %66, %63 : vector<8x128xf32>
    %68 = arith.addf %65, %67 : vector<8x128xf32>
    %69 = vector.extract_strided_slice %61 {offsets = [0, 256], sizes = [8, 128], strides = [1, 1]} : vector<8x384xf32> to vector<8x128xf32>
    %70 = math.tanh %68 : vector<8x128xf32>
    %71 = arith.mulf %69, %70 : vector<8x128xf32>
    %c16_28 = arith.constant 16 : index
    %c0_29 = arith.constant 0 : index
    %72 = vector.load %arg7[%c16_28, %c0_29] : memref<64x128xf32, #tpu.memory_space<vmem>>, vector<8x128xf32>
    tpu.vector_store %arg7[%c16_28, %c0_29], %71 {strides = array<i32>} : memref<64x128xf32, #tpu.memory_space<vmem>>, vector<8x128xf32>,
    %c24 = arith.constant 24 : index
    %c0_30 = arith.constant 0 : index
    %73 = vector.load %arg6[%c24, %c0_30] : memref<64x512xf32, #tpu.memory_space<vmem>>, vector<8x512xf32>
    %cst_31 = arith.constant dense<0.000000e+00> : vector<8x512xf32>
    %74 = tpu.matmul %71, %7, %cst_31 {dimension_numbers = #tpu.dot_dimension_numbers<[1], [0], [0], [1], [0, 0, 1, 1], [], []>} : vector<8x128xf32>, vector<128x512xf32>, vector<8x512xf32> -> vector<8x512xf32>
    %75 = arith.addf %73, %74 : vector<8x512xf32>
    %76 = vector.extract_strided_slice %75 {offsets = [0, 0], sizes = [8, 384], strides = [1, 1]} : vector<8x512xf32> to vector<8x384xf32>
    %cst_32 = arith.constant 0.000000e+00 : f32
    %77 = vector.broadcast %cst_32 : f32 to vector<8x384xf32>
    %78 = arith.subf %77, %76 : vector<8x384xf32>
    %79 = math.exp %78 : vector<8x384xf32>
    %cst_33 = arith.constant 1.000000e+00 : f32
    %80 = vector.broadcast %cst_33 : f32 to vector<8x384xf32>
    %81 = arith.addf %80, %79 : vector<8x384xf32>
    %82 = tpu.reciprocal %81 {approx = true} : vector<8x384xf32> -> vector<8x384xf32>
    %83 = vector.extract_strided_slice %75 {offsets = [0, 384], sizes = [8, 128], strides = [1, 1]} : vector<8x512xf32> to vector<8x128xf32>
    %84 = math.tanh %83 : vector<8x128xf32>
    %85 = vector.extract_strided_slice %82 {offsets = [0, 128], sizes = [8, 128], strides = [1, 1]} : vector<8x384xf32> to vector<8x128xf32>
    %86 = arith.mulf %85, %68 : vector<8x128xf32>
    %87 = vector.extract_strided_slice %82 {offsets = [0, 0], sizes = [8, 128], strides = [1, 1]} : vector<8x384xf32> to vector<8x128xf32>
    %88 = arith.mulf %87, %84 : vector<8x128xf32>
    %89 = arith.addf %86, %88 : vector<8x128xf32>
    %90 = vector.extract_strided_slice %82 {offsets = [0, 256], sizes = [8, 128], strides = [1, 1]} : vector<8x384xf32> to vector<8x128xf32>
    %91 = math.tanh %89 : vector<8x128xf32>
    %92 = arith.mulf %90, %91 : vector<8x128xf32>
    %c24_34 = arith.constant 24 : index
    %c0_35 = arith.constant 0 : index
    %93 = vector.load %arg7[%c24_34, %c0_35] : memref<64x128xf32, #tpu.memory_space<vmem>>, vector<8x128xf32>
    tpu.vector_store %arg7[%c24_34, %c0_35], %92 {strides = array<i32>} : memref<64x128xf32, #tpu.memory_space<vmem>>, vector<8x128xf32>,
    %c32 = arith.constant 32 : index
    %c0_36 = arith.constant 0 : index
    %94 = vector.load %arg6[%c32, %c0_36] : memref<64x512xf32, #tpu.memory_space<vmem>>, vector<8x512xf32>
    %cst_37 = arith.constant dense<0.000000e+00> : vector<8x512xf32>
    %95 = tpu.matmul %92, %7, %cst_37 {dimension_numbers = #tpu.dot_dimension_numbers<[1], [0], [0], [1], [0, 0, 1, 1], [], []>} : vector<8x128xf32>, vector<128x512xf32>, vector<8x512xf32> -> vector<8x512xf32>
    %96 = arith.addf %94, %95 : vector<8x512xf32>
    %97 = vector.extract_strided_slice %96 {offsets = [0, 0], sizes = [8, 384], strides = [1, 1]} : vector<8x512xf32> to vector<8x384xf32>
    %cst_38 = arith.constant 0.000000e+00 : f32
    %98 = vector.broadcast %cst_38 : f32 to vector<8x384xf32>
    %99 = arith.subf %98, %97 : vector<8x384xf32>
    %100 = math.exp %99 : vector<8x384xf32>
    %cst_39 = arith.constant 1.000000e+00 : f32
    %101 = vector.broadcast %cst_39 : f32 to vector<8x384xf32>
    %102 = arith.addf %101, %100 : vector<8x384xf32>
    %103 = tpu.reciprocal %102 {approx = true} : vector<8x384xf32> -> vector<8x384xf32>
    %104 = vector.extract_strided_slice %96 {offsets = [0, 384], sizes = [8, 128], strides = [1, 1]} : vector<8x512xf32> to vector<8x128xf32>
    %105 = math.tanh %104 : vector<8x128xf32>
    %106 = vector.extract_strided_slice %103 {offsets = [0, 128], sizes = [8, 128], strides = [1, 1]} : vector<8x384xf32> to vector<8x128xf32>
    %107 = arith.mulf %106, %89 : vector<8x128xf32>
    %108 = vector.extract_strided_slice %103 {offsets = [0, 0], sizes = [8, 128], strides = [1, 1]} : vector<8x384xf32> to vector<8x128xf32>
    %109 = arith.mulf %108, %105 : vector<8x128xf32>
    %110 = arith.addf %107, %109 : vector<8x128xf32>
    %111 = vector.extract_strided_slice %103 {offsets = [0, 256], sizes = [8, 128], strides = [1, 1]} : vector<8x384xf32> to vector<8x128xf32>
    %112 = math.tanh %110 : vector<8x128xf32>
    %113 = arith.mulf %111, %112 : vector<8x128xf32>
    %c32_40 = arith.constant 32 : index
    %c0_41 = arith.constant 0 : index
    %114 = vector.load %arg7[%c32_40, %c0_41] : memref<64x128xf32, #tpu.memory_space<vmem>>, vector<8x128xf32>
    tpu.vector_store %arg7[%c32_40, %c0_41], %113 {strides = array<i32>} : memref<64x128xf32, #tpu.memory_space<vmem>>, vector<8x128xf32>,
    %c40 = arith.constant 40 : index
    %c0_42 = arith.constant 0 : index
    %115 = vector.load %arg6[%c40, %c0_42] : memref<64x512xf32, #tpu.memory_space<vmem>>, vector<8x512xf32>
    %cst_43 = arith.constant dense<0.000000e+00> : vector<8x512xf32>
    %116 = tpu.matmul %113, %7, %cst_43 {dimension_numbers = #tpu.dot_dimension_numbers<[1], [0], [0], [1], [0, 0, 1, 1], [], []>} : vector<8x128xf32>, vector<128x512xf32>, vector<8x512xf32> -> vector<8x512xf32>
    %117 = arith.addf %115, %116 : vector<8x512xf32>
    %118 = vector.extract_strided_slice %117 {offsets = [0, 0], sizes = [8, 384], strides = [1, 1]} : vector<8x512xf32> to vector<8x384xf32>
    %cst_44 = arith.constant 0.000000e+00 : f32
    %119 = vector.broadcast %cst_44 : f32 to vector<8x384xf32>
    %120 = arith.subf %119, %118 : vector<8x384xf32>
    %121 = math.exp %120 : vector<8x384xf32>
    %cst_45 = arith.constant 1.000000e+00 : f32
    %122 = vector.broadcast %cst_45 : f32 to vector<8x384xf32>
    %123 = arith.addf %122, %121 : vector<8x384xf32>
    %124 = tpu.reciprocal %123 {approx = true} : vector<8x384xf32> -> vector<8x384xf32>
    %125 = vector.extract_strided_slice %117 {offsets = [0, 384], sizes = [8, 128], strides = [1, 1]} : vector<8x512xf32> to vector<8x128xf32>
    %126 = math.tanh %125 : vector<8x128xf32>
    %127 = vector.extract_strided_slice %124 {offsets = [0, 128], sizes = [8, 128], strides = [1, 1]} : vector<8x384xf32> to vector<8x128xf32>
    %128 = arith.mulf %127, %110 : vector<8x128xf32>
    %129 = vector.extract_strided_slice %124 {offsets = [0, 0], sizes = [8, 128], strides = [1, 1]} : vector<8x384xf32> to vector<8x128xf32>
    %130 = arith.mulf %129, %126 : vector<8x128xf32>
    %131 = arith.addf %128, %130 : vector<8x128xf32>
    %132 = vector.extract_strided_slice %124 {offsets = [0, 256], sizes = [8, 128], strides = [1, 1]} : vector<8x384xf32> to vector<8x128xf32>
    %133 = math.tanh %131 : vector<8x128xf32>
    %134 = arith.mulf %132, %133 : vector<8x128xf32>
    %c40_46 = arith.constant 40 : index
    %c0_47 = arith.constant 0 : index
    %135 = vector.load %arg7[%c40_46, %c0_47] : memref<64x128xf32, #tpu.memory_space<vmem>>, vector<8x128xf32>
    tpu.vector_store %arg7[%c40_46, %c0_47], %134 {strides = array<i32>} : memref<64x128xf32, #tpu.memory_space<vmem>>, vector<8x128xf32>,
    %c48 = arith.constant 48 : index
    %c0_48 = arith.constant 0 : index
    %136 = vector.load %arg6[%c48, %c0_48] : memref<64x512xf32, #tpu.memory_space<vmem>>, vector<8x512xf32>
    %cst_49 = arith.constant dense<0.000000e+00> : vector<8x512xf32>
    %137 = tpu.matmul %134, %7, %cst_49 {dimension_numbers = #tpu.dot_dimension_numbers<[1], [0], [0], [1], [0, 0, 1, 1], [], []>} : vector<8x128xf32>, vector<128x512xf32>, vector<8x512xf32> -> vector<8x512xf32>
    %138 = arith.addf %136, %137 : vector<8x512xf32>
    %139 = vector.extract_strided_slice %138 {offsets = [0, 0], sizes = [8, 384], strides = [1, 1]} : vector<8x512xf32> to vector<8x384xf32>
    %cst_50 = arith.constant 0.000000e+00 : f32
    %140 = vector.broadcast %cst_50 : f32 to vector<8x384xf32>
    %141 = arith.subf %140, %139 : vector<8x384xf32>
    %142 = math.exp %141 : vector<8x384xf32>
    %cst_51 = arith.constant 1.000000e+00 : f32
    %143 = vector.broadcast %cst_51 : f32 to vector<8x384xf32>
    %144 = arith.addf %143, %142 : vector<8x384xf32>
    %145 = tpu.reciprocal %144 {approx = true} : vector<8x384xf32> -> vector<8x384xf32>
    %146 = vector.extract_strided_slice %138 {offsets = [0, 384], sizes = [8, 128], strides = [1, 1]} : vector<8x512xf32> to vector<8x128xf32>
    %147 = math.tanh %146 : vector<8x128xf32>
    %148 = vector.extract_strided_slice %145 {offsets = [0, 128], sizes = [8, 128], strides = [1, 1]} : vector<8x384xf32> to vector<8x128xf32>
    %149 = arith.mulf %148, %131 : vector<8x128xf32>
    %150 = vector.extract_strided_slice %145 {offsets = [0, 0], sizes = [8, 128], strides = [1, 1]} : vector<8x384xf32> to vector<8x128xf32>
    %151 = arith.mulf %150, %147 : vector<8x128xf32>
    %152 = arith.addf %149, %151 : vector<8x128xf32>
    %153 = vector.extract_strided_slice %145 {offsets = [0, 256], sizes = [8, 128], strides = [1, 1]} : vector<8x384xf32> to vector<8x128xf32>
    %154 = math.tanh %152 : vector<8x128xf32>
    %155 = arith.mulf %153, %154 : vector<8x128xf32>
    %c48_52 = arith.constant 48 : index
    %c0_53 = arith.constant 0 : index
    %156 = vector.load %arg7[%c48_52, %c0_53] : memref<64x128xf32, #tpu.memory_space<vmem>>, vector<8x128xf32>
    tpu.vector_store %arg7[%c48_52, %c0_53], %155 {strides = array<i32>} : memref<64x128xf32, #tpu.memory_space<vmem>>, vector<8x128xf32>,
    %c56 = arith.constant 56 : index
    %c0_54 = arith.constant 0 : index
    %157 = vector.load %arg6[%c56, %c0_54] : memref<64x512xf32, #tpu.memory_space<vmem>>, vector<8x512xf32>
    %cst_55 = arith.constant dense<0.000000e+00> : vector<8x512xf32>
    %158 = tpu.matmul %155, %7, %cst_55 {dimension_numbers = #tpu.dot_dimension_numbers<[1], [0], [0], [1], [0, 0, 1, 1], [], []>} : vector<8x128xf32>, vector<128x512xf32>, vector<8x512xf32> -> vector<8x512xf32>
    %159 = arith.addf %157, %158 : vector<8x512xf32>
    %160 = vector.extract_strided_slice %159 {offsets = [0, 0], sizes = [8, 384], strides = [1, 1]} : vector<8x512xf32> to vector<8x384xf32>
    %cst_56 = arith.constant 0.000000e+00 : f32
    %161 = vector.broadcast %cst_56 : f32 to vector<8x384xf32>
    %162 = arith.subf %161, %160 : vector<8x384xf32>
    %163 = math.exp %162 : vector<8x384xf32>
    %cst_57 = arith.constant 1.000000e+00 : f32
    %164 = vector.broadcast %cst_57 : f32 to vector<8x384xf32>
    %165 = arith.addf %164, %163 : vector<8x384xf32>
    %166 = tpu.reciprocal %165 {approx = true} : vector<8x384xf32> -> vector<8x384xf32>
    %167 = vector.extract_strided_slice %159 {offsets = [0, 384], sizes = [8, 128], strides = [1, 1]} : vector<8x512xf32> to vector<8x128xf32>
    %168 = math.tanh %167 : vector<8x128xf32>
    %169 = vector.extract_strided_slice %166 {offsets = [0, 128], sizes = [8, 128], strides = [1, 1]} : vector<8x384xf32> to vector<8x128xf32>
    %170 = arith.mulf %169, %152 : vector<8x128xf32>
    %171 = vector.extract_strided_slice %166 {offsets = [0, 0], sizes = [8, 128], strides = [1, 1]} : vector<8x384xf32> to vector<8x128xf32>
    %172 = arith.mulf %171, %168 : vector<8x128xf32>
    %173 = arith.addf %170, %172 : vector<8x128xf32>
    %174 = vector.extract_strided_slice %166 {offsets = [0, 256], sizes = [8, 128], strides = [1, 1]} : vector<8x384xf32> to vector<8x128xf32>
    %175 = math.tanh %173 : vector<8x128xf32>
    %176 = arith.mulf %174, %175 : vector<8x128xf32>
    %c56_58 = arith.constant 56 : index
    %c0_59 = arith.constant 0 : index
    %177 = vector.load %arg7[%c56_58, %c0_59] : memref<64x128xf32, #tpu.memory_space<vmem>>, vector<8x128xf32>
    tpu.vector_store %arg7[%c56_58, %c0_59], %176 {strides = array<i32>} : memref<64x128xf32, #tpu.memory_space<vmem>>, vector<8x128xf32>,
    %c0_60 = arith.constant 0 : index
    %c0_61 = arith.constant 0 : index
    %178 = vector.load %arg7[%c0_60, %c0_61] : memref<64x128xf32, #tpu.memory_space<vmem>>, vector<64x128xf32>
    %c0_62 = arith.constant 0 : index
    %c0_63 = arith.constant 0 : index
    %179 = vector.load %arg2[%c0_62, %c0_63] : memref<256x512xf32, #tpu.memory_space<vmem>>, vector<128x512xf32>
    %cst_64 = arith.constant dense<0.000000e+00> : vector<64x512xf32>
    %180 = tpu.matmul %178, %179, %cst_64 {dimension_numbers = #tpu.dot_dimension_numbers<[1], [0], [0], [1], [0, 0, 1, 1], [], []>} : vector<64x128xf32>, vector<128x512xf32>, vector<64x512xf32> -> vector<64x512xf32>
    %c1 = arith.constant 1 : index
    %c0_65 = arith.constant 0 : index
    %181 = vector.load %arg3[%c1, %c0_65] : memref<2x512xf32, #tpu.memory_space<vmem>>, vector<1x512xf32>
    %182 = vector.broadcast %181 : vector<1x512xf32> to vector<64x512xf32>
    %183 = arith.addf %180, %182 : vector<64x512xf32>
    %c0_66 = arith.constant 0 : index
    %c0_67 = arith.constant 0 : index
    %184 = vector.load %arg6[%c0_66, %c0_67] : memref<64x512xf32, #tpu.memory_space<vmem>>, vector<64x512xf32>
    tpu.vector_store %arg6[%c0_66, %c0_67], %183 {strides = array<i32>} : memref<64x512xf32, #tpu.memory_space<vmem>>, vector<64x512xf32>,
    %c128 = arith.constant 128 : index
    %c0_68 = arith.constant 0 : index
    %185 = vector.load %arg2[%c128, %c0_68] : memref<256x512xf32, #tpu.memory_space<vmem>>, vector<128x512xf32>
    %cst_69 = arith.constant 0.000000e+00 : f32
    %186 = vector.broadcast %cst_69 : f32 to vector<8x128xf32>
    %cst_70 = arith.constant 0.000000e+00 : f32
    %187 = vector.broadcast %cst_70 : f32 to vector<8x128xf32>
    %c0_71 = arith.constant 0 : index
    %c0_72 = arith.constant 0 : index
    %188 = vector.load %arg6[%c0_71, %c0_72] : memref<64x512xf32, #tpu.memory_space<vmem>>, vector<8x512xf32>
    %cst_73 = arith.constant dense<0.000000e+00> : vector<8x512xf32>
    %189 = tpu.matmul %186, %185, %cst_73 {dimension_numbers = #tpu.dot_dimension_numbers<[1], [0], [0], [1], [0, 0, 1, 1], [], []>} : vector<8x128xf32>, vector<128x512xf32>, vector<8x512xf32> -> vector<8x512xf32>
    %190 = arith.addf %188, %189 : vector<8x512xf32>
    %191 = vector.extract_strided_slice %190 {offsets = [0, 0], sizes = [8, 384], strides = [1, 1]} : vector<8x512xf32> to vector<8x384xf32>
    %cst_74 = arith.constant 0.000000e+00 : f32
    %192 = vector.broadcast %cst_74 : f32 to vector<8x384xf32>
    %193 = arith.subf %192, %191 : vector<8x384xf32>
    %194 = math.exp %193 : vector<8x384xf32>
    %cst_75 = arith.constant 1.000000e+00 : f32
    %195 = vector.broadcast %cst_75 : f32 to vector<8x384xf32>
    %196 = arith.addf %195, %194 : vector<8x384xf32>
    %197 = tpu.reciprocal %196 {approx = true} : vector<8x384xf32> -> vector<8x384xf32>
    %198 = vector.extract_strided_slice %190 {offsets = [0, 384], sizes = [8, 128], strides = [1, 1]} : vector<8x512xf32> to vector<8x128xf32>
    %199 = math.tanh %198 : vector<8x128xf32>
    %200 = vector.extract_strided_slice %197 {offsets = [0, 128], sizes = [8, 128], strides = [1, 1]} : vector<8x384xf32> to vector<8x128xf32>
    %201 = arith.mulf %200, %187 : vector<8x128xf32>
    %202 = vector.extract_strided_slice %197 {offsets = [0, 0], sizes = [8, 128], strides = [1, 1]} : vector<8x384xf32> to vector<8x128xf32>
    %203 = arith.mulf %202, %199 : vector<8x128xf32>
    %204 = arith.addf %201, %203 : vector<8x128xf32>
    %205 = vector.extract_strided_slice %197 {offsets = [0, 256], sizes = [8, 128], strides = [1, 1]} : vector<8x384xf32> to vector<8x128xf32>
    %206 = math.tanh %204 : vector<8x128xf32>
    %207 = arith.mulf %205, %206 : vector<8x128xf32>
    %c8_76 = arith.constant 8 : index
    %c0_77 = arith.constant 0 : index
    %208 = vector.load %arg6[%c8_76, %c0_77] : memref<64x512xf32, #tpu.memory_space<vmem>>, vector<8x512xf32>
    %cst_78 = arith.constant dense<0.000000e+00> : vector<8x512xf32>
    %209 = tpu.matmul %207, %185, %cst_78 {dimension_numbers = #tpu.dot_dimension_numbers<[1], [0], [0], [1], [0, 0, 1, 1], [], []>} : vector<8x128xf32>, vector<128x512xf32>, vector<8x512xf32> -> vector<8x512xf32>
    %210 = arith.addf %208, %209 : vector<8x512xf32>
    %211 = vector.extract_strided_slice %210 {offsets = [0, 0], sizes = [8, 384], strides = [1, 1]} : vector<8x512xf32> to vector<8x384xf32>
    %cst_79 = arith.constant 0.000000e+00 : f32
    %212 = vector.broadcast %cst_79 : f32 to vector<8x384xf32>
    %213 = arith.subf %212, %211 : vector<8x384xf32>
    %214 = math.exp %213 : vector<8x384xf32>
    %cst_80 = arith.constant 1.000000e+00 : f32
    %215 = vector.broadcast %cst_80 : f32 to vector<8x384xf32>
    %216 = arith.addf %215, %214 : vector<8x384xf32>
    %217 = tpu.reciprocal %216 {approx = true} : vector<8x384xf32> -> vector<8x384xf32>
    %218 = vector.extract_strided_slice %210 {offsets = [0, 384], sizes = [8, 128], strides = [1, 1]} : vector<8x512xf32> to vector<8x128xf32>
    %219 = math.tanh %218 : vector<8x128xf32>
    %220 = vector.extract_strided_slice %217 {offsets = [0, 128], sizes = [8, 128], strides = [1, 1]} : vector<8x384xf32> to vector<8x128xf32>
    %221 = arith.mulf %220, %204 : vector<8x128xf32>
    %222 = vector.extract_strided_slice %217 {offsets = [0, 0], sizes = [8, 128], strides = [1, 1]} : vector<8x384xf32> to vector<8x128xf32>
    %223 = arith.mulf %222, %219 : vector<8x128xf32>
    %224 = arith.addf %221, %223 : vector<8x128xf32>
    %225 = vector.extract_strided_slice %217 {offsets = [0, 256], sizes = [8, 128], strides = [1, 1]} : vector<8x384xf32> to vector<8x128xf32>
    %226 = math.tanh %224 : vector<8x128xf32>
    %227 = arith.mulf %225, %226 : vector<8x128xf32>
    %c16_81 = arith.constant 16 : index
    %c0_82 = arith.constant 0 : index
    %228 = vector.load %arg6[%c16_81, %c0_82] : memref<64x512xf32, #tpu.memory_space<vmem>>, vector<8x512xf32>
    %cst_83 = arith.constant dense<0.000000e+00> : vector<8x512xf32>
    %229 = tpu.matmul %227, %185, %cst_83 {dimension_numbers = #tpu.dot_dimension_numbers<[1], [0], [0], [1], [0, 0, 1, 1], [], []>} : vector<8x128xf32>, vector<128x512xf32>, vector<8x512xf32> -> vector<8x512xf32>
    %230 = arith.addf %228, %229 : vector<8x512xf32>
    %231 = vector.extract_strided_slice %230 {offsets = [0, 0], sizes = [8, 384], strides = [1, 1]} : vector<8x512xf32> to vector<8x384xf32>
    %cst_84 = arith.constant 0.000000e+00 : f32
    %232 = vector.broadcast %cst_84 : f32 to vector<8x384xf32>
    %233 = arith.subf %232, %231 : vector<8x384xf32>
    %234 = math.exp %233 : vector<8x384xf32>
    %cst_85 = arith.constant 1.000000e+00 : f32
    %235 = vector.broadcast %cst_85 : f32 to vector<8x384xf32>
    %236 = arith.addf %235, %234 : vector<8x384xf32>
    %237 = tpu.reciprocal %236 {approx = true} : vector<8x384xf32> -> vector<8x384xf32>
    %238 = vector.extract_strided_slice %230 {offsets = [0, 384], sizes = [8, 128], strides = [1, 1]} : vector<8x512xf32> to vector<8x128xf32>
    %239 = math.tanh %238 : vector<8x128xf32>
    %240 = vector.extract_strided_slice %237 {offsets = [0, 128], sizes = [8, 128], strides = [1, 1]} : vector<8x384xf32> to vector<8x128xf32>
    %241 = arith.mulf %240, %224 : vector<8x128xf32>
    %242 = vector.extract_strided_slice %237 {offsets = [0, 0], sizes = [8, 128], strides = [1, 1]} : vector<8x384xf32> to vector<8x128xf32>
    %243 = arith.mulf %242, %239 : vector<8x128xf32>
    %244 = arith.addf %241, %243 : vector<8x128xf32>
    %245 = vector.extract_strided_slice %237 {offsets = [0, 256], sizes = [8, 128], strides = [1, 1]} : vector<8x384xf32> to vector<8x128xf32>
    %246 = math.tanh %244 : vector<8x128xf32>
    %247 = arith.mulf %245, %246 : vector<8x128xf32>
    %c24_86 = arith.constant 24 : index
    %c0_87 = arith.constant 0 : index
    %248 = vector.load %arg6[%c24_86, %c0_87] : memref<64x512xf32, #tpu.memory_space<vmem>>, vector<8x512xf32>
    %cst_88 = arith.constant dense<0.000000e+00> : vector<8x512xf32>
    %249 = tpu.matmul %247, %185, %cst_88 {dimension_numbers = #tpu.dot_dimension_numbers<[1], [0], [0], [1], [0, 0, 1, 1], [], []>} : vector<8x128xf32>, vector<128x512xf32>, vector<8x512xf32> -> vector<8x512xf32>
    %250 = arith.addf %248, %249 : vector<8x512xf32>
    %251 = vector.extract_strided_slice %250 {offsets = [0, 0], sizes = [8, 384], strides = [1, 1]} : vector<8x512xf32> to vector<8x384xf32>
    %cst_89 = arith.constant 0.000000e+00 : f32
    %252 = vector.broadcast %cst_89 : f32 to vector<8x384xf32>
    %253 = arith.subf %252, %251 : vector<8x384xf32>
    %254 = math.exp %253 : vector<8x384xf32>
    %cst_90 = arith.constant 1.000000e+00 : f32
    %255 = vector.broadcast %cst_90 : f32 to vector<8x384xf32>
    %256 = arith.addf %255, %254 : vector<8x384xf32>
    %257 = tpu.reciprocal %256 {approx = true} : vector<8x384xf32> -> vector<8x384xf32>
    %258 = vector.extract_strided_slice %250 {offsets = [0, 384], sizes = [8, 128], strides = [1, 1]} : vector<8x512xf32> to vector<8x128xf32>
    %259 = math.tanh %258 : vector<8x128xf32>
    %260 = vector.extract_strided_slice %257 {offsets = [0, 128], sizes = [8, 128], strides = [1, 1]} : vector<8x384xf32> to vector<8x128xf32>
    %261 = arith.mulf %260, %244 : vector<8x128xf32>
    %262 = vector.extract_strided_slice %257 {offsets = [0, 0], sizes = [8, 128], strides = [1, 1]} : vector<8x384xf32> to vector<8x128xf32>
    %263 = arith.mulf %262, %259 : vector<8x128xf32>
    %264 = arith.addf %261, %263 : vector<8x128xf32>
    %265 = vector.extract_strided_slice %257 {offsets = [0, 256], sizes = [8, 128], strides = [1, 1]} : vector<8x384xf32> to vector<8x128xf32>
    %266 = math.tanh %264 : vector<8x128xf32>
    %267 = arith.mulf %265, %266 : vector<8x128xf32>
    %c32_91 = arith.constant 32 : index
    %c0_92 = arith.constant 0 : index
    %268 = vector.load %arg6[%c32_91, %c0_92] : memref<64x512xf32, #tpu.memory_space<vmem>>, vector<8x512xf32>
    %cst_93 = arith.constant dense<0.000000e+00> : vector<8x512xf32>
    %269 = tpu.matmul %267, %185, %cst_93 {dimension_numbers = #tpu.dot_dimension_numbers<[1], [0], [0], [1], [0, 0, 1, 1], [], []>} : vector<8x128xf32>, vector<128x512xf32>, vector<8x512xf32> -> vector<8x512xf32>
    %270 = arith.addf %268, %269 : vector<8x512xf32>
    %271 = vector.extract_strided_slice %270 {offsets = [0, 0], sizes = [8, 384], strides = [1, 1]} : vector<8x512xf32> to vector<8x384xf32>
    %cst_94 = arith.constant 0.000000e+00 : f32
    %272 = vector.broadcast %cst_94 : f32 to vector<8x384xf32>
    %273 = arith.subf %272, %271 : vector<8x384xf32>
    %274 = math.exp %273 : vector<8x384xf32>
    %cst_95 = arith.constant 1.000000e+00 : f32
    %275 = vector.broadcast %cst_95 : f32 to vector<8x384xf32>
    %276 = arith.addf %275, %274 : vector<8x384xf32>
    %277 = tpu.reciprocal %276 {approx = true} : vector<8x384xf32> -> vector<8x384xf32>
    %278 = vector.extract_strided_slice %270 {offsets = [0, 384], sizes = [8, 128], strides = [1, 1]} : vector<8x512xf32> to vector<8x128xf32>
    %279 = math.tanh %278 : vector<8x128xf32>
    %280 = vector.extract_strided_slice %277 {offsets = [0, 128], sizes = [8, 128], strides = [1, 1]} : vector<8x384xf32> to vector<8x128xf32>
    %281 = arith.mulf %280, %264 : vector<8x128xf32>
    %282 = vector.extract_strided_slice %277 {offsets = [0, 0], sizes = [8, 128], strides = [1, 1]} : vector<8x384xf32> to vector<8x128xf32>
    %283 = arith.mulf %282, %279 : vector<8x128xf32>
    %284 = arith.addf %281, %283 : vector<8x128xf32>
    %285 = vector.extract_strided_slice %277 {offsets = [0, 256], sizes = [8, 128], strides = [1, 1]} : vector<8x384xf32> to vector<8x128xf32>
    %286 = math.tanh %284 : vector<8x128xf32>
    %287 = arith.mulf %285, %286 : vector<8x128xf32>
    %c40_96 = arith.constant 40 : index
    %c0_97 = arith.constant 0 : index
    %288 = vector.load %arg6[%c40_96, %c0_97] : memref<64x512xf32, #tpu.memory_space<vmem>>, vector<8x512xf32>
    %cst_98 = arith.constant dense<0.000000e+00> : vector<8x512xf32>
    %289 = tpu.matmul %287, %185, %cst_98 {dimension_numbers = #tpu.dot_dimension_numbers<[1], [0], [0], [1], [0, 0, 1, 1], [], []>} : vector<8x128xf32>, vector<128x512xf32>, vector<8x512xf32> -> vector<8x512xf32>
    %290 = arith.addf %288, %289 : vector<8x512xf32>
    %291 = vector.extract_strided_slice %290 {offsets = [0, 0], sizes = [8, 384], strides = [1, 1]} : vector<8x512xf32> to vector<8x384xf32>
    %cst_99 = arith.constant 0.000000e+00 : f32
    %292 = vector.broadcast %cst_99 : f32 to vector<8x384xf32>
    %293 = arith.subf %292, %291 : vector<8x384xf32>
    %294 = math.exp %293 : vector<8x384xf32>
    %cst_100 = arith.constant 1.000000e+00 : f32
    %295 = vector.broadcast %cst_100 : f32 to vector<8x384xf32>
    %296 = arith.addf %295, %294 : vector<8x384xf32>
    %297 = tpu.reciprocal %296 {approx = true} : vector<8x384xf32> -> vector<8x384xf32>
    %298 = vector.extract_strided_slice %290 {offsets = [0, 384], sizes = [8, 128], strides = [1, 1]} : vector<8x512xf32> to vector<8x128xf32>
    %299 = math.tanh %298 : vector<8x128xf32>
    %300 = vector.extract_strided_slice %297 {offsets = [0, 128], sizes = [8, 128], strides = [1, 1]} : vector<8x384xf32> to vector<8x128xf32>
    %301 = arith.mulf %300, %284 : vector<8x128xf32>
    %302 = vector.extract_strided_slice %297 {offsets = [0, 0], sizes = [8, 128], strides = [1, 1]} : vector<8x384xf32> to vector<8x128xf32>
    %303 = arith.mulf %302, %299 : vector<8x128xf32>
    %304 = arith.addf %301, %303 : vector<8x128xf32>
    %305 = vector.extract_strided_slice %297 {offsets = [0, 256], sizes = [8, 128], strides = [1, 1]} : vector<8x384xf32> to vector<8x128xf32>
    %306 = math.tanh %304 : vector<8x128xf32>
    %307 = arith.mulf %305, %306 : vector<8x128xf32>
    %c48_101 = arith.constant 48 : index
    %c0_102 = arith.constant 0 : index
    %308 = vector.load %arg6[%c48_101, %c0_102] : memref<64x512xf32, #tpu.memory_space<vmem>>, vector<8x512xf32>
    %cst_103 = arith.constant dense<0.000000e+00> : vector<8x512xf32>
    %309 = tpu.matmul %307, %185, %cst_103 {dimension_numbers = #tpu.dot_dimension_numbers<[1], [0], [0], [1], [0, 0, 1, 1], [], []>} : vector<8x128xf32>, vector<128x512xf32>, vector<8x512xf32> -> vector<8x512xf32>
    %310 = arith.addf %308, %309 : vector<8x512xf32>
    %311 = vector.extract_strided_slice %310 {offsets = [0, 0], sizes = [8, 384], strides = [1, 1]} : vector<8x512xf32> to vector<8x384xf32>
    %cst_104 = arith.constant 0.000000e+00 : f32
    %312 = vector.broadcast %cst_104 : f32 to vector<8x384xf32>
    %313 = arith.subf %312, %311 : vector<8x384xf32>
    %314 = math.exp %313 : vector<8x384xf32>
    %cst_105 = arith.constant 1.000000e+00 : f32
    %315 = vector.broadcast %cst_105 : f32 to vector<8x384xf32>
    %316 = arith.addf %315, %314 : vector<8x384xf32>
    %317 = tpu.reciprocal %316 {approx = true} : vector<8x384xf32> -> vector<8x384xf32>
    %318 = vector.extract_strided_slice %310 {offsets = [0, 384], sizes = [8, 128], strides = [1, 1]} : vector<8x512xf32> to vector<8x128xf32>
    %319 = math.tanh %318 : vector<8x128xf32>
    %320 = vector.extract_strided_slice %317 {offsets = [0, 128], sizes = [8, 128], strides = [1, 1]} : vector<8x384xf32> to vector<8x128xf32>
    %321 = arith.mulf %320, %304 : vector<8x128xf32>
    %322 = vector.extract_strided_slice %317 {offsets = [0, 0], sizes = [8, 128], strides = [1, 1]} : vector<8x384xf32> to vector<8x128xf32>
    %323 = arith.mulf %322, %319 : vector<8x128xf32>
    %324 = arith.addf %321, %323 : vector<8x128xf32>
    %325 = vector.extract_strided_slice %317 {offsets = [0, 256], sizes = [8, 128], strides = [1, 1]} : vector<8x384xf32> to vector<8x128xf32>
    %326 = math.tanh %324 : vector<8x128xf32>
    %327 = arith.mulf %325, %326 : vector<8x128xf32>
    %c56_106 = arith.constant 56 : index
    %c0_107 = arith.constant 0 : index
    %328 = vector.load %arg6[%c56_106, %c0_107] : memref<64x512xf32, #tpu.memory_space<vmem>>, vector<8x512xf32>
    %cst_108 = arith.constant dense<0.000000e+00> : vector<8x512xf32>
    %329 = tpu.matmul %327, %185, %cst_108 {dimension_numbers = #tpu.dot_dimension_numbers<[1], [0], [0], [1], [0, 0, 1, 1], [], []>} : vector<8x128xf32>, vector<128x512xf32>, vector<8x512xf32> -> vector<8x512xf32>
    %330 = arith.addf %328, %329 : vector<8x512xf32>
    %331 = vector.extract_strided_slice %330 {offsets = [0, 0], sizes = [8, 384], strides = [1, 1]} : vector<8x512xf32> to vector<8x384xf32>
    %cst_109 = arith.constant 0.000000e+00 : f32
    %332 = vector.broadcast %cst_109 : f32 to vector<8x384xf32>
    %333 = arith.subf %332, %331 : vector<8x384xf32>
    %334 = math.exp %333 : vector<8x384xf32>
    %cst_110 = arith.constant 1.000000e+00 : f32
    %335 = vector.broadcast %cst_110 : f32 to vector<8x384xf32>
    %336 = arith.addf %335, %334 : vector<8x384xf32>
    %337 = tpu.reciprocal %336 {approx = true} : vector<8x384xf32> -> vector<8x384xf32>
    %338 = vector.extract_strided_slice %330 {offsets = [0, 384], sizes = [8, 128], strides = [1, 1]} : vector<8x512xf32> to vector<8x128xf32>
    %339 = math.tanh %338 : vector<8x128xf32>
    %340 = vector.extract_strided_slice %337 {offsets = [0, 128], sizes = [8, 128], strides = [1, 1]} : vector<8x384xf32> to vector<8x128xf32>
    %341 = arith.mulf %340, %324 : vector<8x128xf32>
    %342 = vector.extract_strided_slice %337 {offsets = [0, 0], sizes = [8, 128], strides = [1, 1]} : vector<8x384xf32> to vector<8x128xf32>
    %343 = arith.mulf %342, %339 : vector<8x128xf32>
    %344 = arith.addf %341, %343 : vector<8x128xf32>
    %345 = vector.extract_strided_slice %337 {offsets = [0, 256], sizes = [8, 128], strides = [1, 1]} : vector<8x384xf32> to vector<8x128xf32>
    %346 = math.tanh %344 : vector<8x128xf32>
    %347 = arith.mulf %345, %346 : vector<8x128xf32>
    %c0_111 = arith.constant 0 : index
    %c0_112 = arith.constant 0 : index
    %348 = vector.load %arg4[%c0_111, %c0_112] : memref<2x128xf32, #tpu.memory_space<vmem>>, vector<1x128xf32>
    %349 = vector.broadcast %348 : vector<1x128xf32> to vector<8x128xf32>
    %350 = arith.mulf %347, %349 : vector<8x128xf32>
    %cst_113 = arith.constant dense<0.000000e+00> : vector<8xf32>
    %351 = vector.multi_reduction <add>, %350, %cst_113 [1] : vector<8x128xf32> to vector<8xf32>
    %352 = vector.shape_cast %351 : vector<8xf32> to vector<8x1xf32>
    %c1_114 = arith.constant 1 : index
    %c0_115 = arith.constant 0 : index
    %353 = vector.load %arg4[%c1_114, %c0_115] : memref<2x128xf32, #tpu.memory_space<vmem>>, vector<1x1xf32>
    %354 = vector.broadcast %353 : vector<1x1xf32> to vector<8x1xf32>
    %355 = arith.addf %352, %354 : vector<8x1xf32>
    %c0_116 = arith.constant 0 : index
    %c0_117 = arith.constant 0 : index
    %356 = vector.load %arg5[%c0_116, %c0_117] : memref<8x1xf32, #tpu.memory_space<vmem>>, vector<8x1xf32>
    tpu.vector_store %arg5[%c0_116, %c0_117], %355 {strides = array<i32>} : memref<8x1xf32, #tpu.memory_space<vmem>>, vector<8x1xf32>,
    return
  }
}

</mosaic_0001>

<llo_original>
// kernel: tpu_custom_call.1
$region0: #{tpu_custom_call.1}
  #allocation0 [shape = 'u32[]', space=smem, size = 0x4, offset = 0x4, fixed_abs, tag = 'smem constant byte address 0x4 - core index']
  #allocation1 [shape = 'u32[144,128]{1,0:T(1,128)}', space=vmem, size = 0x12000, scoped, tag = 'internal scratch']
  #allocation2 [shape = 'f32[64,512]{1,0:T(8,128)}', space=vmem, size = 0x20000, scoped, tag = 'scratch operand']
  #allocation3 [shape = 'f32[64,128]{1,0:T(8,128)}', space=vmem, size = 0x8000, scoped, tag = 'scratch operand']
  %s0 = inlined_call_operand.vmem [shape: f32[64,8], index: 0, kind: input, shape index: {}]
  %s1 = inlined_call_operand.hbm [shape: f32[136,512], index: 1, kind: input, shape index: {}]
  %s2 = inlined_call_operand.hbm [shape: f32[256,512], index: 2, kind: input, shape index: {}]
  %s3 = inlined_call_operand.vmem [shape: f32[2,512], index: 3, kind: input, shape index: {}]
  %s4 = inlined_call_operand.vmem [shape: f32[2,128], index: 4, kind: input, shape index: {}]
  %s5 = inlined_call_operand.vmem [shape: f32[8,1], index: 5, kind: output, shape index: {}]
  %s6 = sld [smem:[#allocation0]]
  $region38: #{tpu_custom_call.1} parent=0
    _
  %s8 = ssub.s32 1, %s6
  %s9 = scalar_select 0, %s8, %s6
  $region1: #{tpu_custom_call.1} parent=0
    #allocation4 [shape = 'u8[278528]{0}', space=vmem, size = 0x44000, scoped, tag = 'input window, operand 1, single buffered']
    #allocation5 [shape = 's32[1]{0}', space=sflag, size = 0x4, scoped, tag = 'scoped memory for tpu_custom_call.1']
    #allocation6 [shape = 'u8[524288]{0}', space=vmem, size = 0x80000, scoped, tag = 'input window, operand 2, single buffered']
    #allocation7 [shape = 's32[1]{0}', space=sflag, size = 0x4, scoped, tag = 'scoped memory for tpu_custom_call.1']
    %10 = vsyncpa [#allocation5], 0
    %11 = vsyncpa [#allocation7], 0
    // Predicated region
    $region2: #{tpu_custom_call.1} parent=1 // pred_check
      _
    $region3: #{tpu_custom_call.1} parent=1 // pred_check_branch
      %13 = sbr.rel (0) target = $region5
    $region4: #{tpu_custom_call.1} parent=1 // pred_region
      _
    $region5: #{tpu_custom_call.1} parent=1 // pred_fallthru
      _
    // Predicated region
    $region6: #{tpu_custom_call.1} parent=1 // pred_check
      _
    $region7: #{tpu_custom_call.1} parent=1 // pred_check_branch
      %15 = sbr.rel (0) target = $region9
    $region8: #{tpu_custom_call.1} parent=1 // pred_region
      %s17 = ssub.s32 8704, 8704
      %18 = vsyncadd [#allocation5], %s17
      %s19 = sshll.u32 [#allocation4], 4
      %s20 = int_to_ptr.vmem [resolvable:$true] %s19
      %25 = dma.hbm_to_vmem [thread:$0]  %s1, 8704, %s20, [#allocation5], 512, 512, 32
    $region9: #{tpu_custom_call.1} parent=1 // pred_fallthru
      _
    // Predicated region
    $region10: #{tpu_custom_call.1} parent=1 // pred_check
      _
    $region11: #{tpu_custom_call.1} parent=1 // pred_check_branch
      %27 = sbr.rel (0) target = $region13
    $region12: #{tpu_custom_call.1} parent=1 // pred_region
      %s29 = ssub.s32 16384, 16384
      %30 = vsyncadd [#allocation7], %s29
      %s31 = sshll.u32 [#allocation6], 4
      %s32 = int_to_ptr.vmem [resolvable:$true] %s31
      %37 = dma.hbm_to_vmem [thread:$0]  %s2, 16384, %s32, [#allocation7], 512, 512, 32
    $region13: #{tpu_custom_call.1} parent=1 // pred_fallthru
      _
    // Predicated region
    $region14: #{tpu_custom_call.1} parent=1 // pred_check
      _
    $region15: #{tpu_custom_call.1} parent=1 // pred_check_branch
      %39 = sbr.rel (0) target = $region17
    $region16: #{tpu_custom_call.1} parent=1 // pred_region
      _
    $region17: #{tpu_custom_call.1} parent=1 // pred_fallthru
      _
    // Predicated region
    $region18: #{tpu_custom_call.1} parent=1 // pred_check
      _
    $region19: #{tpu_custom_call.1} parent=1 // pred_check_branch
      %41 = sbr.rel (0) target = $region21
    $region20: #{tpu_custom_call.1} parent=1 // pred_region
      _
    $region21: #{tpu_custom_call.1} parent=1 // pred_fallthru
      _
    // Predicated region
    $region22: #{tpu_custom_call.1} parent=1 // pred_check
      _
    $region23: #{tpu_custom_call.1} parent=1 // pred_check_branch
      %43 = sbr.rel (0) target = $region25
    $region24: #{tpu_custom_call.1} parent=1 // pred_region
      %44 = dma.done [#allocation5], 8704
    $region25: #{tpu_custom_call.1} parent=1 // pred_fallthru
      _
    // Predicated region
    $region26: #{tpu_custom_call.1} parent=1 // pred_check
      _
    $region27: #{tpu_custom_call.1} parent=1 // pred_check_branch
      %46 = sbr.rel (0) target = $region29
    $region28: #{tpu_custom_call.1} parent=1 // pred_region
      %47 = dma.done [#allocation7], 16384
    $region29: #{tpu_custom_call.1} parent=1 // pred_fallthru
      _
    %v48 = vld [vmem:[%s0] sm:$0xff]
    %v49 = vld [vmem:[%s0 + $0x8] sm:$0xff]
    %v50 = vld [vmem:[%s0 + $0x10] sm:$0xff]
    %v51 = vld [vmem:[%s0 + $0x18] sm:$0xff]
    %v52 = vld [vmem:[%s0 + $0x20] sm:$0xff]
    %v53 = vld [vmem:[%s0 + $0x28] sm:$0xff]
    %v54 = vld [vmem:[%s0 + $0x30] sm:$0xff]
    %v55 = vld [vmem:[%s0 + $0x38] sm:$0xff]
    %v56 = vld [vmem:[#allocation4] sm:$0xff]
    %v57 = vld [vmem:[#allocation4 + $0x8] sm:$0xff]
    %v58 = vld [vmem:[#allocation4 + $0x10] sm:$0xff]
    %v59 = vld [vmem:[#allocation4 + $0x18] sm:$0xff]
    %v60 = vld [vmem:[%s3] ss:$2 sm:$0xf]
    %v62 = vlaneseq
    %v63 = vshrl.u32 %v62, 7
    %v64 = vsub.s32 0, %v63
    %v65 = vrot.slane %v60, %v64
    %v66 = vlaneseq
    %v67 = vshrl.u32 %v66, 7
    %v68 = vsub.s32 1, %v67
    %v69 = vrot.slane %v60, %v68
    %v70 = vlaneseq
    %v71 = vshrl.u32 %v70, 7
    %v72 = vsub.s32 2, %v71
    %v73 = vrot.slane %v60, %v72
    %v74 = vlaneseq
    %v75 = vshrl.u32 %v74, 7
    %v76 = vsub.s32 3, %v75
    %v77 = vrot.slane %v60, %v76
    %vm82 = vcmask 64512
    %v84 = vsel %vm82, %v48, 0
    %v87 = vsel %vm82, %v49, 0
    %v90 = vsel %vm82, %v50, 0
    %v93 = vsel %vm82, %v51, 0
    %v96 = vsel %vm82, %v52, 0
    %v99 = vsel %vm82, %v53, 0
    %v102 = vsel %vm82, %v54, 0
    %v105 = vsel %vm82, %v55, 0
    %107 = vmatprep.subr.mxu0 0.0
    %108 = vmatpush1.msra.mxu0 0.0
    %109 = vmatprep.subr.mxu0 0.0
    %110 = vmatpush1.msra.mxu0 0.0
    %111 = vmatprep.subr.mxu0 0.0
    %112 = vmatpush1.msra.mxu0 0.0
    %113 = vmatprep.subr.mxu0 0.0
    %114 = vmatpush1.msra.mxu0 0.0
    %115 = vmatprep.subr.mxu0 0.0
    %116 = vmatpush1.msra.mxu0 0.0
    %117 = vmatprep.subr.mxu0 0.0
    %118 = vmatpush1.msra.mxu0 0.0
    %119 = vmatprep.subr.mxu0 0.0
    %120 = vmatpush1.msra.mxu0 0.0
    %121 = vmatprep.subr.mxu0 0.0
    %122 = vmatpush1.msra.mxu0 0.0
    %123 = vmatprep.subr.mxu0 0.0
    %124 = vmatpush1.msra.mxu0 0.0
    %125 = vmatprep.subr.mxu0 0.0
    %126 = vmatpush1.msra.mxu0 0.0
    %127 = vmatprep.subr.mxu0 0.0
    %128 = vmatpush1.msra.mxu0 0.0
    %129 = vmatprep.subr.mxu0 0.0
    %130 = vmatpush1.msra.mxu0 0.0
    %131 = vmatprep.subr.mxu0 0.0
    %132 = vmatpush1.msra.mxu0 0.0
    %133 = vmatprep.subr.mxu0 0.0
    %134 = vmatpush1.msra.mxu0 0.0
    %135 = vmatprep.subr.mxu0 0.0
    %136 = vmatpush1.msra.mxu0 0.0
    %137 = vmatprep.subr.mxu0 %v57
    %138 = vmatpush1.msra.mxu0 %v56
    %139 = vmatprep.subr.mxu0 0.0
    %140 = vmatpush2.msra.mxu0 0.0
    %141 = vmatprep.subr.mxu0 0.0
    %142 = vmatpush2.msra.mxu0 0.0
    %143 = vmatprep.subr.mxu0 0.0
    %144 = vmatpush2.msra.mxu0 0.0
    %145 = vmatprep.subr.mxu0 0.0
    %146 = vmatpush2.msra.mxu0 0.0
    %147 = vmatprep.subr.mxu0 0.0
    %148 = vmatpush2.msra.mxu0 0.0
    %149 = vmatprep.subr.mxu0 0.0
    %150 = vmatpush2.msra.mxu0 0.0
    %151 = vmatprep.subr.mxu0 0.0
    %152 = vmatpush2.msra.mxu0 0.0
    %153 = vmatprep.subr.mxu0 0.0
    %154 = vmatpush2.msra.mxu0 0.0
    %155 = vmatprep.subr.mxu0 0.0
    %156 = vmatpush2.msra.mxu0 0.0
    %157 = vmatprep.subr.mxu0 0.0
    %158 = vmatpush2.msra.mxu0 0.0
    %159 = vmatprep.subr.mxu0 0.0
    %160 = vmatpush2.msra.mxu0 0.0
    %161 = vmatprep.subr.mxu0 0.0
    %162 = vmatpush2.msra.mxu0 0.0
    %163 = vmatprep.subr.mxu0 0.0
    %164 = vmatpush2.msra.mxu0 0.0
    %165 = vmatprep.subr.mxu0 0.0
    %166 = vmatpush2.msra.mxu0 0.0
    %167 = vmatprep.subr.mxu0 0.0
    %168 = vmatpush2.msra.mxu0 0.0
    %169 = vmatprep.subr.mxu0 0.0
    %170 = vmatpush2.msra.mxu0 0.0
    %171 = vmatprep.mubr.f32.mxu0 0.0
    %172 = vmatmul.mubr.f32.gmra.mxu0 %v84
    %v173 = vpop.f32.mrf.mxu0
    %v174 = vadd.f32 %v65, %v173
    %v175 = vpop.f32.mrf.mxu0
    %v176 = vadd.f32 %v69, %v175
    %177 = vmatprep.mubr.f32.mxu0 0.0
    %178 = vmatmul.mubr.f32.gmra.mxu0 %v87
    %v179 = vpop.f32.mrf.mxu0
    %v180 = vadd.f32 %v65, %v179
    %v181 = vpop.f32.mrf.mxu0
    %v182 = vadd.f32 %v69, %v181
    %183 = vmatprep.mubr.f32.mxu0 0.0
    %184 = vmatmul.mubr.f32.gmra.mxu0 %v90
    %v185 = vpop.f32.mrf.mxu0
    %v186 = vadd.f32 %v65, %v185
    %v187 = vpop.f32.mrf.mxu0
    %v188 = vadd.f32 %v69, %v187
    %189 = vmatprep.mubr.f32.mxu0 0.0
    %190 = vmatmul.mubr.f32.gmra.mxu0 %v93
    %v191 = vpop.f32.mrf.mxu0
    %v192 = vadd.f32 %v65, %v191
    %v193 = vpop.f32.mrf.mxu0
    %v194 = vadd.f32 %v69, %v193
    %195 = vmatprep.mubr.f32.mxu0 0.0
    %196 = vmatmul.mubr.f32.gmra.mxu0 %v96
    %v197 = vpop.f32.mrf.mxu0
    %v198 = vadd.f32 %v65, %v197
    %v199 = vpop.f32.mrf.mxu0
    %v200 = vadd.f32 %v69, %v199
    %201 = vmatprep.mubr.f32.mxu0 0.0
    %202 = vmatmul.mubr.f32.gmra.mxu0 %v99
    %v203 = vpop.f32.mrf.mxu0
    %v204 = vadd.f32 %v65, %v203
    %v205 = vpop.f32.mrf.mxu0
    %v206 = vadd.f32 %v69, %v205
    %207 = vmatprep.mubr.f32.mxu0 0.0
    %208 = vmatmul.mubr.f32.gmra.mxu0 %v102
    %v209 = vpop.f32.mrf.mxu0
    %v210 = vadd.f32 %v65, %v209
    %v211 = vpop.f32.mrf.mxu0
    %v212 = vadd.f32 %v69, %v211
    %213 = vmatprep.mubr.f32.mxu0 0.0
    %214 = vmatmul.mubr.f32.gmra.mxu0 %v105
    %v215 = vpop.f32.mrf.mxu0
    %v216 = vadd.f32 %v65, %v215
    %v217 = vpop.f32.mrf.mxu0
    %v218 = vadd.f32 %v69, %v217
    %219 = vdwg.mxu0
    %220 = vmatprep.subr.mxu0 0.0
    %221 = vmatpush1.msra.mxu0 0.0
    %222 = vmatprep.subr.mxu0 0.0
    %223 = vmatpush1.msra.mxu0 0.0
    %224 = vmatprep.subr.mxu0 0.0
    %225 = vmatpush1.msra.mxu0 0.0
    %226 = vmatprep.subr.mxu0 0.0
    %227 = vmatpush1.msra.mxu0 0.0
    %228 = vmatprep.subr.mxu0 0.0
    %229 = vmatpush1.msra.mxu0 0.0
    %230 = vmatprep.subr.mxu0 0.0
    %231 = vmatpush1.msra.mxu0 0.0
    %232 = vmatprep.subr.mxu0 0.0
    %233 = vmatpush1.msra.mxu0 0.0
    %234 = vmatprep.subr.mxu0 0.0
    %235 = vmatpush1.msra.mxu0 0.0
    %236 = vmatprep.subr.mxu0 0.0
    %237 = vmatpush1.msra.mxu0 0.0
    %238 = vmatprep.subr.mxu0 0.0
    %239 = vmatpush1.msra.mxu0 0.0
    %240 = vmatprep.subr.mxu0 0.0
    %241 = vmatpush1.msra.mxu0 0.0
    %242 = vmatprep.subr.mxu0 0.0
    %243 = vmatpush1.msra.mxu0 0.0
    %244 = vmatprep.subr.mxu0 0.0
    %245 = vmatpush1.msra.mxu0 0.0
    %246 = vmatprep.subr.mxu0 0.0
    %247 = vmatpush1.msra.mxu0 0.0
    %248 = vmatprep.subr.mxu0 0.0
    %249 = vmatpush1.msra.mxu0 0.0
    %250 = vmatprep.subr.mxu0 %v59
    %251 = vmatpush1.msra.mxu0 %v58
    %252 = vmatprep.subr.mxu0 0.0
    %253 = vmatpush2.msra.mxu0 0.0
    %254 = vmatprep.subr.mxu0 0.0
    %255 = vmatpush2.msra.mxu0 0.0
    %256 = vmatprep.subr.mxu0 0.0
    %257 = vmatpush2.msra.mxu0 0.0
    %258 = vmatprep.subr.mxu0 0.0
    %259 = vmatpush2.msra.mxu0 0.0
    %260 = vmatprep.subr.mxu0 0.0
    %261 = vmatpush2.msra.mxu0 0.0
    %262 = vmatprep.subr.mxu0 0.0
    %263 = vmatpush2.msra.mxu0 0.0
    %264 = vmatprep.subr.mxu0 0.0
    %265 = vmatpush2.msra.mxu0 0.0
    %266 = vmatprep.subr.mxu0 0.0
    %267 = vmatpush2.msra.mxu0 0.0
    %268 = vmatprep.subr.mxu0 0.0
    %269 = vmatpush2.msra.mxu0 0.0
    %270 = vmatprep.subr.mxu0 0.0
    %271 = vmatpush2.msra.mxu0 0.0
    %272 = vmatprep.subr.mxu0 0.0
    %273 = vmatpush2.msra.mxu0 0.0
    %274 = vmatprep.subr.mxu0 0.0
    %275 = vmatpush2.msra.mxu0 0.0
    %276 = vmatprep.subr.mxu0 0.0
    %277 = vmatpush2.msra.mxu0 0.0
    %278 = vmatprep.subr.mxu0 0.0
    %279 = vmatpush2.msra.mxu0 0.0
    %280 = vmatprep.subr.mxu0 0.0
    %281 = vmatpush2.msra.mxu0 0.0
    %282 = vmatprep.subr.mxu0 0.0
    %283 = vmatpush2.msra.mxu0 0.0
    %284 = vmatprep.mubr.f32.mxu0 0.0
    %285 = vmatmul.mubr.f32.gmra.mxu0 %v84
    %v286 = vpop.f32.mrf.mxu0
    %v287 = vadd.f32 %v73, %v286
    %v288 = vpop.f32.mrf.mxu0
    %v289 = vadd.f32 %v77, %v288
    %290 = vmatprep.mubr.f32.mxu0 0.0
    %291 = vmatmul.mubr.f32.gmra.mxu0 %v87
    %v292 = vpop.f32.mrf.mxu0
    %v293 = vadd.f32 %v73, %v292
    %v294 = vpop.f32.mrf.mxu0
    %v295 = vadd.f32 %v77, %v294
    %296 = vmatprep.mubr.f32.mxu0 0.0
    %297 = vmatmul.mubr.f32.gmra.mxu0 %v90
    %v298 = vpop.f32.mrf.mxu0
    %v299 = vadd.f32 %v73, %v298
    %v300 = vpop.f32.mrf.mxu0
    %v301 = vadd.f32 %v77, %v300
    %302 = vmatprep.mubr.f32.mxu0 0.0
    %303 = vmatmul.mubr.f32.gmra.mxu0 %v93
    %v304 = vpop.f32.mrf.mxu0
    %v305 = vadd.f32 %v73, %v304
    %v306 = vpop.f32.mrf.mxu0
    %v307 = vadd.f32 %v77, %v306
    %308 = vmatprep.mubr.f32.mxu0 0.0
    %309 = vmatmul.mubr.f32.gmra.mxu0 %v96
    %v310 = vpop.f32.mrf.mxu0
    %v311 = vadd.f32 %v73, %v310
    %v312 = vpop.f32.mrf.mxu0
    %v313 = vadd.f32 %v77, %v312
    %314 = vmatprep.mubr.f32.mxu0 0.0
    %315 = vmatmul.mubr.f32.gmra.mxu0 %v99
    %v316 = vpop.f32.mrf.mxu0
    %v317 = vadd.f32 %v73, %v316
    %v318 = vpop.f32.mrf.mxu0
    %v319 = vadd.f32 %v77, %v318
    %320 = vmatprep.mubr.f32.mxu0 0.0
    %321 = vmatmul.mubr.f32.gmra.mxu0 %v102
    %v322 = vpop.f32.mrf.mxu0
    %v323 = vadd.f32 %v73, %v322
    %v324 = vpop.f32.mrf.mxu0
    %v325 = vadd.f32 %v77, %v324
    %326 = vmatprep.mubr.f32.mxu0 0.0
    %327 = vmatmul.mubr.f32.gmra.mxu0 %v105
    %v328 = vpop.f32.mrf.mxu0
    %v329 = vadd.f32 %v73, %v328
    %v330 = vpop.f32.mrf.mxu0
    %v331 = vadd.f32 %v77, %v330
    %332 = vdwg.mxu0
    %333 = vst [vmem:[#allocation2] sm:$0xff] %v174
    %334 = vst [vmem:[#allocation2 + $0x8] sm:$0xff] %v176
    %335 = vst [vmem:[#allocation2 + $0x10] sm:$0xff] %v287
    %336 = vst [vmem:[#allocation2 + $0x18] sm:$0xff] %v289
    %337 = vst [vmem:[#allocation2 + $0x20] sm:$0xff] %v180
    %338 = vst [vmem:[#allocation2 + $0x28] sm:$0xff] %v182
    %339 = vst [vmem:[#allocation2 + $0x30] sm:$0xff] %v293
    %340 = vst [vmem:[#allocation2 + $0x38] sm:$0xff] %v295
    %341 = vst [vmem:[#allocation2 + $0x40] sm:$0xff] %v186
    %342 = vst [vmem:[#allocation2 + $0x48] sm:$0xff] %v188
    %343 = vst [vmem:[#allocation2 + $0x50] sm:$0xff] %v299
    %344 = vst [vmem:[#allocation2 + $0x58] sm:$0xff] %v301
    %345 = vst [vmem:[#allocation2 + $0x60] sm:$0xff] %v192
    %346 = vst [vmem:[#allocation2 + $0x68] sm:$0xff] %v194
    %347 = vst [vmem:[#allocation2 + $0x70] sm:$0xff] %v305
    %348 = vst [vmem:[#allocation2 + $0x78] sm:$0xff] %v307
    %349 = vst [vmem:[#allocation2 + $0x80] sm:$0xff] %v198
    %350 = vst [vmem:[#allocation2 + $0x88] sm:$0xff] %v200
    %351 = vst [vmem:[#allocation2 + $0x90] sm:$0xff] %v311
    %352 = vst [vmem:[#allocation2 + $0x98] sm:$0xff] %v313
    %353 = vst [vmem:[#allocation2 + $0xa0] sm:$0xff] %v204
    %354 = vst [vmem:[#allocation2 + $0xa8] sm:$0xff] %v206
    %355 = vst [vmem:[#allocation2 + $0xb0] sm:$0xff] %v317
    %356 = vst [vmem:[#allocation2 + $0xb8] sm:$0xff] %v319
    %357 = vst [vmem:[#allocation2 + $0xc0] sm:$0xff] %v210
    %358 = vst [vmem:[#allocation2 + $0xc8] sm:$0xff] %v212
    %359 = vst [vmem:[#allocation2 + $0xd0] sm:$0xff] %v323
    %360 = vst [vmem:[#allocation2 + $0xd8] sm:$0xff] %v325
    %361 = vst [vmem:[#allocation2 + $0xe0] sm:$0xff] %v216
    %362 = vst [vmem:[#allocation2 + $0xe8] sm:$0xff] %v218
    %363 = vst [vmem:[#allocation2 + $0xf0] sm:$0xff] %v329
    %364 = vst [vmem:[#allocation2 + $0xf8] sm:$0xff] %v331
    %v365 = vld [vmem:[#allocation4 + $0x20] sm:$0xff]
    %v366 = vld [vmem:[#allocation4 + $0x28] sm:$0xff]
    %v367 = vld [vmem:[#allocation4 + $0x30] sm:$0xff]
    %v368 = vld [vmem:[#allocation4 + $0x38] sm:$0xff]
    %v369 = vld [vmem:[#allocation4 + $0x40] sm:$0xff]
    %v370 = vld [vmem:[#allocation4 + $0x48] sm:$0xff]
    %v371 = vld [vmem:[#allocation4 + $0x50] sm:$0xff]
    %v372 = vld [vmem:[#allocation4 + $0x58] sm:$0xff]
    %v373 = vld [vmem:[#allocation4 + $0x60] sm:$0xff]
    %v374 = vld [vmem:[#allocation4 + $0x68] sm:$0xff]
    %v375 = vld [vmem:[#allocation4 + $0x70] sm:$0xff]
    %v376 = vld [vmem:[#allocation4 + $0x78] sm:$0xff]
    %v377 = vld [vmem:[#allocation4 + $0x80] sm:$0xff]
    %v378 = vld [vmem:[#allocation4 + $0x88] sm:$0xff]
    %v379 = vld [vmem:[#allocation4 + $0x90] sm:$0xff]
    %v380 = vld [vmem:[#allocation4 + $0x98] sm:$0xff]
    %v381 = vld [vmem:[#allocation4 + $0xa0] sm:$0xff]
    %v382 = vld [vmem:[#allocation4 + $0xa8] sm:$0xff]
    %v383 = vld [vmem:[#allocation4 + $0xb0] sm:$0xff]
    %v384 = vld [vmem:[#allocation4 + $0xb8] sm:$0xff]
    %v385 = vld [vmem:[#allocation4 + $0xc0] sm:$0xff]
    %v386 = vld [vmem:[#allocation4 + $0xc8] sm:$0xff]
    %v387 = vld [vmem:[#allocation4 + $0xd0] sm:$0xff]
    %v388 = vld [vmem:[#allocation4 + $0xd8] sm:$0xff]
    %v389 = vld [vmem:[#allocation4 + $0xe0] sm:$0xff]
    %v390 = vld [vmem:[#allocation4 + $0xe8] sm:$0xff]
    %v391 = vld [vmem:[#allocation4 + $0xf0] sm:$0xff]
    %v392 = vld [vmem:[#allocation4 + $0xf8] sm:$0xff]
    %v393 = vld [vmem:[#allocation4 + $0x100] sm:$0xff]
    %v394 = vld [vmem:[#allocation4 + $0x108] sm:$0xff]
    %v395 = vld [vmem:[#allocation4 + $0x110] sm:$0xff]
    %v396 = vld [vmem:[#allocation4 + $0x118] sm:$0xff]
    %v397 = vld [vmem:[#allocation4 + $0x120] sm:$0xff]
    %v398 = vld [vmem:[#allocation4 + $0x128] sm:$0xff]
    %v399 = vld [vmem:[#allocation4 + $0x130] sm:$0xff]
    %v400 = vld [vmem:[#allocation4 + $0x138] sm:$0xff]
    %v401 = vld [vmem:[#allocation4 + $0x140] sm:$0xff]
    %v402 = vld [vmem:[#allocation4 + $0x148] sm:$0xff]
    %v403 = vld [vmem:[#allocation4 + $0x150] sm:$0xff]
    %v404 = vld [vmem:[#allocation4 + $0x158] sm:$0xff]
    %v405 = vld [vmem:[#allocation4 + $0x160] sm:$0xff]
    %v406 = vld [vmem:[#allocation4 + $0x168] sm:$0xff]
    %v407 = vld [vmem:[#allocation4 + $0x170] sm:$0xff]
    %v408 = vld [vmem:[#allocation4 + $0x178] sm:$0xff]
    %v409 = vld [vmem:[#allocation4 + $0x180] sm:$0xff]
    %v410 = vld [vmem:[#allocation4 + $0x188] sm:$0xff]
    %v411 = vld [vmem:[#allocation4 + $0x190] sm:$0xff]
    %v412 = vld [vmem:[#allocation4 + $0x198] sm:$0xff]
    %v413 = vld [vmem:[#allocation4 + $0x1a0] sm:$0xff]
    %v414 = vld [vmem:[#allocation4 + $0x1a8] sm:$0xff]
    %v415 = vld [vmem:[#allocation4 + $0x1b0] sm:$0xff]
    %v416 = vld [vmem:[#allocation4 + $0x1b8] sm:$0xff]
    %v417 = vld [vmem:[#allocation4 + $0x1c0] sm:$0xff]
    %v418 = vld [vmem:[#allocation4 + $0x1c8] sm:$0xff]
    %v419 = vld [vmem:[#allocation4 + $0x1d0] sm:$0xff]
    %v420 = vld [vmem:[#allocation4 + $0x1d8] sm:$0xff]
    %v421 = vld [vmem:[#allocation4 + $0x1e0] sm:$0xff]
    %v422 = vld [vmem:[#allocation4 + $0x1e8] sm:$0xff]
    %v423 = vld [vmem:[#allocation4 + $0x1f0] sm:$0xff]
    %v424 = vld [vmem:[#allocation4 + $0x1f8] sm:$0xff]
    %v425 = vld [vmem:[#allocation4 + $0x200] sm:$0xff]
    %v426 = vld [vmem:[#allocation4 + $0x208] sm:$0xff]
    %v427 = vld [vmem:[#allocation4 + $0x210] sm:$0xff]
    %v428 = vld [vmem:[#allocation4 + $0x218] sm:$0xff]
    %v429 = vld [vmem:[#allocation2] sm:$0xff]
    %v430 = vld [vmem:[#allocation2 + $0x8] sm:$0xff]
    %v431 = vld [vmem:[#allocation2 + $0x10] sm:$0xff]
    %v432 = vld [vmem:[#allocation2 + $0x18] sm:$0xff]
    %433 = vmatprep.subr.mxu0 %v426
    %434 = vmatpush1.msra.mxu0 %v425
    %435 = vmatprep.subr.mxu0 %v422
    %436 = vmatpush1.msra.mxu0 %v421
    %437 = vmatprep.subr.mxu0 %v418
    %438 = vmatpush1.msra.mxu0 %v417
    %439 = vmatprep.subr.mxu0 %v414
    %440 = vmatpush1.msra.mxu0 %v413
    %441 = vmatprep.subr.mxu0 %v410
    %442 = vmatpush1.msra.mxu0 %v409
    %443 = vmatprep.subr.mxu0 %v406
    %444 = vmatpush1.msra.mxu0 %v405
    %445 = vmatprep.subr.mxu0 %v402
    %446 = vmatpush1.msra.mxu0 %v401
    %447 = vmatprep.subr.mxu0 %v398
    %448 = vmatpush1.msra.mxu0 %v397
    %449 = vmatprep.subr.mxu0 %v394
    %450 = vmatpush1.msra.mxu0 %v393
    %451 = vmatprep.subr.mxu0 %v390
    %452 = vmatpush1.msra.mxu0 %v389
    %453 = vmatprep.subr.mxu0 %v386
    %454 = vmatpush1.msra.mxu0 %v385
    %455 = vmatprep.subr.mxu0 %v382
    %456 = vmatpush1.msra.mxu0 %v381
    %457 = vmatprep.subr.mxu0 %v378
    %458 = vmatpush1.msra.mxu0 %v377
    %459 = vmatprep.subr.mxu0 %v374
    %460 = vmatpush1.msra.mxu0 %v373
    %461 = vmatprep.subr.mxu0 %v370
    %462 = vmatpush1.msra.mxu0 %v369
    %463 = vmatprep.subr.mxu0 %v366
    %464 = vmatpush1.msra.mxu0 %v365
    %465 = vmatprep.subr.mxu0 0.0
    %466 = vmatpush2.msra.mxu0 0.0
    %467 = vmatprep.subr.mxu0 0.0
    %468 = vmatpush2.msra.mxu0 0.0
    %469 = vmatprep.subr.mxu0 0.0
    %470 = vmatpush2.msra.mxu0 0.0
    %471 = vmatprep.subr.mxu0 0.0
    %472 = vmatpush2.msra.mxu0 0.0
    %473 = vmatprep.subr.mxu0 0.0
    %474 = vmatpush2.msra.mxu0 0.0
    %475 = vmatprep.subr.mxu0 0.0
    %476 = vmatpush2.msra.mxu0 0.0
    %477 = vmatprep.subr.mxu0 0.0
    %478 = vmatpush2.msra.mxu0 0.0
    %479 = vmatprep.subr.mxu0 0.0
    %480 = vmatpush2.msra.mxu0 0.0
    %481 = vmatprep.subr.mxu0 0.0
    %482 = vmatpush2.msra.mxu0 0.0
    %483 = vmatprep.subr.mxu0 0.0
    %484 = vmatpush2.msra.mxu0 0.0
    %485 = vmatprep.subr.mxu0 0.0
    %486 = vmatpush2.msra.mxu0 0.0
    %487 = vmatprep.subr.mxu0 0.0
    %488 = vmatpush2.msra.mxu0 0.0
    %489 = vmatprep.subr.mxu0 0.0
    %490 = vmatpush2.msra.mxu0 0.0
    %491 = vmatprep.subr.mxu0 0.0
    %492 = vmatpush2.msra.mxu0 0.0
    %493 = vmatprep.subr.mxu0 0.0
    %494 = vmatpush2.msra.mxu0 0.0
    %495 = vmatprep.subr.mxu0 0.0
    %496 = vmatpush2.msra.mxu0 0.0
    %497 = vmatprep.mubr.f32.mxu0 0.0
    %498 = vmatmul.mubr.f32.gmra.mxu0 0.0
    %v499 = vpop.f32.mrf.mxu0
    %v500 = vadd.f32 0.0, %v499
    %v501 = vpop.f32.mrf.mxu0
    %v502 = vadd.f32 0.0, %v501
    %503 = vdwg.mxu0
    %504 = vmatprep.subr.mxu0 %v428
    %505 = vmatpush1.msra.mxu0 %v427
    %506 = vmatprep.subr.mxu0 %v424
    %507 = vmatpush1.msra.mxu0 %v423
    %508 = vmatprep.subr.mxu0 %v420
    %509 = vmatpush1.msra.mxu0 %v419
    %510 = vmatprep.subr.mxu0 %v416
    %511 = vmatpush1.msra.mxu0 %v415
    %512 = vmatprep.subr.mxu0 %v412
    %513 = vmatpush1.msra.mxu0 %v411
    %514 = vmatprep.subr.mxu0 %v408
    %515 = vmatpush1.msra.mxu0 %v407
    %516 = vmatprep.subr.mxu0 %v404
    %517 = vmatpush1.msra.mxu0 %v403
    %518 = vmatprep.subr.mxu0 %v400
    %519 = vmatpush1.msra.mxu0 %v399
    %520 = vmatprep.subr.mxu0 %v396
    %521 = vmatpush1.msra.mxu0 %v395
    %522 = vmatprep.subr.mxu0 %v392
    %523 = vmatpush1.msra.mxu0 %v391
    %524 = vmatprep.subr.mxu0 %v388
    %525 = vmatpush1.msra.mxu0 %v387
    %526 = vmatprep.subr.mxu0 %v384
    %527 = vmatpush1.msra.mxu0 %v383
    %528 = vmatprep.subr.mxu0 %v380
    %529 = vmatpush1.msra.mxu0 %v379
    %530 = vmatprep.subr.mxu0 %v376
    %531 = vmatpush1.msra.mxu0 %v375
    %532 = vmatprep.subr.mxu0 %v372
    %533 = vmatpush1.msra.mxu0 %v371
    %534 = vmatprep.subr.mxu0 %v368
    %535 = vmatpush1.msra.mxu0 %v367
    %536 = vmatprep.subr.mxu0 0.0
    %537 = vmatpush2.msra.mxu0 0.0
    %538 = vmatprep.subr.mxu0 0.0
    %539 = vmatpush2.msra.mxu0 0.0
    %540 = vmatprep.subr.mxu0 0.0
    %541 = vmatpush2.msra.mxu0 0.0
    %542 = vmatprep.subr.mxu0 0.0
    %543 = vmatpush2.msra.mxu0 0.0
    %544 = vmatprep.subr.mxu0 0.0
    %545 = vmatpush2.msra.mxu0 0.0
    %546 = vmatprep.subr.mxu0 0.0
    %547 = vmatpush2.msra.mxu0 0.0
    %548 = vmatprep.subr.mxu0 0.0
    %549 = vmatpush2.msra.mxu0 0.0
    %550 = vmatprep.subr.mxu0 0.0
    %551 = vmatpush2.msra.mxu0 0.0
    %552 = vmatprep.subr.mxu0 0.0
    %553 = vmatpush2.msra.mxu0 0.0
    %554 = vmatprep.subr.mxu0 0.0
    %555 = vmatpush2.msra.mxu0 0.0
    %556 = vmatprep.subr.mxu0 0.0
    %557 = vmatpush2.msra.mxu0 0.0
    %558 = vmatprep.subr.mxu0 0.0
    %559 = vmatpush2.msra.mxu0 0.0
    %560 = vmatprep.subr.mxu0 0.0
    %561 = vmatpush2.msra.mxu0 0.0
    %562 = vmatprep.subr.mxu0 0.0
    %563 = vmatpush2.msra.mxu0 0.0
    %564 = vmatprep.subr.mxu0 0.0
    %565 = vmatpush2.msra.mxu0 0.0
    %566 = vmatprep.subr.mxu0 0.0
    %567 = vmatpush2.msra.mxu0 0.0
    %568 = vmatprep.mubr.f32.mxu0 0.0
    %569 = vmatmul.mubr.f32.gmra.mxu0 0.0
    %v570 = vpop.f32.mrf.mxu0
    %v571 = vadd.f32 0.0, %v570
    %v572 = vpop.f32.mrf.mxu0
    %v573 = vadd.f32 0.0, %v572
    %574 = vdwg.mxu0
    %v575 = vadd.f32 %v429, %v500
    %v576 = vadd.f32 %v430, %v502
    %v577 = vadd.f32 %v431, %v571
    %v578 = vadd.f32 %v432, %v573
    %v579 = vsub.f32 0.0, %v575
    %v580 = vsub.f32 0.0, %v576
    %v581 = vsub.f32 0.0, %v577
    %v582 = vmul.f32 %v579, 1.442695
    %v583 = vpow.pop %v582
    %v584 = vmul.f32 %v580, 1.442695
    %v585 = vpow.pop %v584
    %v586 = vmul.f32 %v581, 1.442695
    %v587 = vpow.pop %v586
    %v588 = vadd.f32 %v583, 1.0
    %v589 = vadd.f32 %v585, 1.0
    %v590 = vadd.f32 %v587, 1.0
    %v591 = vrcp.pop %v588
    %v592 = vrcp.pop %v589
    %v593 = vrcp.pop %v590
    %v594 = vtanh.pop %v578
    %v595 = vmul.f32 %v592, 0.0
    %v596 = vmul.f32 %v591, %v594
    %v597 = vadd.f32 %v595, %v596
    %v598 = vtanh.pop %v597
    %v599 = vmul.f32 %v593, %v598
    %600 = vst [vmem:[#allocation3] sm:$0xff] %v599
    %v601 = vld [vmem:[#allocation2 + $0x20] sm:$0xff]
    %v602 = vld [vmem:[#allocation2 + $0x28] sm:$0xff]
    %v603 = vld [vmem:[#allocation2 + $0x30] sm:$0xff]
    %v604 = vld [vmem:[#allocation2 + $0x38] sm:$0xff]
    %605 = vmatprep.subr.mxu0 %v426
    %606 = vmatpush1.msra.mxu0 %v425
    %607 = vmatprep.subr.mxu0 %v422
    %608 = vmatpush1.msra.mxu0 %v421
    %609 = vmatprep.subr.mxu0 %v418
    %610 = vmatpush1.msra.mxu0 %v417
    %611 = vmatprep.subr.mxu0 %v414
    %612 = vmatpush1.msra.mxu0 %v413
    %613 = vmatprep.subr.mxu0 %v410
    %614 = vmatpush1.msra.mxu0 %v409
    %615 = vmatprep.subr.mxu0 %v406
    %616 = vmatpush1.msra.mxu0 %v405
    %617 = vmatprep.subr.mxu0 %v402
    %618 = vmatpush1.msra.mxu0 %v401
    %619 = vmatprep.subr.mxu0 %v398
    %620 = vmatpush1.msra.mxu0 %v397
    %621 = vmatprep.subr.mxu0 %v394
    %622 = vmatpush1.msra.mxu0 %v393
    %623 = vmatprep.subr.mxu0 %v390
    %624 = vmatpush1.msra.mxu0 %v389
    %625 = vmatprep.subr.mxu0 %v386
    %626 = vmatpush1.msra.mxu0 %v385
    %627 = vmatprep.subr.mxu0 %v382
    %628 = vmatpush1.msra.mxu0 %v381
    %629 = vmatprep.subr.mxu0 %v378
    %630 = vmatpush1.msra.mxu0 %v377
    %631 = vmatprep.subr.mxu0 %v374
    %632 = vmatpush1.msra.mxu0 %v373
    %633 = vmatprep.subr.mxu0 %v370
    %634 = vmatpush1.msra.mxu0 %v369
    %635 = vmatprep.subr.mxu0 %v366
    %636 = vmatpush1.msra.mxu0 %v365
    %637 = vmatprep.subr.mxu0 0.0
    %638 = vmatpush2.msra.mxu0 0.0
    %639 = vmatprep.subr.mxu0 0.0
    %640 = vmatpush2.msra.mxu0 0.0
    %641 = vmatprep.subr.mxu0 0.0
    %642 = vmatpush2.msra.mxu0 0.0
    %643 = vmatprep.subr.mxu0 0.0
    %644 = vmatpush2.msra.mxu0 0.0
    %645 = vmatprep.subr.mxu0 0.0
    %646 = vmatpush2.msra.mxu0 0.0
    %647 = vmatprep.subr.mxu0 0.0
    %648 = vmatpush2.msra.mxu0 0.0
    %649 = vmatprep.subr.mxu0 0.0
    %650 = vmatpush2.msra.mxu0 0.0
    %651 = vmatprep.subr.mxu0 0.0
    %652 = vmatpush2.msra.mxu0 0.0
    %653 = vmatprep.subr.mxu0 0.0
    %654 = vmatpush2.msra.mxu0 0.0
    %655 = vmatprep.subr.mxu0 0.0
    %656 = vmatpush2.msra.mxu0 0.0
    %657 = vmatprep.subr.mxu0 0.0
    %658 = vmatpush2.msra.mxu0 0.0
    %659 = vmatprep.subr.mxu0 0.0
    %660 = vmatpush2.msra.mxu0 0.0
    %661 = vmatprep.subr.mxu0 0.0
    %662 = vmatpush2.msra.mxu0 0.0
    %663 = vmatprep.subr.mxu0 0.0
    %664 = vmatpush2.msra.mxu0 0.0
    %665 = vmatprep.subr.mxu0 0.0
    %666 = vmatpush2.msra.mxu0 0.0
    %667 = vmatprep.subr.mxu0 0.0
    %668 = vmatpush2.msra.mxu0 0.0
    %669 = vmatprep.mubr.f32.mxu0 0.0
    %670 = vmatmul.mubr.f32.gmra.mxu0 %v599
    %v671 = vpop.f32.mrf.mxu0
    %v672 = vadd.f32 0.0, %v671
    %v673 = vpop.f32.mrf.mxu0
    %v674 = vadd.f32 0.0, %v673
    %675 = vdwg.mxu0
    %676 = vmatprep.subr.mxu0 %v428
    %677 = vmatpush1.msra.mxu0 %v427
    %678 = vmatprep.subr.mxu0 %v424
    %679 = vmatpush1.msra.mxu0 %v423
    %680 = vmatprep.subr.mxu0 %v420
    %681 = vmatpush1.msra.mxu0 %v419
    %682 = vmatprep.subr.mxu0 %v416
    %683 = vmatpush1.msra.mxu0 %v415
    %684 = vmatprep.subr.mxu0 %v412
    %685 = vmatpush1.msra.mxu0 %v411
    %686 = vmatprep.subr.mxu0 %v408
    %687 = vmatpush1.msra.mxu0 %v407
    %688 = vmatprep.subr.mxu0 %v404
    %689 = vmatpush1.msra.mxu0 %v403
    %690 = vmatprep.subr.mxu0 %v400
    %691 = vmatpush1.msra.mxu0 %v399
    %692 = vmatprep.subr.mxu0 %v396
    %693 = vmatpush1.msra.mxu0 %v395
    %694 = vmatprep.subr.mxu0 %v392
    %695 = vmatpush1.msra.mxu0 %v391
    %696 = vmatprep.subr.mxu0 %v388
    %697 = vmatpush1.msra.mxu0 %v387
    %698 = vmatprep.subr.mxu0 %v384
    %699 = vmatpush1.msra.mxu0 %v383
    %700 = vmatprep.subr.mxu0 %v380
    %701 = vmatpush1.msra.mxu0 %v379
    %702 = vmatprep.subr.mxu0 %v376
    %703 = vmatpush1.msra.mxu0 %v375
    %704 = vmatprep.subr.mxu0 %v372
    %705 = vmatpush1.msra.mxu0 %v371
    %706 = vmatprep.subr.mxu0 %v368
    %707 = vmatpush1.msra.mxu0 %v367
    %708 = vmatprep.subr.mxu0 0.0
    %709 = vmatpush2.msra.mxu0 0.0
    %710 = vmatprep.subr.mxu0 0.0
    %711 = vmatpush2.msra.mxu0 0.0
    %712 = vmatprep.subr.mxu0 0.0
    %713 = vmatpush2.msra.mxu0 0.0
    %714 = vmatprep.subr.mxu0 0.0
    %715 = vmatpush2.msra.mxu0 0.0
    %716 = vmatprep.subr.mxu0 0.0
    %717 = vmatpush2.msra.mxu0 0.0
    %718 = vmatprep.subr.mxu0 0.0
    %719 = vmatpush2.msra.mxu0 0.0
    %720 = vmatprep.subr.mxu0 0.0
    %721 = vmatpush2.msra.mxu0 0.0
    %722 = vmatprep.subr.mxu0 0.0
    %723 = vmatpush2.msra.mxu0 0.0
    %724 = vmatprep.subr.mxu0 0.0
    %725 = vmatpush2.msra.mxu0 0.0
    %726 = vmatprep.subr.mxu0 0.0
    %727 = vmatpush2.msra.mxu0 0.0
    %728 = vmatprep.subr.mxu0 0.0
    %729 = vmatpush2.msra.mxu0 0.0
    %730 = vmatprep.subr.mxu0 0.0
    %731 = vmatpush2.msra.mxu0 0.0
    %732 = vmatprep.subr.mxu0 0.0
    %733 = vmatpush2.msra.mxu0 0.0
    %734 = vmatprep.subr.mxu0 0.0
    %735 = vmatpush2.msra.mxu0 0.0
    %736 = vmatprep.subr.mxu0 0.0
    %737 = vmatpush2.msra.mxu0 0.0
    %738 = vmatprep.subr.mxu0 0.0
    %739 = vmatpush2.msra.mxu0 0.0
    %740 = vmatprep.mubr.f32.mxu0 0.0
    %741 = vmatmul.mubr.f32.gmra.mxu0 %v599
    %v742 = vpop.f32.mrf.mxu0
    %v743 = vadd.f32 0.0, %v742
    %v744 = vpop.f32.mrf.mxu0
    %v745 = vadd.f32 0.0, %v744
    %746 = vdwg.mxu0
    %v747 = vadd.f32 %v601, %v672
    %v748 = vadd.f32 %v602, %v674
    %v749 = vadd.f32 %v603, %v743
    %v750 = vadd.f32 %v604, %v745
    %v751 = vsub.f32 0.0, %v747
    %v752 = vsub.f32 0.0, %v748
    %v753 = vsub.f32 0.0, %v749
    %v754 = vmul.f32 %v751, 1.442695
    %v755 = vpow.pop %v754
    %v756 = vmul.f32 %v752, 1.442695
    %v757 = vpow.pop %v756
    %v758 = vmul.f32 %v753, 1.442695
    %v759 = vpow.pop %v758
    %v760 = vadd.f32 %v755, 1.0
    %v761 = vadd.f32 %v757, 1.0
    %v762 = vadd.f32 %v759, 1.0
    %v763 = vrcp.pop %v760
    %v764 = vrcp.pop %v761
    %v765 = vrcp.pop %v762
    %v766 = vtanh.pop %v750
    %v767 = vmul.f32 %v764, %v597
    %v768 = vmul.f32 %v763, %v766
    %v769 = vadd.f32 %v767, %v768
    %v770 = vtanh.pop %v769
    %v771 = vmul.f32 %v765, %v770
    %772 = vst [vmem:[#allocation3 + $0x8] sm:$0xff] %v771
    %v773 = vld [vmem:[#allocation2 + $0x40] sm:$0xff]
    %v774 = vld [vmem:[#allocation2 + $0x48] sm:$0xff]
    %v775 = vld [vmem:[#allocation2 + $0x50] sm:$0xff]
    %v776 = vld [vmem:[#allocation2 + $0x58] sm:$0xff]
    %777 = vmatprep.subr.mxu0 %v426
    %778 = vmatpush1.msra.mxu0 %v425
    %779 = vmatprep.subr.mxu0 %v422
    %780 = vmatpush1.msra.mxu0 %v421
    %781 = vmatprep.subr.mxu0 %v418
    %782 = vmatpush1.msra.mxu0 %v417
    %783 = vmatprep.subr.mxu0 %v414
    %784 = vmatpush1.msra.mxu0 %v413
    %785 = vmatprep.subr.mxu0 %v410
    %786 = vmatpush1.msra.mxu0 %v409
    %787 = vmatprep.subr.mxu0 %v406
    %788 = vmatpush1.msra.mxu0 %v405
    %789 = vmatprep.subr.mxu0 %v402
    %790 = vmatpush1.msra.mxu0 %v401
    %791 = vmatprep.subr.mxu0 %v398
    %792 = vmatpush1.msra.mxu0 %v397
    %793 = vmatprep.subr.mxu0 %v394
    %794 = vmatpush1.msra.mxu0 %v393
    %795 = vmatprep.subr.mxu0 %v390
    %796 = vmatpush1.msra.mxu0 %v389
    %797 = vmatprep.subr.mxu0 %v386
    %798 = vmatpush1.msra.mxu0 %v385
    %799 = vmatprep.subr.mxu0 %v382
    %800 = vmatpush1.msra.mxu0 %v381
    %801 = vmatprep.subr.mxu0 %v378
    %802 = vmatpush1.msra.mxu0 %v377
    %803 = vmatprep.subr.mxu0 %v374
    %804 = vmatpush1.msra.mxu0 %v373
    %805 = vmatprep.subr.mxu0 %v370
    %806 = vmatpush1.msra.mxu0 %v369
    %807 = vmatprep.subr.mxu0 %v366
    %808 = vmatpush1.msra.mxu0 %v365
    %809 = vmatprep.subr.mxu0 0.0
    %810 = vmatpush2.msra.mxu0 0.0
    %811 = vmatprep.subr.mxu0 0.0
    %812 = vmatpush2.msra.mxu0 0.0
    %813 = vmatprep.subr.mxu0 0.0
    %814 = vmatpush2.msra.mxu0 0.0
    %815 = vmatprep.subr.mxu0 0.0
    %816 = vmatpush2.msra.mxu0 0.0
    %817 = vmatprep.subr.mxu0 0.0
    %818 = vmatpush2.msra.mxu0 0.0
    %819 = vmatprep.subr.mxu0 0.0
    %820 = vmatpush2.msra.mxu0 0.0
    %821 = vmatprep.subr.mxu0 0.0
    %822 = vmatpush2.msra.mxu0 0.0
    %823 = vmatprep.subr.mxu0 0.0
    %824 = vmatpush2.msra.mxu0 0.0
    %825 = vmatprep.subr.mxu0 0.0
    %826 = vmatpush2.msra.mxu0 0.0
    %827 = vmatprep.subr.mxu0 0.0
    %828 = vmatpush2.msra.mxu0 0.0
    %829 = vmatprep.subr.mxu0 0.0
    %830 = vmatpush2.msra.mxu0 0.0
    %831 = vmatprep.subr.mxu0 0.0
    %832 = vmatpush2.msra.mxu0 0.0
    %833 = vmatprep.subr.mxu0 0.0
    %834 = vmatpush2.msra.mxu0 0.0
    %835 = vmatprep.subr.mxu0 0.0
    %836 = vmatpush2.msra.mxu0 0.0
    %837 = vmatprep.subr.mxu0 0.0
    %838 = vmatpush2.msra.mxu0 0.0
    %839 = vmatprep.subr.mxu0 0.0
    %840 = vmatpush2.msra.mxu0 0.0
    %841 = vmatprep.mubr.f32.mxu0 0.0
    %842 = vmatmul.mubr.f32.gmra.mxu0 %v771
    %v843 = vpop.f32.mrf.mxu0
    %v844 = vadd.f32 0.0, %v843
    %v845 = vpop.f32.mrf.mxu0
    %v846 = vadd.f32 0.0, %v845
    %847 = vdwg.mxu0
    %848 = vmatprep.subr.mxu0 %v428
    %849 = vmatpush1.msra.mxu0 %v427
    %850 = vmatprep.subr.mxu0 %v424
    %851 = vmatpush1.msra.mxu0 %v423
    %852 = vmatprep.subr.mxu0 %v420
    %853 = vmatpush1.msra.mxu0 %v419
    %854 = vmatprep.subr.mxu0 %v416
    %855 = vmatpush1.msra.mxu0 %v415
    %856 = vmatprep.subr.mxu0 %v412
    %857 = vmatpush1.msra.mxu0 %v411
    %858 = vmatprep.subr.mxu0 %v408
    %859 = vmatpush1.msra.mxu0 %v407
    %860 = vmatprep.subr.mxu0 %v404
    %861 = vmatpush1.msra.mxu0 %v403
    %862 = vmatprep.subr.mxu0 %v400
    %863 = vmatpush1.msra.mxu0 %v399
    %864 = vmatprep.subr.mxu0 %v396
    %865 = vmatpush1.msra.mxu0 %v395
    %866 = vmatprep.subr.mxu0 %v392
    %867 = vmatpush1.msra.mxu0 %v391
    %868 = vmatprep.subr.mxu0 %v388
    %869 = vmatpush1.msra.mxu0 %v387
    %870 = vmatprep.subr.mxu0 %v384
    %871 = vmatpush1.msra.mxu0 %v383
    %872 = vmatprep.subr.mxu0 %v380
    %873 = vmatpush1.msra.mxu0 %v379
    %874 = vmatprep.subr.mxu0 %v376
    %875 = vmatpush1.msra.mxu0 %v375
    %876 = vmatprep.subr.mxu0 %v372
    %877 = vmatpush1.msra.mxu0 %v371
    %878 = vmatprep.subr.mxu0 %v368
    %879 = vmatpush1.msra.mxu0 %v367
    %880 = vmatprep.subr.mxu0 0.0
    %881 = vmatpush2.msra.mxu0 0.0
    %882 = vmatprep.subr.mxu0 0.0
    %883 = vmatpush2.msra.mxu0 0.0
    %884 = vmatprep.subr.mxu0 0.0
    %885 = vmatpush2.msra.mxu0 0.0
    %886 = vmatprep.subr.mxu0 0.0
    %887 = vmatpush2.msra.mxu0 0.0
    %888 = vmatprep.subr.mxu0 0.0
    %889 = vmatpush2.msra.mxu0 0.0
    %890 = vmatprep.subr.mxu0 0.0
    %891 = vmatpush2.msra.mxu0 0.0
    %892 = vmatprep.subr.mxu0 0.0
    %893 = vmatpush2.msra.mxu0 0.0
    %894 = vmatprep.subr.mxu0 0.0
    %895 = vmatpush2.msra.mxu0 0.0
    %896 = vmatprep.subr.mxu0 0.0
    %897 = vmatpush2.msra.mxu0 0.0
    %898 = vmatprep.subr.mxu0 0.0
    %899 = vmatpush2.msra.mxu0 0.0
    %900 = vmatprep.subr.mxu0 0.0
    %901 = vmatpush2.msra.mxu0 0.0
    %902 = vmatprep.subr.mxu0 0.0
    %903 = vmatpush2.msra.mxu0 0.0
    %904 = vmatprep.subr.mxu0 0.0
    %905 = vmatpush2.msra.mxu0 0.0
    %906 = vmatprep.subr.mxu0 0.0
    %907 = vmatpush2.msra.mxu0 0.0
    %908 = vmatprep.subr.mxu0 0.0
    %909 = vmatpush2.msra.mxu0 0.0
    %910 = vmatprep.subr.mxu0 0.0
    %911 = vmatpush2.msra.mxu0 0.0
    %912 = vmatprep.mubr.f32.mxu0 0.0
    %913 = vmatmul.mubr.f32.gmra.mxu0 %v771
    %v914 = vpop.f32.mrf.mxu0
    %v915 = vadd.f32 0.0, %v914
    %v916 = vpop.f32.mrf.mxu0
    %v917 = vadd.f32 0.0, %v916
    %918 = vdwg.mxu0
    %v919 = vadd.f32 %v773, %v844
    %v920 = vadd.f32 %v774, %v846
    %v921 = vadd.f32 %v775, %v915
    %v922 = vadd.f32 %v776, %v917
    %v923 = vsub.f32 0.0, %v919
    %v924 = vsub.f32 0.0, %v920
    %v925 = vsub.f32 0.0, %v921
    %v926 = vmul.f32 %v923, 1.442695
    %v927 = vpow.pop %v926
    %v928 = vmul.f32 %v924, 1.442695
    %v929 = vpow.pop %v928
    %v930 = vmul.f32 %v925, 1.442695
    %v931 = vpow.pop %v930
    %v932 = vadd.f32 %v927, 1.0
    %v933 = vadd.f32 %v929, 1.0
    %v934 = vadd.f32 %v931, 1.0
    %v935 = vrcp.pop %v932
    %v936 = vrcp.pop %v933
    %v937 = vrcp.pop %v934
    %v938 = vtanh.pop %v922
    %v939 = vmul.f32 %v936, %v769
    %v940 = vmul.f32 %v935, %v938
    %v941 = vadd.f32 %v939, %v940
    %v942 = vtanh.pop %v941
    %v943 = vmul.f32 %v937, %v942
    %944 = vst [vmem:[#allocation3 + $0x10] sm:$0xff] %v943
    %v945 = vld [vmem:[#allocation2 + $0x60] sm:$0xff]
    %v946 = vld [vmem:[#allocation2 + $0x68] sm:$0xff]
    %v947 = vld [vmem:[#allocation2 + $0x70] sm:$0xff]
    %v948 = vld [vmem:[#allocation2 + $0x78] sm:$0xff]
    %949 = vmatprep.subr.mxu0 %v426
    %950 = vmatpush1.msra.mxu0 %v425
    %951 = vmatprep.subr.mxu0 %v422
    %952 = vmatpush1.msra.mxu0 %v421
    %953 = vmatprep.subr.mxu0 %v418
    %954 = vmatpush1.msra.mxu0 %v417
    %955 = vmatprep.subr.mxu0 %v414
    %956 = vmatpush1.msra.mxu0 %v413
    %957 = vmatprep.subr.mxu0 %v410
    %958 = vmatpush1.msra.mxu0 %v409
    %959 = vmatprep.subr.mxu0 %v406
    %960 = vmatpush1.msra.mxu0 %v405
    %961 = vmatprep.subr.mxu0 %v402
    %962 = vmatpush1.msra.mxu0 %v401
    %963 = vmatprep.subr.mxu0 %v398
    %964 = vmatpush1.msra.mxu0 %v397
    %965 = vmatprep.subr.mxu0 %v394
    %966 = vmatpush1.msra.mxu0 %v393
    %967 = vmatprep.subr.mxu0 %v390
    %968 = vmatpush1.msra.mxu0 %v389
    %969 = vmatprep.subr.mxu0 %v386
    %970 = vmatpush1.msra.mxu0 %v385
    %971 = vmatprep.subr.mxu0 %v382
    %972 = vmatpush1.msra.mxu0 %v381
    %973 = vmatprep.subr.mxu0 %v378
    %974 = vmatpush1.msra.mxu0 %v377
    %975 = vmatprep.subr.mxu0 %v374
    %976 = vmatpush1.msra.mxu0 %v373
    %977 = vmatprep.subr.mxu0 %v370
    %978 = vmatpush1.msra.mxu0 %v369
    %979 = vmatprep.subr.mxu0 %v366
    %980 = vmatpush1.msra.mxu0 %v365
    %981 = vmatprep.subr.mxu0 0.0
    %982 = vmatpush2.msra.mxu0 0.0
    %983 = vmatprep.subr.mxu0 0.0
    %984 = vmatpush2.msra.mxu0 0.0
    %985 = vmatprep.subr.mxu0 0.0
    %986 = vmatpush2.msra.mxu0 0.0
    %987 = vmatprep.subr.mxu0 0.0
    %988 = vmatpush2.msra.mxu0 0.0
    %989 = vmatprep.subr.mxu0 0.0
    %990 = vmatpush2.msra.mxu0 0.0
    %991 = vmatprep.subr.mxu0 0.0
    %992 = vmatpush2.msra.mxu0 0.0
    %993 = vmatprep.subr.mxu0 0.0
    %994 = vmatpush2.msra.mxu0 0.0
    %995 = vmatprep.subr.mxu0 0.0
    %996 = vmatpush2.msra.mxu0 0.0
    %997 = vmatprep.subr.mxu0 0.0
    %998 = vmatpush2.msra.mxu0 0.0
    %999 = vmatprep.subr.mxu0 0.0
    %1000 = vmatpush2.msra.mxu0 0.0
    %1001 = vmatprep.subr.mxu0 0.0
    %1002 = vmatpush2.msra.mxu0 0.0
    %1003 = vmatprep.subr.mxu0 0.0
    %1004 = vmatpush2.msra.mxu0 0.0
    %1005 = vmatprep.subr.mxu0 0.0
    %1006 = vmatpush2.msra.mxu0 0.0
    %1007 = vmatprep.subr.mxu0 0.0
    %1008 = vmatpush2.msra.mxu0 0.0
    %1009 = vmatprep.subr.mxu0 0.0
    %1010 = vmatpush2.msra.mxu0 0.0
    %1011 = vmatprep.subr.mxu0 0.0
    %1012 = vmatpush2.msra.mxu0 0.0
    %1013 = vmatprep.mubr.f32.mxu0 0.0
    %1014 = vmatmul.mubr.f32.gmra.mxu0 %v943
    %v1015 = vpop.f32.mrf.mxu0
    %v1016 = vadd.f32 0.0, %v1015
    %v1017 = vpop.f32.mrf.mxu0
    %v1018 = vadd.f32 0.0, %v1017
    %1019 = vdwg.mxu0
    %1020 = vmatprep.subr.mxu0 %v428
    %1021 = vmatpush1.msra.mxu0 %v427
    %1022 = vmatprep.subr.mxu0 %v424
    %1023 = vmatpush1.msra.mxu0 %v423
    %1024 = vmatprep.subr.mxu0 %v420
    %1025 = vmatpush1.msra.mxu0 %v419
    %1026 = vmatprep.subr.mxu0 %v416
    %1027 = vmatpush1.msra.mxu0 %v415
    %1028 = vmatprep.subr.mxu0 %v412
    %1029 = vmatpush1.msra.mxu0 %v411
    %1030 = vmatprep.subr.mxu0 %v408
    %1031 = vmatpush1.msra.mxu0 %v407
    %1032 = vmatprep.subr.mxu0 %v404
    %1033 = vmatpush1.msra.mxu0 %v403
    %1034 = vmatprep.subr.mxu0 %v400
    %1035 = vmatpush1.msra.mxu0 %v399
    %1036 = vmatprep.subr.mxu0 %v396
    %1037 = vmatpush1.msra.mxu0 %v395
    %1038 = vmatprep.subr.mxu0 %v392
    %1039 = vmatpush1.msra.mxu0 %v391
    %1040 = vmatprep.subr.mxu0 %v388
    %1041 = vmatpush1.msra.mxu0 %v387
    %1042 = vmatprep.subr.mxu0 %v384
    %1043 = vmatpush1.msra.mxu0 %v383
    %1044 = vmatprep.subr.mxu0 %v380
    %1045 = vmatpush1.msra.mxu0 %v379
    %1046 = vmatprep.subr.mxu0 %v376
    %1047 = vmatpush1.msra.mxu0 %v375
    %1048 = vmatprep.subr.mxu0 %v372
    %1049 = vmatpush1.msra.mxu0 %v371
    %1050 = vmatprep.subr.mxu0 %v368
    %1051 = vmatpush1.msra.mxu0 %v367
    %1052 = vmatprep.subr.mxu0 0.0
    %1053 = vmatpush2.msra.mxu0 0.0
    %1054 = vmatprep.subr.mxu0 0.0
    %1055 = vmatpush2.msra.mxu0 0.0
    %1056 = vmatprep.subr.mxu0 0.0
    %1057 = vmatpush2.msra.mxu0 0.0
    %1058 = vmatprep.subr.mxu0 0.0
    %1059 = vmatpush2.msra.mxu0 0.0
    %1060 = vmatprep.subr.mxu0 0.0
    %1061 = vmatpush2.msra.mxu0 0.0
    %1062 = vmatprep.subr.mxu0 0.0
    %1063 = vmatpush2.msra.mxu0 0.0
    %1064 = vmatprep.subr.mxu0 0.0
    %1065 = vmatpush2.msra.mxu0 0.0
    %1066 = vmatprep.subr.mxu0 0.0
    %1067 = vmatpush2.msra.mxu0 0.0
    %1068 = vmatprep.subr.mxu0 0.0
    %1069 = vmatpush2.msra.mxu0 0.0
    %1070 = vmatprep.subr.mxu0 0.0
    %1071 = vmatpush2.msra.mxu0 0.0
    %1072 = vmatprep.subr.mxu0 0.0
    %1073 = vmatpush2.msra.mxu0 0.0
    %1074 = vmatprep.subr.mxu0 0.0
    %1075 = vmatpush2.msra.mxu0 0.0
    %1076 = vmatprep.subr.mxu0 0.0
    %1077 = vmatpush2.msra.mxu0 0.0
    %1078 = vmatprep.subr.mxu0 0.0
    %1079 = vmatpush2.msra.mxu0 0.0
    %1080 = vmatprep.subr.mxu0 0.0
    %1081 = vmatpush2.msra.mxu0 0.0
    %1082 = vmatprep.subr.mxu0 0.0
    %1083 = vmatpush2.msra.mxu0 0.0
    %1084 = vmatprep.mubr.f32.mxu0 0.0
    %1085 = vmatmul.mubr.f32.gmra.mxu0 %v943
    %v1086 = vpop.f32.mrf.mxu0
    %v1087 = vadd.f32 0.0, %v1086
    %v1088 = vpop.f32.mrf.mxu0
    %v1089 = vadd.f32 0.0, %v1088
    %1090 = vdwg.mxu0
    %v1091 = vadd.f32 %v945, %v1016
    %v1092 = vadd.f32 %v946, %v1018
    %v1093 = vadd.f32 %v947, %v1087
    %v1094 = vadd.f32 %v948, %v1089
    %v1095 = vsub.f32 0.0, %v1091
    %v1096 = vsub.f32 0.0, %v1092
    %v1097 = vsub.f32 0.0, %v1093
    %v1098 = vmul.f32 %v1095, 1.442695
    %v1099 = vpow.pop %v1098
    %v1100 = vmul.f32 %v1096, 1.442695
    %v1101 = vpow.pop %v1100
    %v1102 = vmul.f32 %v1097, 1.442695
    %v1103 = vpow.pop %v1102
    %v1104 = vadd.f32 %v1099, 1.0
    %v1105 = vadd.f32 %v1101, 1.0
    %v1106 = vadd.f32 %v1103, 1.0
    %v1107 = vrcp.pop %v1104
    %v1108 = vrcp.pop %v1105
    %v1109 = vrcp.pop %v1106
    %v1110 = vtanh.pop %v1094
    %v1111 = vmul.f32 %v1108, %v941
    %v1112 = vmul.f32 %v1107, %v1110
    %v1113 = vadd.f32 %v1111, %v1112
    %v1114 = vtanh.pop %v1113
    %v1115 = vmul.f32 %v1109, %v1114
    %1116 = vst [vmem:[#allocation3 + $0x18] sm:$0xff] %v1115
    %v1117 = vld [vmem:[#allocation2 + $0x80] sm:$0xff]
    %v1118 = vld [vmem:[#allocation2 + $0x88] sm:$0xff]
    %v1119 = vld [vmem:[#allocation2 + $0x90] sm:$0xff]
    %v1120 = vld [vmem:[#allocation2 + $0x98] sm:$0xff]
    %1121 = vmatprep.subr.mxu0 %v426
    %1122 = vmatpush1.msra.mxu0 %v425
    %1123 = vmatprep.subr.mxu0 %v422
    %1124 = vmatpush1.msra.mxu0 %v421
    %1125 = vmatprep.subr.mxu0 %v418
    %1126 = vmatpush1.msra.mxu0 %v417
    %1127 = vmatprep.subr.mxu0 %v414
    %1128 = vmatpush1.msra.mxu0 %v413
    %1129 = vmatprep.subr.mxu0 %v410
    %1130 = vmatpush1.msra.mxu0 %v409
    %1131 = vmatprep.subr.mxu0 %v406
    %1132 = vmatpush1.msra.mxu0 %v405
    %1133 = vmatprep.subr.mxu0 %v402
    %1134 = vmatpush1.msra.mxu0 %v401
    %1135 = vmatprep.subr.mxu0 %v398
    %1136 = vmatpush1.msra.mxu0 %v397
    %1137 = vmatprep.subr.mxu0 %v394
    %1138 = vmatpush1.msra.mxu0 %v393
    %1139 = vmatprep.subr.mxu0 %v390
    %1140 = vmatpush1.msra.mxu0 %v389
    %1141 = vmatprep.subr.mxu0 %v386
    %1142 = vmatpush1.msra.mxu0 %v385
    %1143 = vmatprep.subr.mxu0 %v382
    %1144 = vmatpush1.msra.mxu0 %v381
    %1145 = vmatprep.subr.mxu0 %v378
    %1146 = vmatpush1.msra.mxu0 %v377
    %1147 = vmatprep.subr.mxu0 %v374
    %1148 = vmatpush1.msra.mxu0 %v373
    %1149 = vmatprep.subr.mxu0 %v370
    %1150 = vmatpush1.msra.mxu0 %v369
    %1151 = vmatprep.subr.mxu0 %v366
    %1152 = vmatpush1.msra.mxu0 %v365
    %1153 = vmatprep.subr.mxu0 0.0
    %1154 = vmatpush2.msra.mxu0 0.0
    %1155 = vmatprep.subr.mxu0 0.0
    %1156 = vmatpush2.msra.mxu0 0.0
    %1157 = vmatprep.subr.mxu0 0.0
    %1158 = vmatpush2.msra.mxu0 0.0
    %1159 = vmatprep.subr.mxu0 0.0
    %1160 = vmatpush2.msra.mxu0 0.0
    %1161 = vmatprep.subr.mxu0 0.0
    %1162 = vmatpush2.msra.mxu0 0.0
    %1163 = vmatprep.subr.mxu0 0.0
    %1164 = vmatpush2.msra.mxu0 0.0
    %1165 = vmatprep.subr.mxu0 0.0
    %1166 = vmatpush2.msra.mxu0 0.0
    %1167 = vmatprep.subr.mxu0 0.0
    %1168 = vmatpush2.msra.mxu0 0.0
    %1169 = vmatprep.subr.mxu0 0.0
    %1170 = vmatpush2.msra.mxu0 0.0
    %1171 = vmatprep.subr.mxu0 0.0
    %1172 = vmatpush2.msra.mxu0 0.0
    %1173 = vmatprep.subr.mxu0 0.0
    %1174 = vmatpush2.msra.mxu0 0.0
    %1175 = vmatprep.subr.mxu0 0.0
    %1176 = vmatpush2.msra.mxu0 0.0
    %1177 = vmatprep.subr.mxu0 0.0
    %1178 = vmatpush2.msra.mxu0 0.0
    %1179 = vmatprep.subr.mxu0 0.0
    %1180 = vmatpush2.msra.mxu0 0.0
    %1181 = vmatprep.subr.mxu0 0.0
    %1182 = vmatpush2.msra.mxu0 0.0
    %1183 = vmatprep.subr.mxu0 0.0
    %1184 = vmatpush2.msra.mxu0 0.0
    %1185 = vmatprep.mubr.f32.mxu0 0.0
    %1186 = vmatmul.mubr.f32.gmra.mxu0 %v1115
    %v1187 = vpop.f32.mrf.mxu0
    %v1188 = vadd.f32 0.0, %v1187
    %v1189 = vpop.f32.mrf.mxu0
    %v1190 = vadd.f32 0.0, %v1189
    %1191 = vdwg.mxu0
    %1192 = vmatprep.subr.mxu0 %v428
    %1193 = vmatpush1.msra.mxu0 %v427
    %1194 = vmatprep.subr.mxu0 %v424
    %1195 = vmatpush1.msra.mxu0 %v423
    %1196 = vmatprep.subr.mxu0 %v420
    %1197 = vmatpush1.msra.mxu0 %v419
    %1198 = vmatprep.subr.mxu0 %v416
    %1199 = vmatpush1.msra.mxu0 %v415
    %1200 = vmatprep.subr.mxu0 %v412
    %1201 = vmatpush1.msra.mxu0 %v411
    %1202 = vmatprep.subr.mxu0 %v408
    %1203 = vmatpush1.msra.mxu0 %v407
    %1204 = vmatprep.subr.mxu0 %v404
    %1205 = vmatpush1.msra.mxu0 %v403
    %1206 = vmatprep.subr.mxu0 %v400
    %1207 = vmatpush1.msra.mxu0 %v399
    %1208 = vmatprep.subr.mxu0 %v396
    %1209 = vmatpush1.msra.mxu0 %v395
    %1210 = vmatprep.subr.mxu0 %v392
    %1211 = vmatpush1.msra.mxu0 %v391
    %1212 = vmatprep.subr.mxu0 %v388
    %1213 = vmatpush1.msra.mxu0 %v387
    %1214 = vmatprep.subr.mxu0 %v384
    %1215 = vmatpush1.msra.mxu0 %v383
    %1216 = vmatprep.subr.mxu0 %v380
    %1217 = vmatpush1.msra.mxu0 %v379
    %1218 = vmatprep.subr.mxu0 %v376
    %1219 = vmatpush1.msra.mxu0 %v375
    %1220 = vmatprep.subr.mxu0 %v372
    %1221 = vmatpush1.msra.mxu0 %v371
    %1222 = vmatprep.subr.mxu0 %v368
    %1223 = vmatpush1.msra.mxu0 %v367
    %1224 = vmatprep.subr.mxu0 0.0
    %1225 = vmatpush2.msra.mxu0 0.0
    %1226 = vmatprep.subr.mxu0 0.0
    %1227 = vmatpush2.msra.mxu0 0.0
    %1228 = vmatprep.subr.mxu0 0.0
    %1229 = vmatpush2.msra.mxu0 0.0
    %1230 = vmatprep.subr.mxu0 0.0
    %1231 = vmatpush2.msra.mxu0 0.0
    %1232 = vmatprep.subr.mxu0 0.0
    %1233 = vmatpush2.msra.mxu0 0.0
    %1234 = vmatprep.subr.mxu0 0.0
    %1235 = vmatpush2.msra.mxu0 0.0
    %1236 = vmatprep.subr.mxu0 0.0
    %1237 = vmatpush2.msra.mxu0 0.0
    %1238 = vmatprep.subr.mxu0 0.0
    %1239 = vmatpush2.msra.mxu0 0.0
    %1240 = vmatprep.subr.mxu0 0.0
    %1241 = vmatpush2.msra.mxu0 0.0
    %1242 = vmatprep.subr.mxu0 0.0
    %1243 = vmatpush2.msra.mxu0 0.0
    %1244 = vmatprep.subr.mxu0 0.0
    %1245 = vmatpush2.msra.mxu0 0.0
    %1246 = vmatprep.subr.mxu0 0.0
    %1247 = vmatpush2.msra.mxu0 0.0
    %1248 = vmatprep.subr.mxu0 0.0
    %1249 = vmatpush2.msra.mxu0 0.0
    %1250 = vmatprep.subr.mxu0 0.0
    %1251 = vmatpush2.msra.mxu0 0.0
    %1252 = vmatprep.subr.mxu0 0.0
    %1253 = vmatpush2.msra.mxu0 0.0
    %1254 = vmatprep.subr.mxu0 0.0
    %1255 = vmatpush2.msra.mxu0 0.0
    %1256 = vmatprep.mubr.f32.mxu0 0.0
    %1257 = vmatmul.mubr.f32.gmra.mxu0 %v1115
    %v1258 = vpop.f32.mrf.mxu0
    %v1259 = vadd.f32 0.0, %v1258
    %v1260 = vpop.f32.mrf.mxu0
    %v1261 = vadd.f32 0.0, %v1260
    %1262 = vdwg.mxu0
    %v1263 = vadd.f32 %v1117, %v1188
    %v1264 = vadd.f32 %v1118, %v1190
    %v1265 = vadd.f32 %v1119, %v1259
    %v1266 = vadd.f32 %v1120, %v1261
    %v1267 = vsub.f32 0.0, %v1263
    %v1268 = vsub.f32 0.0, %v1264
    %v1269 = vsub.f32 0.0, %v1265
    %v1270 = vmul.f32 %v1267, 1.442695
    %v1271 = vpow.pop %v1270
    %v1272 = vmul.f32 %v1268, 1.442695
    %v1273 = vpow.pop %v1272
    %v1274 = vmul.f32 %v1269, 1.442695
    %v1275 = vpow.pop %v1274
    %v1276 = vadd.f32 %v1271, 1.0
    %v1277 = vadd.f32 %v1273, 1.0
    %v1278 = vadd.f32 %v1275, 1.0
    %v1279 = vrcp.pop %v1276
    %v1280 = vrcp.pop %v1277
    %v1281 = vrcp.pop %v1278
    %v1282 = vtanh.pop %v1266
    %v1283 = vmul.f32 %v1280, %v1113
    %v1284 = vmul.f32 %v1279, %v1282
    %v1285 = vadd.f32 %v1283, %v1284
    %v1286 = vtanh.pop %v1285
    %v1287 = vmul.f32 %v1281, %v1286
    %1288 = vst [vmem:[#allocation3 + $0x20] sm:$0xff] %v1287
    %v1289 = vld [vmem:[#allocation2 + $0xa0] sm:$0xff]
    %v1290 = vld [vmem:[#allocation2 + $0xa8] sm:$0xff]
    %v1291 = vld [vmem:[#allocation2 + $0xb0] sm:$0xff]
    %v1292 = vld [vmem:[#allocation2 + $0xb8] sm:$0xff]
    %1293 = vmatprep.subr.mxu0 %v426
    %1294 = vmatpush1.msra.mxu0 %v425
    %1295 = vmatprep.subr.mxu0 %v422
    %1296 = vmatpush1.msra.mxu0 %v421
    %1297 = vmatprep.subr.mxu0 %v418
    %1298 = vmatpush1.msra.mxu0 %v417
    %1299 = vmatprep.subr.mxu0 %v414
    %1300 = vmatpush1.msra.mxu0 %v413
    %1301 = vmatprep.subr.mxu0 %v410
    %1302 = vmatpush1.msra.mxu0 %v409
    %1303 = vmatprep.subr.mxu0 %v406
    %1304 = vmatpush1.msra.mxu0 %v405
    %1305 = vmatprep.subr.mxu0 %v402
    %1306 = vmatpush1.msra.mxu0 %v401
    %1307 = vmatprep.subr.mxu0 %v398
    %1308 = vmatpush1.msra.mxu0 %v397
    %1309 = vmatprep.subr.mxu0 %v394
    %1310 = vmatpush1.msra.mxu0 %v393
    %1311 = vmatprep.subr.mxu0 %v390
    %1312 = vmatpush1.msra.mxu0 %v389
    %1313 = vmatprep.subr.mxu0 %v386
    %1314 = vmatpush1.msra.mxu0 %v385
    %1315 = vmatprep.subr.mxu0 %v382
    %1316 = vmatpush1.msra.mxu0 %v381
    %1317 = vmatprep.subr.mxu0 %v378
    %1318 = vmatpush1.msra.mxu0 %v377
    %1319 = vmatprep.subr.mxu0 %v374
    %1320 = vmatpush1.msra.mxu0 %v373
    %1321 = vmatprep.subr.mxu0 %v370
    %1322 = vmatpush1.msra.mxu0 %v369
    %1323 = vmatprep.subr.mxu0 %v366
    %1324 = vmatpush1.msra.mxu0 %v365
    %1325 = vmatprep.subr.mxu0 0.0
    %1326 = vmatpush2.msra.mxu0 0.0
    %1327 = vmatprep.subr.mxu0 0.0
    %1328 = vmatpush2.msra.mxu0 0.0
    %1329 = vmatprep.subr.mxu0 0.0
    %1330 = vmatpush2.msra.mxu0 0.0
    %1331 = vmatprep.subr.mxu0 0.0
    %1332 = vmatpush2.msra.mxu0 0.0
    %1333 = vmatprep.subr.mxu0 0.0
    %1334 = vmatpush2.msra.mxu0 0.0
    %1335 = vmatprep.subr.mxu0 0.0
    %1336 = vmatpush2.msra.mxu0 0.0
    %1337 = vmatprep.subr.mxu0 0.0
    %1338 = vmatpush2.msra.mxu0 0.0
    %1339 = vmatprep.subr.mxu0 0.0
    %1340 = vmatpush2.msra.mxu0 0.0
    %1341 = vmatprep.subr.mxu0 0.0
    %1342 = vmatpush2.msra.mxu0 0.0
    %1343 = vmatprep.subr.mxu0 0.0
    %1344 = vmatpush2.msra.mxu0 0.0
    %1345 = vmatprep.subr.mxu0 0.0
    %1346 = vmatpush2.msra.mxu0 0.0
    %1347 = vmatprep.subr.mxu0 0.0
    %1348 = vmatpush2.msra.mxu0 0.0
    %1349 = vmatprep.subr.mxu0 0.0
    %1350 = vmatpush2.msra.mxu0 0.0
    %1351 = vmatprep.subr.mxu0 0.0
    %1352 = vmatpush2.msra.mxu0 0.0
    %1353 = vmatprep.subr.mxu0 0.0
    %1354 = vmatpush2.msra.mxu0 0.0
    %1355 = vmatprep.subr.mxu0 0.0
    %1356 = vmatpush2.msra.mxu0 0.0
    %1357 = vmatprep.mubr.f32.mxu0 0.0
    %1358 = vmatmul.mubr.f32.gmra.mxu0 %v1287
    %v1359 = vpop.f32.mrf.mxu0
    %v1360 = vadd.f32 0.0, %v1359
    %v1361 = vpop.f32.mrf.mxu0
    %v1362 = vadd.f32 0.0, %v1361
    %1363 = vdwg.mxu0
    %1364 = vmatprep.subr.mxu0 %v428
    %1365 = vmatpush1.msra.mxu0 %v427
    %1366 = vmatprep.subr.mxu0 %v424
    %1367 = vmatpush1.msra.mxu0 %v423
    %1368 = vmatprep.subr.mxu0 %v420
    %1369 = vmatpush1.msra.mxu0 %v419
    %1370 = vmatprep.subr.mxu0 %v416
    %1371 = vmatpush1.msra.mxu0 %v415
    %1372 = vmatprep.subr.mxu0 %v412
    %1373 = vmatpush1.msra.mxu0 %v411
    %1374 = vmatprep.subr.mxu0 %v408
    %1375 = vmatpush1.msra.mxu0 %v407
    %1376 = vmatprep.subr.mxu0 %v404
    %1377 = vmatpush1.msra.mxu0 %v403
    %1378 = vmatprep.subr.mxu0 %v400
    %1379 = vmatpush1.msra.mxu0 %v399
    %1380 = vmatprep.subr.mxu0 %v396
    %1381 = vmatpush1.msra.mxu0 %v395
    %1382 = vmatprep.subr.mxu0 %v392
    %1383 = vmatpush1.msra.mxu0 %v391
    %1384 = vmatprep.subr.mxu0 %v388
    %1385 = vmatpush1.msra.mxu0 %v387
    %1386 = vmatprep.subr.mxu0 %v384
    %1387 = vmatpush1.msra.mxu0 %v383
    %1388 = vmatprep.subr.mxu0 %v380
    %1389 = vmatpush1.msra.mxu0 %v379
    %1390 = vmatprep.subr.mxu0 %v376
    %1391 = vmatpush1.msra.mxu0 %v375
    %1392 = vmatprep.subr.mxu0 %v372
    %1393 = vmatpush1.msra.mxu0 %v371
    %1394 = vmatprep.subr.mxu0 %v368
    %1395 = vmatpush1.msra.mxu0 %v367
    %1396 = vmatprep.subr.mxu0 0.0
    %1397 = vmatpush2.msra.mxu0 0.0
    %1398 = vmatprep.subr.mxu0 0.0
    %1399 = vmatpush2.msra.mxu0 0.0
    %1400 = vmatprep.subr.mxu0 0.0
    %1401 = vmatpush2.msra.mxu0 0.0
    %1402 = vmatprep.subr.mxu0 0.0
    %1403 = vmatpush2.msra.mxu0 0.0
    %1404 = vmatprep.subr.mxu0 0.0
    %1405 = vmatpush2.msra.mxu0 0.0
    %1406 = vmatprep.subr.mxu0 0.0
    %1407 = vmatpush2.msra.mxu0 0.0
    %1408 = vmatprep.subr.mxu0 0.0
    %1409 = vmatpush2.msra.mxu0 0.0
    %1410 = vmatprep.subr.mxu0 0.0
    %1411 = vmatpush2.msra.mxu0 0.0
    %1412 = vmatprep.subr.mxu0 0.0
    %1413 = vmatpush2.msra.mxu0 0.0
    %1414 = vmatprep.subr.mxu0 0.0
    %1415 = vmatpush2.msra.mxu0 0.0
    %1416 = vmatprep.subr.mxu0 0.0
    %1417 = vmatpush2.msra.mxu0 0.0
    %1418 = vmatprep.subr.mxu0 0.0
    %1419 = vmatpush2.msra.mxu0 0.0
    %1420 = vmatprep.subr.mxu0 0.0
    %1421 = vmatpush2.msra.mxu0 0.0
    %1422 = vmatprep.subr.mxu0 0.0
    %1423 = vmatpush2.msra.mxu0 0.0
    %1424 = vmatprep.subr.mxu0 0.0
    %1425 = vmatpush2.msra.mxu0 0.0
    %1426 = vmatprep.subr.mxu0 0.0
    %1427 = vmatpush2.msra.mxu0 0.0
    %1428 = vmatprep.mubr.f32.mxu0 0.0
    %1429 = vmatmul.mubr.f32.gmra.mxu0 %v1287
    %v1430 = vpop.f32.mrf.mxu0
    %v1431 = vadd.f32 0.0, %v1430
    %v1432 = vpop.f32.mrf.mxu0
    %v1433 = vadd.f32 0.0, %v1432
    %1434 = vdwg.mxu0
    %v1435 = vadd.f32 %v1289, %v1360
    %v1436 = vadd.f32 %v1290, %v1362
    %v1437 = vadd.f32 %v1291, %v1431
    %v1438 = vadd.f32 %v1292, %v1433
    %v1439 = vsub.f32 0.0, %v1435
    %v1440 = vsub.f32 0.0, %v1436
    %v1441 = vsub.f32 0.0, %v1437
    %v1442 = vmul.f32 %v1439, 1.442695
    %v1443 = vpow.pop %v1442
    %v1444 = vmul.f32 %v1440, 1.442695
    %v1445 = vpow.pop %v1444
    %v1446 = vmul.f32 %v1441, 1.442695
    %v1447 = vpow.pop %v1446
    %v1448 = vadd.f32 %v1443, 1.0
    %v1449 = vadd.f32 %v1445, 1.0
    %v1450 = vadd.f32 %v1447, 1.0
    %v1451 = vrcp.pop %v1448
    %v1452 = vrcp.pop %v1449
    %v1453 = vrcp.pop %v1450
    %v1454 = vtanh.pop %v1438
    %v1455 = vmul.f32 %v1452, %v1285
    %v1456 = vmul.f32 %v1451, %v1454
    %v1457 = vadd.f32 %v1455, %v1456
    %v1458 = vtanh.pop %v1457
    %v1459 = vmul.f32 %v1453, %v1458
    %1460 = vst [vmem:[#allocation3 + $0x28] sm:$0xff] %v1459
    %v1461 = vld [vmem:[#allocation2 + $0xc0] sm:$0xff]
    %v1462 = vld [vmem:[#allocation2 + $0xc8] sm:$0xff]
    %v1463 = vld [vmem:[#allocation2 + $0xd0] sm:$0xff]
    %v1464 = vld [vmem:[#allocation2 + $0xd8] sm:$0xff]
    %1465 = vmatprep.subr.mxu0 %v426
    %1466 = vmatpush1.msra.mxu0 %v425
    %1467 = vmatprep.subr.mxu0 %v422
    %1468 = vmatpush1.msra.mxu0 %v421
    %1469 = vmatprep.subr.mxu0 %v418
    %1470 = vmatpush1.msra.mxu0 %v417
    %1471 = vmatprep.subr.mxu0 %v414
    %1472 = vmatpush1.msra.mxu0 %v413
    %1473 = vmatprep.subr.mxu0 %v410
    %1474 = vmatpush1.msra.mxu0 %v409
    %1475 = vmatprep.subr.mxu0 %v406
    %1476 = vmatpush1.msra.mxu0 %v405
    %1477 = vmatprep.subr.mxu0 %v402
    %1478 = vmatpush1.msra.mxu0 %v401
    %1479 = vmatprep.subr.mxu0 %v398
    %1480 = vmatpush1.msra.mxu0 %v397
    %1481 = vmatprep.subr.mxu0 %v394
    %1482 = vmatpush1.msra.mxu0 %v393
    %1483 = vmatprep.subr.mxu0 %v390
    %1484 = vmatpush1.msra.mxu0 %v389
    %1485 = vmatprep.subr.mxu0 %v386
    %1486 = vmatpush1.msra.mxu0 %v385
    %1487 = vmatprep.subr.mxu0 %v382
    %1488 = vmatpush1.msra.mxu0 %v381
    %1489 = vmatprep.subr.mxu0 %v378
    %1490 = vmatpush1.msra.mxu0 %v377
    %1491 = vmatprep.subr.mxu0 %v374
    %1492 = vmatpush1.msra.mxu0 %v373
    %1493 = vmatprep.subr.mxu0 %v370
    %1494 = vmatpush1.msra.mxu0 %v369
    %1495 = vmatprep.subr.mxu0 %v366
    %1496 = vmatpush1.msra.mxu0 %v365
    %1497 = vmatprep.subr.mxu0 0.0
    %1498 = vmatpush2.msra.mxu0 0.0
    %1499 = vmatprep.subr.mxu0 0.0
    %1500 = vmatpush2.msra.mxu0 0.0
    %1501 = vmatprep.subr.mxu0 0.0
    %1502 = vmatpush2.msra.mxu0 0.0
    %1503 = vmatprep.subr.mxu0 0.0
    %1504 = vmatpush2.msra.mxu0 0.0
    %1505 = vmatprep.subr.mxu0 0.0
    %1506 = vmatpush2.msra.mxu0 0.0
    %1507 = vmatprep.subr.mxu0 0.0
    %1508 = vmatpush2.msra.mxu0 0.0
    %1509 = vmatprep.subr.mxu0 0.0
    %1510 = vmatpush2.msra.mxu0 0.0
    %1511 = vmatprep.subr.mxu0 0.0
    %1512 = vmatpush2.msra.mxu0 0.0
    %1513 = vmatprep.subr.mxu0 0.0
    %1514 = vmatpush2.msra.mxu0 0.0
    %1515 = vmatprep.subr.mxu0 0.0
    %1516 = vmatpush2.msra.mxu0 0.0
    %1517 = vmatprep.subr.mxu0 0.0
    %1518 = vmatpush2.msra.mxu0 0.0
    %1519 = vmatprep.subr.mxu0 0.0
    %1520 = vmatpush2.msra.mxu0 0.0
    %1521 = vmatprep.subr.mxu0 0.0
    %1522 = vmatpush2.msra.mxu0 0.0
    %1523 = vmatprep.subr.mxu0 0.0
    %1524 = vmatpush2.msra.mxu0 0.0
    %1525 = vmatprep.subr.mxu0 0.0
    %1526 = vmatpush2.msra.mxu0 0.0
    %1527 = vmatprep.subr.mxu0 0.0
    %1528 = vmatpush2.msra.mxu0 0.0
    %1529 = vmatprep.mubr.f32.mxu0 0.0
    %1530 = vmatmul.mubr.f32.gmra.mxu0 %v1459
    %v1531 = vpop.f32.mrf.mxu0
    %v1532 = vadd.f32 0.0, %v1531
    %v1533 = vpop.f32.mrf.mxu0
    %v1534 = vadd.f32 0.0, %v1533
    %1535 = vdwg.mxu0
    %1536 = vmatprep.subr.mxu0 %v428
    %1537 = vmatpush1.msra.mxu0 %v427
    %1538 = vmatprep.subr.mxu0 %v424
    %1539 = vmatpush1.msra.mxu0 %v423
    %1540 = vmatprep.subr.mxu0 %v420
    %1541 = vmatpush1.msra.mxu0 %v419
    %1542 = vmatprep.subr.mxu0 %v416
    %1543 = vmatpush1.msra.mxu0 %v415
    %1544 = vmatprep.subr.mxu0 %v412
    %1545 = vmatpush1.msra.mxu0 %v411
    %1546 = vmatprep.subr.mxu0 %v408
    %1547 = vmatpush1.msra.mxu0 %v407
    %1548 = vmatprep.subr.mxu0 %v404
    %1549 = vmatpush1.msra.mxu0 %v403
    %1550 = vmatprep.subr.mxu0 %v400
    %1551 = vmatpush1.msra.mxu0 %v399
    %1552 = vmatprep.subr.mxu0 %v396
    %1553 = vmatpush1.msra.mxu0 %v395
    %1554 = vmatprep.subr.mxu0 %v392
    %1555 = vmatpush1.msra.mxu0 %v391
    %1556 = vmatprep.subr.mxu0 %v388
    %1557 = vmatpush1.msra.mxu0 %v387
    %1558 = vmatprep.subr.mxu0 %v384
    %1559 = vmatpush1.msra.mxu0 %v383
    %1560 = vmatprep.subr.mxu0 %v380
    %1561 = vmatpush1.msra.mxu0 %v379
    %1562 = vmatprep.subr.mxu0 %v376
    %1563 = vmatpush1.msra.mxu0 %v375
    %1564 = vmatprep.subr.mxu0 %v372
    %1565 = vmatpush1.msra.mxu0 %v371
    %1566 = vmatprep.subr.mxu0 %v368
    %1567 = vmatpush1.msra.mxu0 %v367
    %1568 = vmatprep.subr.mxu0 0.0
    %1569 = vmatpush2.msra.mxu0 0.0
    %1570 = vmatprep.subr.mxu0 0.0
    %1571 = vmatpush2.msra.mxu0 0.0
    %1572 = vmatprep.subr.mxu0 0.0
    %1573 = vmatpush2.msra.mxu0 0.0
    %1574 = vmatprep.subr.mxu0 0.0
    %1575 = vmatpush2.msra.mxu0 0.0
    %1576 = vmatprep.subr.mxu0 0.0
    %1577 = vmatpush2.msra.mxu0 0.0
    %1578 = vmatprep.subr.mxu0 0.0
    %1579 = vmatpush2.msra.mxu0 0.0
    %1580 = vmatprep.subr.mxu0 0.0
    %1581 = vmatpush2.msra.mxu0 0.0
    %1582 = vmatprep.subr.mxu0 0.0
    %1583 = vmatpush2.msra.mxu0 0.0
    %1584 = vmatprep.subr.mxu0 0.0
    %1585 = vmatpush2.msra.mxu0 0.0
    %1586 = vmatprep.subr.mxu0 0.0
    %1587 = vmatpush2.msra.mxu0 0.0
    %1588 = vmatprep.subr.mxu0 0.0
    %1589 = vmatpush2.msra.mxu0 0.0
    %1590 = vmatprep.subr.mxu0 0.0
    %1591 = vmatpush2.msra.mxu0 0.0
    %1592 = vmatprep.subr.mxu0 0.0
    %1593 = vmatpush2.msra.mxu0 0.0
    %1594 = vmatprep.subr.mxu0 0.0
    %1595 = vmatpush2.msra.mxu0 0.0
    %1596 = vmatprep.subr.mxu0 0.0
    %1597 = vmatpush2.msra.mxu0 0.0
    %1598 = vmatprep.subr.mxu0 0.0
    %1599 = vmatpush2.msra.mxu0 0.0
    %1600 = vmatprep.mubr.f32.mxu0 0.0
    %1601 = vmatmul.mubr.f32.gmra.mxu0 %v1459
    %v1602 = vpop.f32.mrf.mxu0
    %v1603 = vadd.f32 0.0, %v1602
    %v1604 = vpop.f32.mrf.mxu0
    %v1605 = vadd.f32 0.0, %v1604
    %1606 = vdwg.mxu0
    %v1607 = vadd.f32 %v1461, %v1532
    %v1608 = vadd.f32 %v1462, %v1534
    %v1609 = vadd.f32 %v1463, %v1603
    %v1610 = vadd.f32 %v1464, %v1605
    %v1611 = vsub.f32 0.0, %v1607
    %v1612 = vsub.f32 0.0, %v1608
    %v1613 = vsub.f32 0.0, %v1609
    %v1614 = vmul.f32 %v1611, 1.442695
    %v1615 = vpow.pop %v1614
    %v1616 = vmul.f32 %v1612, 1.442695
    %v1617 = vpow.pop %v1616
    %v1618 = vmul.f32 %v1613, 1.442695
    %v1619 = vpow.pop %v1618
    %v1620 = vadd.f32 %v1615, 1.0
    %v1621 = vadd.f32 %v1617, 1.0
    %v1622 = vadd.f32 %v1619, 1.0
    %v1623 = vrcp.pop %v1620
    %v1624 = vrcp.pop %v1621
    %v1625 = vrcp.pop %v1622
    %v1626 = vtanh.pop %v1610
    %v1627 = vmul.f32 %v1624, %v1457
    %v1628 = vmul.f32 %v1623, %v1626
    %v1629 = vadd.f32 %v1627, %v1628
    %v1630 = vtanh.pop %v1629
    %v1631 = vmul.f32 %v1625, %v1630
    %1632 = vst [vmem:[#allocation3 + $0x30] sm:$0xff] %v1631
    %v1633 = vld [vmem:[#allocation2 + $0xe0] sm:$0xff]
    %v1634 = vld [vmem:[#allocation2 + $0xe8] sm:$0xff]
    %v1635 = vld [vmem:[#allocation2 + $0xf0] sm:$0xff]
    %v1636 = vld [vmem:[#allocation2 + $0xf8] sm:$0xff]
    %1637 = vmatprep.subr.mxu0 %v426
    %1638 = vmatpush1.msra.mxu0 %v425
    %1639 = vmatprep.subr.mxu0 %v422
    %1640 = vmatpush1.msra.mxu0 %v421
    %1641 = vmatprep.subr.mxu0 %v418
    %1642 = vmatpush1.msra.mxu0 %v417
    %1643 = vmatprep.subr.mxu0 %v414
    %1644 = vmatpush1.msra.mxu0 %v413
    %1645 = vmatprep.subr.mxu0 %v410
    %1646 = vmatpush1.msra.mxu0 %v409
    %1647 = vmatprep.subr.mxu0 %v406
    %1648 = vmatpush1.msra.mxu0 %v405
    %1649 = vmatprep.subr.mxu0 %v402
    %1650 = vmatpush1.msra.mxu0 %v401
    %1651 = vmatprep.subr.mxu0 %v398
    %1652 = vmatpush1.msra.mxu0 %v397
    %1653 = vmatprep.subr.mxu0 %v394
    %1654 = vmatpush1.msra.mxu0 %v393
    %1655 = vmatprep.subr.mxu0 %v390
    %1656 = vmatpush1.msra.mxu0 %v389
    %1657 = vmatprep.subr.mxu0 %v386
    %1658 = vmatpush1.msra.mxu0 %v385
    %1659 = vmatprep.subr.mxu0 %v382
    %1660 = vmatpush1.msra.mxu0 %v381
    %1661 = vmatprep.subr.mxu0 %v378
    %1662 = vmatpush1.msra.mxu0 %v377
    %1663 = vmatprep.subr.mxu0 %v374
    %1664 = vmatpush1.msra.mxu0 %v373
    %1665 = vmatprep.subr.mxu0 %v370
    %1666 = vmatpush1.msra.mxu0 %v369
    %1667 = vmatprep.subr.mxu0 %v366
    %1668 = vmatpush1.msra.mxu0 %v365
    %1669 = vmatprep.subr.mxu0 0.0
    %1670 = vmatpush2.msra.mxu0 0.0
    %1671 = vmatprep.subr.mxu0 0.0
    %1672 = vmatpush2.msra.mxu0 0.0
    %1673 = vmatprep.subr.mxu0 0.0
    %1674 = vmatpush2.msra.mxu0 0.0
    %1675 = vmatprep.subr.mxu0 0.0
    %1676 = vmatpush2.msra.mxu0 0.0
    %1677 = vmatprep.subr.mxu0 0.0
    %1678 = vmatpush2.msra.mxu0 0.0
    %1679 = vmatprep.subr.mxu0 0.0
    %1680 = vmatpush2.msra.mxu0 0.0
    %1681 = vmatprep.subr.mxu0 0.0
    %1682 = vmatpush2.msra.mxu0 0.0
    %1683 = vmatprep.subr.mxu0 0.0
    %1684 = vmatpush2.msra.mxu0 0.0
    %1685 = vmatprep.subr.mxu0 0.0
    %1686 = vmatpush2.msra.mxu0 0.0
    %1687 = vmatprep.subr.mxu0 0.0
    %1688 = vmatpush2.msra.mxu0 0.0
    %1689 = vmatprep.subr.mxu0 0.0
    %1690 = vmatpush2.msra.mxu0 0.0
    %1691 = vmatprep.subr.mxu0 0.0
    %1692 = vmatpush2.msra.mxu0 0.0
    %1693 = vmatprep.subr.mxu0 0.0
    %1694 = vmatpush2.msra.mxu0 0.0
    %1695 = vmatprep.subr.mxu0 0.0
    %1696 = vmatpush2.msra.mxu0 0.0
    %1697 = vmatprep.subr.mxu0 0.0
    %1698 = vmatpush2.msra.mxu0 0.0
    %1699 = vmatprep.subr.mxu0 0.0
    %1700 = vmatpush2.msra.mxu0 0.0
    %1701 = vmatprep.mubr.f32.mxu0 0.0
    %1702 = vmatmul.mubr.f32.gmra.mxu0 %v1631
    %v1703 = vpop.f32.mrf.mxu0
    %v1704 = vadd.f32 0.0, %v1703
    %v1705 = vpop.f32.mrf.mxu0
    %v1706 = vadd.f32 0.0, %v1705
    %1707 = vdwg.mxu0
    %1708 = vmatprep.subr.mxu0 %v428
    %1709 = vmatpush1.msra.mxu0 %v427
    %1710 = vmatprep.subr.mxu0 %v424
    %1711 = vmatpush1.msra.mxu0 %v423
    %1712 = vmatprep.subr.mxu0 %v420
    %1713 = vmatpush1.msra.mxu0 %v419
    %1714 = vmatprep.subr.mxu0 %v416
    %1715 = vmatpush1.msra.mxu0 %v415
    %1716 = vmatprep.subr.mxu0 %v412
    %1717 = vmatpush1.msra.mxu0 %v411
    %1718 = vmatprep.subr.mxu0 %v408
    %1719 = vmatpush1.msra.mxu0 %v407
    %1720 = vmatprep.subr.mxu0 %v404
    %1721 = vmatpush1.msra.mxu0 %v403
    %1722 = vmatprep.subr.mxu0 %v400
    %1723 = vmatpush1.msra.mxu0 %v399
    %1724 = vmatprep.subr.mxu0 %v396
    %1725 = vmatpush1.msra.mxu0 %v395
    %1726 = vmatprep.subr.mxu0 %v392
    %1727 = vmatpush1.msra.mxu0 %v391
    %1728 = vmatprep.subr.mxu0 %v388
    %1729 = vmatpush1.msra.mxu0 %v387
    %1730 = vmatprep.subr.mxu0 %v384
    %1731 = vmatpush1.msra.mxu0 %v383
    %1732 = vmatprep.subr.mxu0 %v380
    %1733 = vmatpush1.msra.mxu0 %v379
    %1734 = vmatprep.subr.mxu0 %v376
    %1735 = vmatpush1.msra.mxu0 %v375
    %1736 = vmatprep.subr.mxu0 %v372
    %1737 = vmatpush1.msra.mxu0 %v371
    %1738 = vmatprep.subr.mxu0 %v368
    %1739 = vmatpush1.msra.mxu0 %v367
    %1740 = vmatprep.subr.mxu0 0.0
    %1741 = vmatpush2.msra.mxu0 0.0
    %1742 = vmatprep.subr.mxu0 0.0
    %1743 = vmatpush2.msra.mxu0 0.0
    %1744 = vmatprep.subr.mxu0 0.0
    %1745 = vmatpush2.msra.mxu0 0.0
    %1746 = vmatprep.subr.mxu0 0.0
    %1747 = vmatpush2.msra.mxu0 0.0
    %1748 = vmatprep.subr.mxu0 0.0
    %1749 = vmatpush2.msra.mxu0 0.0
    %1750 = vmatprep.subr.mxu0 0.0
    %1751 = vmatpush2.msra.mxu0 0.0
    %1752 = vmatprep.subr.mxu0 0.0
    %1753 = vmatpush2.msra.mxu0 0.0
    %1754 = vmatprep.subr.mxu0 0.0
    %1755 = vmatpush2.msra.mxu0 0.0
    %1756 = vmatprep.subr.mxu0 0.0
    %1757 = vmatpush2.msra.mxu0 0.0
    %1758 = vmatprep.subr.mxu0 0.0
    %1759 = vmatpush2.msra.mxu0 0.0
    %1760 = vmatprep.subr.mxu0 0.0
    %1761 = vmatpush2.msra.mxu0 0.0
    %1762 = vmatprep.subr.mxu0 0.0
    %1763 = vmatpush2.msra.mxu0 0.0
    %1764 = vmatprep.subr.mxu0 0.0
    %1765 = vmatpush2.msra.mxu0 0.0
    %1766 = vmatprep.subr.mxu0 0.0
    %1767 = vmatpush2.msra.mxu0 0.0
    %1768 = vmatprep.subr.mxu0 0.0
    %1769 = vmatpush2.msra.mxu0 0.0
    %1770 = vmatprep.subr.mxu0 0.0
    %1771 = vmatpush2.msra.mxu0 0.0
    %1772 = vmatprep.mubr.f32.mxu0 0.0
    %1773 = vmatmul.mubr.f32.gmra.mxu0 %v1631
    %v1774 = vpop.f32.mrf.mxu0
    %v1775 = vadd.f32 0.0, %v1774
    %v1776 = vpop.f32.mrf.mxu0
    %v1777 = vadd.f32 0.0, %v1776
    %1778 = vdwg.mxu0
    %v1779 = vadd.f32 %v1633, %v1704
    %v1780 = vadd.f32 %v1634, %v1706
    %v1781 = vadd.f32 %v1635, %v1775
    %v1782 = vadd.f32 %v1636, %v1777
    %v1783 = vsub.f32 0.0, %v1779
    %v1784 = vsub.f32 0.0, %v1780
    %v1785 = vsub.f32 0.0, %v1781
    %v1786 = vmul.f32 %v1783, 1.442695
    %v1787 = vpow.pop %v1786
    %v1788 = vmul.f32 %v1784, 1.442695
    %v1789 = vpow.pop %v1788
    %v1790 = vmul.f32 %v1785, 1.442695
    %v1791 = vpow.pop %v1790
    %v1792 = vadd.f32 %v1787, 1.0
    %v1793 = vadd.f32 %v1789, 1.0
    %v1794 = vadd.f32 %v1791, 1.0
    %v1795 = vrcp.pop %v1792
    %v1796 = vrcp.pop %v1793
    %v1797 = vrcp.pop %v1794
    %v1798 = vtanh.pop %v1782
    %v1799 = vmul.f32 %v1796, %v1629
    %v1800 = vmul.f32 %v1795, %v1798
    %v1801 = vadd.f32 %v1799, %v1800
    %v1802 = vtanh.pop %v1801
    %v1803 = vmul.f32 %v1797, %v1802
    %1804 = vst [vmem:[#allocation3 + $0x38] sm:$0xff] %v1803
    %v1805 = vld [vmem:[#allocation3] sm:$0xff]
    %v1806 = vld [vmem:[#allocation3 + $0x8] sm:$0xff]
    %v1807 = vld [vmem:[#allocation3 + $0x10] sm:$0xff]
    %v1808 = vld [vmem:[#allocation3 + $0x18] sm:$0xff]
    %v1809 = vld [vmem:[#allocation3 + $0x20] sm:$0xff]
    %v1810 = vld [vmem:[#allocation3 + $0x28] sm:$0xff]
    %v1811 = vld [vmem:[#allocation3 + $0x30] sm:$0xff]
    %v1812 = vld [vmem:[#allocation3 + $0x38] sm:$0xff]
    %v1813 = vld [vmem:[#allocation6] sm:$0xff]
    %v1814 = vld [vmem:[#allocation6 + $0x8] sm:$0xff]
    %v1815 = vld [vmem:[#allocation6 + $0x10] sm:$0xff]
    %v1816 = vld [vmem:[#allocation6 + $0x18] sm:$0xff]
    %v1817 = vld [vmem:[#allocation6 + $0x20] sm:$0xff]
    %v1818 = vld [vmem:[#allocation6 + $0x28] sm:$0xff]
    %v1819 = vld [vmem:[#allocation6 + $0x30] sm:$0xff]
    %v1820 = vld [vmem:[#allocation6 + $0x38] sm:$0xff]
    %v1821 = vld [vmem:[#allocation6 + $0x40] sm:$0xff]
    %v1822 = vld [vmem:[#allocation6 + $0x48] sm:$0xff]
    %v1823 = vld [vmem:[#allocation6 + $0x50] sm:$0xff]
    %v1824 = vld [vmem:[#allocation6 + $0x58] sm:$0xff]
    %v1825 = vld [vmem:[#allocation6 + $0x60] sm:$0xff]
    %v1826 = vld [vmem:[#allocation6 + $0x68] sm:$0xff]
    %v1827 = vld [vmem:[#allocation6 + $0x70] sm:$0xff]
    %v1828 = vld [vmem:[#allocation6 + $0x78] sm:$0xff]
    %v1829 = vld [vmem:[#allocation6 + $0x80] sm:$0xff]
    %v1830 = vld [vmem:[#allocation6 + $0x88] sm:$0xff]
    %v1831 = vld [vmem:[#allocation6 + $0x90] sm:$0xff]
    %v1832 = vld [vmem:[#allocation6 + $0x98] sm:$0xff]
    %v1833 = vld [vmem:[#allocation6 + $0xa0] sm:$0xff]
    %v1834 = vld [vmem:[#allocation6 + $0xa8] sm:$0xff]
    %v1835 = vld [vmem:[#allocation6 + $0xb0] sm:$0xff]
    %v1836 = vld [vmem:[#allocation6 + $0xb8] sm:$0xff]
    %v1837 = vld [vmem:[#allocation6 + $0xc0] sm:$0xff]
    %v1838 = vld [vmem:[#allocation6 + $0xc8] sm:$0xff]
    %v1839 = vld [vmem:[#allocation6 + $0xd0] sm:$0xff]
    %v1840 = vld [vmem:[#allocation6 + $0xd8] sm:$0xff]
    %v1841 = vld [vmem:[#allocation6 + $0xe0] sm:$0xff]
    %v1842 = vld [vmem:[#allocation6 + $0xe8] sm:$0xff]
    %v1843 = vld [vmem:[#allocation6 + $0xf0] sm:$0xff]
    %v1844 = vld [vmem:[#allocation6 + $0xf8] sm:$0xff]
    %v1845 = vld [vmem:[#allocation6 + $0x100] sm:$0xff]
    %v1846 = vld [vmem:[#allocation6 + $0x108] sm:$0xff]
    %v1847 = vld [vmem:[#allocation6 + $0x110] sm:$0xff]
    %v1848 = vld [vmem:[#allocation6 + $0x118] sm:$0xff]
    %v1849 = vld [vmem:[#allocation6 + $0x120] sm:$0xff]
    %v1850 = vld [vmem:[#allocation6 + $0x128] sm:$0xff]
    %v1851 = vld [vmem:[#allocation6 + $0x130] sm:$0xff]
    %v1852 = vld [vmem:[#allocation6 + $0x138] sm:$0xff]
    %v1853 = vld [vmem:[#allocation6 + $0x140] sm:$0xff]
    %v1854 = vld [vmem:[#allocation6 + $0x148] sm:$0xff]
    %v1855 = vld [vmem:[#allocation6 + $0x150] sm:$0xff]
    %v1856 = vld [vmem:[#allocation6 + $0x158] sm:$0xff]
    %v1857 = vld [vmem:[#allocation6 + $0x160] sm:$0xff]
    %v1858 = vld [vmem:[#allocation6 + $0x168] sm:$0xff]
    %v1859 = vld [vmem:[#allocation6 + $0x170] sm:$0xff]
    %v1860 = vld [vmem:[#allocation6 + $0x178] sm:$0xff]
    %v1861 = vld [vmem:[#allocation6 + $0x180] sm:$0xff]
    %v1862 = vld [vmem:[#allocation6 + $0x188] sm:$0xff]
    %v1863 = vld [vmem:[#allocation6 + $0x190] sm:$0xff]
    %v1864 = vld [vmem:[#allocation6 + $0x198] sm:$0xff]
    %v1865 = vld [vmem:[#allocation6 + $0x1a0] sm:$0xff]
    %v1866 = vld [vmem:[#allocation6 + $0x1a8] sm:$0xff]
    %v1867 = vld [vmem:[#allocation6 + $0x1b0] sm:$0xff]
    %v1868 = vld [vmem:[#allocation6 + $0x1b8] sm:$0xff]
    %v1869 = vld [vmem:[#allocation6 + $0x1c0] sm:$0xff]
    %v1870 = vld [vmem:[#allocation6 + $0x1c8] sm:$0xff]
    %v1871 = vld [vmem:[#allocation6 + $0x1d0] sm:$0xff]
    %v1872 = vld [vmem:[#allocation6 + $0x1d8] sm:$0xff]
    %v1873 = vld [vmem:[#allocation6 + $0x1e0] sm:$0xff]
    %v1874 = vld [vmem:[#allocation6 + $0x1e8] sm:$0xff]
    %v1875 = vld [vmem:[#allocation6 + $0x1f0] sm:$0xff]
    %v1876 = vld [vmem:[#allocation6 + $0x1f8] sm:$0xff]
    %s1877 = scalar_lea.vmem %s3, 1
    %v1878 = vld [vmem:[%s1877] ss:$2 sm:$0xf]
    %v1880 = vlaneseq
    %v1881 = vshrl.u32 %v1880, 7
    %v1882 = vsub.s32 0, %v1881
    %v1883 = vrot.slane %v1878, %v1882
    %v1884 = vlaneseq
    %v1885 = vshrl.u32 %v1884, 7
    %v1886 = vsub.s32 1, %v1885
    %v1887 = vrot.slane %v1878, %v1886
    %v1888 = vlaneseq
    %v1889 = vshrl.u32 %v1888, 7
    %v1890 = vsub.s32 2, %v1889
    %v1891 = vrot.slane %v1878, %v1890
    %v1892 = vlaneseq
    %v1893 = vshrl.u32 %v1892, 7
    %v1894 = vsub.s32 3, %v1893
    %v1895 = vrot.slane %v1878, %v1894
    %1900 = vmatprep.subr.mxu0 %v1874
    %1901 = vmatpush1.msra.mxu0 %v1873
    %1902 = vmatprep.subr.mxu0 %v1870
    %1903 = vmatpush1.msra.mxu0 %v1869
    %1904 = vmatprep.subr.mxu0 %v1866
    %1905 = vmatpush1.msra.mxu0 %v1865
    %1906 = vmatprep.subr.mxu0 %v1862
    %1907 = vmatpush1.msra.mxu0 %v1861
    %1908 = vmatprep.subr.mxu0 %v1858
    %1909 = vmatpush1.msra.mxu0 %v1857
    %1910 = vmatprep.subr.mxu0 %v1854
    %1911 = vmatpush1.msra.mxu0 %v1853
    %1912 = vmatprep.subr.mxu0 %v1850
    %1913 = vmatpush1.msra.mxu0 %v1849
    %1914 = vmatprep.subr.mxu0 %v1846
    %1915 = vmatpush1.msra.mxu0 %v1845
    %1916 = vmatprep.subr.mxu0 %v1842
    %1917 = vmatpush1.msra.mxu0 %v1841
    %1918 = vmatprep.subr.mxu0 %v1838
    %1919 = vmatpush1.msra.mxu0 %v1837
    %1920 = vmatprep.subr.mxu0 %v1834
    %1921 = vmatpush1.msra.mxu0 %v1833
    %1922 = vmatprep.subr.mxu0 %v1830
    %1923 = vmatpush1.msra.mxu0 %v1829
    %1924 = vmatprep.subr.mxu0 %v1826
    %1925 = vmatpush1.msra.mxu0 %v1825
    %1926 = vmatprep.subr.mxu0 %v1822
    %1927 = vmatpush1.msra.mxu0 %v1821
    %1928 = vmatprep.subr.mxu0 %v1818
    %1929 = vmatpush1.msra.mxu0 %v1817
    %1930 = vmatprep.subr.mxu0 %v1814
    %1931 = vmatpush1.msra.mxu0 %v1813
    %1932 = vmatprep.subr.mxu0 0.0
    %1933 = vmatpush2.msra.mxu0 0.0
    %1934 = vmatprep.subr.mxu0 0.0
    %1935 = vmatpush2.msra.mxu0 0.0
    %1936 = vmatprep.subr.mxu0 0.0
    %1937 = vmatpush2.msra.mxu0 0.0
    %1938 = vmatprep.subr.mxu0 0.0
    %1939 = vmatpush2.msra.mxu0 0.0
    %1940 = vmatprep.subr.mxu0 0.0
    %1941 = vmatpush2.msra.mxu0 0.0
    %1942 = vmatprep.subr.mxu0 0.0
    %1943 = vmatpush2.msra.mxu0 0.0
    %1944 = vmatprep.subr.mxu0 0.0
    %1945 = vmatpush2.msra.mxu0 0.0
    %1946 = vmatprep.subr.mxu0 0.0
    %1947 = vmatpush2.msra.mxu0 0.0
    %1948 = vmatprep.subr.mxu0 0.0
    %1949 = vmatpush2.msra.mxu0 0.0
    %1950 = vmatprep.subr.mxu0 0.0
    %1951 = vmatpush2.msra.mxu0 0.0
    %1952 = vmatprep.subr.mxu0 0.0
    %1953 = vmatpush2.msra.mxu0 0.0
    %1954 = vmatprep.subr.mxu0 0.0
    %1955 = vmatpush2.msra.mxu0 0.0
    %1956 = vmatprep.subr.mxu0 0.0
    %1957 = vmatpush2.msra.mxu0 0.0
    %1958 = vmatprep.subr.mxu0 0.0
    %1959 = vmatpush2.msra.mxu0 0.0
    %1960 = vmatprep.subr.mxu0 0.0
    %1961 = vmatpush2.msra.mxu0 0.0
    %1962 = vmatprep.subr.mxu0 0.0
    %1963 = vmatpush2.msra.mxu0 0.0
    %1964 = vmatprep.mubr.f32.mxu0 0.0
    %1965 = vmatmul.mubr.f32.gmra.mxu0 %v1805
    %v1966 = vpop.f32.mrf.mxu0
    %v1967 = vadd.f32 %v1883, %v1966
    %v1968 = vpop.f32.mrf.mxu0
    %v1969 = vadd.f32 %v1887, %v1968
    %1970 = vmatprep.mubr.f32.mxu0 0.0
    %1971 = vmatmul.mubr.f32.gmra.mxu0 %v1806
    %v1972 = vpop.f32.mrf.mxu0
    %v1973 = vadd.f32 %v1883, %v1972
    %v1974 = vpop.f32.mrf.mxu0
    %v1975 = vadd.f32 %v1887, %v1974
    %1976 = vmatprep.mubr.f32.mxu0 0.0
    %1977 = vmatmul.mubr.f32.gmra.mxu0 %v1807
    %v1978 = vpop.f32.mrf.mxu0
    %v1979 = vadd.f32 %v1883, %v1978
    %v1980 = vpop.f32.mrf.mxu0
    %v1981 = vadd.f32 %v1887, %v1980
    %1982 = vmatprep.mubr.f32.mxu0 0.0
    %1983 = vmatmul.mubr.f32.gmra.mxu0 %v1808
    %v1984 = vpop.f32.mrf.mxu0
    %v1985 = vadd.f32 %v1883, %v1984
    %v1986 = vpop.f32.mrf.mxu0
    %v1987 = vadd.f32 %v1887, %v1986
    %1988 = vmatprep.mubr.f32.mxu0 0.0
    %1989 = vmatmul.mubr.f32.gmra.mxu0 %v1809
    %v1990 = vpop.f32.mrf.mxu0
    %v1991 = vadd.f32 %v1883, %v1990
    %v1992 = vpop.f32.mrf.mxu0
    %v1993 = vadd.f32 %v1887, %v1992
    %1994 = vmatprep.mubr.f32.mxu0 0.0
    %1995 = vmatmul.mubr.f32.gmra.mxu0 %v1810
    %v1996 = vpop.f32.mrf.mxu0
    %v1997 = vadd.f32 %v1883, %v1996
    %v1998 = vpop.f32.mrf.mxu0
    %v1999 = vadd.f32 %v1887, %v1998
    %2000 = vmatprep.mubr.f32.mxu0 0.0
    %2001 = vmatmul.mubr.f32.gmra.mxu0 %v1811
    %v2002 = vpop.f32.mrf.mxu0
    %v2003 = vadd.f32 %v1883, %v2002
    %v2004 = vpop.f32.mrf.mxu0
    %v2005 = vadd.f32 %v1887, %v2004
    %2006 = vmatprep.mubr.f32.mxu0 0.0
    %2007 = vmatmul.mubr.f32.gmra.mxu0 %v1812
    %v2008 = vpop.f32.mrf.mxu0
    %v2009 = vadd.f32 %v1883, %v2008
    %v2010 = vpop.f32.mrf.mxu0
    %v2011 = vadd.f32 %v1887, %v2010
    %2012 = vdwg.mxu0
    %2013 = vmatprep.subr.mxu0 %v1876
    %2014 = vmatpush1.msra.mxu0 %v1875
    %2015 = vmatprep.subr.mxu0 %v1872
    %2016 = vmatpush1.msra.mxu0 %v1871
    %2017 = vmatprep.subr.mxu0 %v1868
    %2018 = vmatpush1.msra.mxu0 %v1867
    %2019 = vmatprep.subr.mxu0 %v1864
    %2020 = vmatpush1.msra.mxu0 %v1863
    %2021 = vmatprep.subr.mxu0 %v1860
    %2022 = vmatpush1.msra.mxu0 %v1859
    %2023 = vmatprep.subr.mxu0 %v1856
    %2024 = vmatpush1.msra.mxu0 %v1855
    %2025 = vmatprep.subr.mxu0 %v1852
    %2026 = vmatpush1.msra.mxu0 %v1851
    %2027 = vmatprep.subr.mxu0 %v1848
    %2028 = vmatpush1.msra.mxu0 %v1847
    %2029 = vmatprep.subr.mxu0 %v1844
    %2030 = vmatpush1.msra.mxu0 %v1843
    %2031 = vmatprep.subr.mxu0 %v1840
    %2032 = vmatpush1.msra.mxu0 %v1839
    %2033 = vmatprep.subr.mxu0 %v1836
    %2034 = vmatpush1.msra.mxu0 %v1835
    %2035 = vmatprep.subr.mxu0 %v1832
    %2036 = vmatpush1.msra.mxu0 %v1831
    %2037 = vmatprep.subr.mxu0 %v1828
    %2038 = vmatpush1.msra.mxu0 %v1827
    %2039 = vmatprep.subr.mxu0 %v1824
    %2040 = vmatpush1.msra.mxu0 %v1823
    %2041 = vmatprep.subr.mxu0 %v1820
    %2042 = vmatpush1.msra.mxu0 %v1819
    %2043 = vmatprep.subr.mxu0 %v1816
    %2044 = vmatpush1.msra.mxu0 %v1815
    %2045 = vmatprep.subr.mxu0 0.0
    %2046 = vmatpush2.msra.mxu0 0.0
    %2047 = vmatprep.subr.mxu0 0.0
    %2048 = vmatpush2.msra.mxu0 0.0
    %2049 = vmatprep.subr.mxu0 0.0
    %2050 = vmatpush2.msra.mxu0 0.0
    %2051 = vmatprep.subr.mxu0 0.0
    %2052 = vmatpush2.msra.mxu0 0.0
    %2053 = vmatprep.subr.mxu0 0.0
    %2054 = vmatpush2.msra.mxu0 0.0
    %2055 = vmatprep.subr.mxu0 0.0
    %2056 = vmatpush2.msra.mxu0 0.0
    %2057 = vmatprep.subr.mxu0 0.0
    %2058 = vmatpush2.msra.mxu0 0.0
    %2059 = vmatprep.subr.mxu0 0.0
    %2060 = vmatpush2.msra.mxu0 0.0
    %2061 = vmatprep.subr.mxu0 0.0
    %2062 = vmatpush2.msra.mxu0 0.0
    %2063 = vmatprep.subr.mxu0 0.0
    %2064 = vmatpush2.msra.mxu0 0.0
    %2065 = vmatprep.subr.mxu0 0.0
    %2066 = vmatpush2.msra.mxu0 0.0
    %2067 = vmatprep.subr.mxu0 0.0
    %2068 = vmatpush2.msra.mxu0 0.0
    %2069 = vmatprep.subr.mxu0 0.0
    %2070 = vmatpush2.msra.mxu0 0.0
    %2071 = vmatprep.subr.mxu0 0.0
    %2072 = vmatpush2.msra.mxu0 0.0
    %2073 = vmatprep.subr.mxu0 0.0
    %2074 = vmatpush2.msra.mxu0 0.0
    %2075 = vmatprep.subr.mxu0 0.0
    %2076 = vmatpush2.msra.mxu0 0.0
    %2077 = vmatprep.mubr.f32.mxu0 0.0
    %2078 = vmatmul.mubr.f32.gmra.mxu0 %v1805
    %v2079 = vpop.f32.mrf.mxu0
    %v2080 = vadd.f32 %v1891, %v2079
    %v2081 = vpop.f32.mrf.mxu0
    %v2082 = vadd.f32 %v1895, %v2081
    %2083 = vmatprep.mubr.f32.mxu0 0.0
    %2084 = vmatmul.mubr.f32.gmra.mxu0 %v1806
    %v2085 = vpop.f32.mrf.mxu0
    %v2086 = vadd.f32 %v1891, %v2085
    %v2087 = vpop.f32.mrf.mxu0
    %v2088 = vadd.f32 %v1895, %v2087
    %2089 = vmatprep.mubr.f32.mxu0 0.0
    %2090 = vmatmul.mubr.f32.gmra.mxu0 %v1807
    %v2091 = vpop.f32.mrf.mxu0
    %v2092 = vadd.f32 %v1891, %v2091
    %v2093 = vpop.f32.mrf.mxu0
    %v2094 = vadd.f32 %v1895, %v2093
    %2095 = vmatprep.mubr.f32.mxu0 0.0
    %2096 = vmatmul.mubr.f32.gmra.mxu0 %v1808
    %v2097 = vpop.f32.mrf.mxu0
    %v2098 = vadd.f32 %v1891, %v2097
    %v2099 = vpop.f32.mrf.mxu0
    %v2100 = vadd.f32 %v1895, %v2099
    %2101 = vmatprep.mubr.f32.mxu0 0.0
    %2102 = vmatmul.mubr.f32.gmra.mxu0 %v1809
    %v2103 = vpop.f32.mrf.mxu0
    %v2104 = vadd.f32 %v1891, %v2103
    %v2105 = vpop.f32.mrf.mxu0
    %v2106 = vadd.f32 %v1895, %v2105
    %2107 = vmatprep.mubr.f32.mxu0 0.0
    %2108 = vmatmul.mubr.f32.gmra.mxu0 %v1810
    %v2109 = vpop.f32.mrf.mxu0
    %v2110 = vadd.f32 %v1891, %v2109
    %v2111 = vpop.f32.mrf.mxu0
    %v2112 = vadd.f32 %v1895, %v2111
    %2113 = vmatprep.mubr.f32.mxu0 0.0
    %2114 = vmatmul.mubr.f32.gmra.mxu0 %v1811
    %v2115 = vpop.f32.mrf.mxu0
    %v2116 = vadd.f32 %v1891, %v2115
    %v2117 = vpop.f32.mrf.mxu0
    %v2118 = vadd.f32 %v1895, %v2117
    %2119 = vmatprep.mubr.f32.mxu0 0.0
    %2120 = vmatmul.mubr.f32.gmra.mxu0 %v1812
    %v2121 = vpop.f32.mrf.mxu0
    %v2122 = vadd.f32 %v1891, %v2121
    %v2123 = vpop.f32.mrf.mxu0
    %v2124 = vadd.f32 %v1895, %v2123
    %2125 = vdwg.mxu0
    %2126 = vst [vmem:[#allocation2] sm:$0xff] %v1967
    %2127 = vst [vmem:[#allocation2 + $0x8] sm:$0xff] %v1969
    %2128 = vst [vmem:[#allocation2 + $0x10] sm:$0xff] %v2080
    %2129 = vst [vmem:[#allocation2 + $0x18] sm:$0xff] %v2082
    %2130 = vst [vmem:[#allocation2 + $0x20] sm:$0xff] %v1973
    %2131 = vst [vmem:[#allocation2 + $0x28] sm:$0xff] %v1975
    %2132 = vst [vmem:[#allocation2 + $0x30] sm:$0xff] %v2086
    %2133 = vst [vmem:[#allocation2 + $0x38] sm:$0xff] %v2088
    %2134 = vst [vmem:[#allocation2 + $0x40] sm:$0xff] %v1979
    %2135 = vst [vmem:[#allocation2 + $0x48] sm:$0xff] %v1981
    %2136 = vst [vmem:[#allocation2 + $0x50] sm:$0xff] %v2092
    %2137 = vst [vmem:[#allocation2 + $0x58] sm:$0xff] %v2094
    %2138 = vst [vmem:[#allocation2 + $0x60] sm:$0xff] %v1985
    %2139 = vst [vmem:[#allocation2 + $0x68] sm:$0xff] %v1987
    %2140 = vst [vmem:[#allocation2 + $0x70] sm:$0xff] %v2098
    %2141 = vst [vmem:[#allocation2 + $0x78] sm:$0xff] %v2100
    %2142 = vst [vmem:[#allocation2 + $0x80] sm:$0xff] %v1991
    %2143 = vst [vmem:[#allocation2 + $0x88] sm:$0xff] %v1993
    %2144 = vst [vmem:[#allocation2 + $0x90] sm:$0xff] %v2104
    %2145 = vst [vmem:[#allocation2 + $0x98] sm:$0xff] %v2106
    %2146 = vst [vmem:[#allocation2 + $0xa0] sm:$0xff] %v1997
    %2147 = vst [vmem:[#allocation2 + $0xa8] sm:$0xff] %v1999
    %2148 = vst [vmem:[#allocation2 + $0xb0] sm:$0xff] %v2110
    %2149 = vst [vmem:[#allocation2 + $0xb8] sm:$0xff] %v2112
    %2150 = vst [vmem:[#allocation2 + $0xc0] sm:$0xff] %v2003
    %2151 = vst [vmem:[#allocation2 + $0xc8] sm:$0xff] %v2005
    %2152 = vst [vmem:[#allocation2 + $0xd0] sm:$0xff] %v2116
    %2153 = vst [vmem:[#allocation2 + $0xd8] sm:$0xff] %v2118
    %2154 = vst [vmem:[#allocation2 + $0xe0] sm:$0xff] %v2009
    %2155 = vst [vmem:[#allocation2 + $0xe8] sm:$0xff] %v2011
    %2156 = vst [vmem:[#allocation2 + $0xf0] sm:$0xff] %v2122
    %2157 = vst [vmem:[#allocation2 + $0xf8] sm:$0xff] %v2124
    %v2158 = vld [vmem:[#allocation6 + $0x200] sm:$0xff]
    %v2159 = vld [vmem:[#allocation6 + $0x208] sm:$0xff]
    %v2160 = vld [vmem:[#allocation6 + $0x210] sm:$0xff]
    %v2161 = vld [vmem:[#allocation6 + $0x218] sm:$0xff]
    %v2162 = vld [vmem:[#allocation6 + $0x220] sm:$0xff]
    %v2163 = vld [vmem:[#allocation6 + $0x228] sm:$0xff]
    %v2164 = vld [vmem:[#allocation6 + $0x230] sm:$0xff]
    %v2165 = vld [vmem:[#allocation6 + $0x238] sm:$0xff]
    %v2166 = vld [vmem:[#allocation6 + $0x240] sm:$0xff]
    %v2167 = vld [vmem:[#allocation6 + $0x248] sm:$0xff]
    %v2168 = vld [vmem:[#allocation6 + $0x250] sm:$0xff]
    %v2169 = vld [vmem:[#allocation6 + $0x258] sm:$0xff]
    %v2170 = vld [vmem:[#allocation6 + $0x260] sm:$0xff]
    %v2171 = vld [vmem:[#allocation6 + $0x268] sm:$0xff]
    %v2172 = vld [vmem:[#allocation6 + $0x270] sm:$0xff]
    %v2173 = vld [vmem:[#allocation6 + $0x278] sm:$0xff]
    %v2174 = vld [vmem:[#allocation6 + $0x280] sm:$0xff]
    %v2175 = vld [vmem:[#allocation6 + $0x288] sm:$0xff]
    %v2176 = vld [vmem:[#allocation6 + $0x290] sm:$0xff]
    %v2177 = vld [vmem:[#allocation6 + $0x298] sm:$0xff]
    %v2178 = vld [vmem:[#allocation6 + $0x2a0] sm:$0xff]
    %v2179 = vld [vmem:[#allocation6 + $0x2a8] sm:$0xff]
    %v2180 = vld [vmem:[#allocation6 + $0x2b0] sm:$0xff]
    %v2181 = vld [vmem:[#allocation6 + $0x2b8] sm:$0xff]
    %v2182 = vld [vmem:[#allocation6 + $0x2c0] sm:$0xff]
    %v2183 = vld [vmem:[#allocation6 + $0x2c8] sm:$0xff]
    %v2184 = vld [vmem:[#allocation6 + $0x2d0] sm:$0xff]
    %v2185 = vld [vmem:[#allocation6 + $0x2d8] sm:$0xff]
    %v2186 = vld [vmem:[#allocation6 + $0x2e0] sm:$0xff]
    %v2187 = vld [vmem:[#allocation6 + $0x2e8] sm:$0xff]
    %v2188 = vld [vmem:[#allocation6 + $0x2f0] sm:$0xff]
    %v2189 = vld [vmem:[#allocation6 + $0x2f8] sm:$0xff]
    %v2190 = vld [vmem:[#allocation6 + $0x300] sm:$0xff]
    %v2191 = vld [vmem:[#allocation6 + $0x308] sm:$0xff]
    %v2192 = vld [vmem:[#allocation6 + $0x310] sm:$0xff]
    %v2193 = vld [vmem:[#allocation6 + $0x318] sm:$0xff]
    %v2194 = vld [vmem:[#allocation6 + $0x320] sm:$0xff]
    %v2195 = vld [vmem:[#allocation6 + $0x328] sm:$0xff]
    %v2196 = vld [vmem:[#allocation6 + $0x330] sm:$0xff]
    %v2197 = vld [vmem:[#allocation6 + $0x338] sm:$0xff]
    %v2198 = vld [vmem:[#allocation6 + $0x340] sm:$0xff]
    %v2199 = vld [vmem:[#allocation6 + $0x348] sm:$0xff]
    %v2200 = vld [vmem:[#allocation6 + $0x350] sm:$0xff]
    %v2201 = vld [vmem:[#allocation6 + $0x358] sm:$0xff]
    %v2202 = vld [vmem:[#allocation6 + $0x360] sm:$0xff]
    %v2203 = vld [vmem:[#allocation6 + $0x368] sm:$0xff]
    %v2204 = vld [vmem:[#allocation6 + $0x370] sm:$0xff]
    %v2205 = vld [vmem:[#allocation6 + $0x378] sm:$0xff]
    %v2206 = vld [vmem:[#allocation6 + $0x380] sm:$0xff]
    %v2207 = vld [vmem:[#allocation6 + $0x388] sm:$0xff]
    %v2208 = vld [vmem:[#allocation6 + $0x390] sm:$0xff]
    %v2209 = vld [vmem:[#allocation6 + $0x398] sm:$0xff]
    %v2210 = vld [vmem:[#allocation6 + $0x3a0] sm:$0xff]
    %v2211 = vld [vmem:[#allocation6 + $0x3a8] sm:$0xff]
    %v2212 = vld [vmem:[#allocation6 + $0x3b0] sm:$0xff]
    %v2213 = vld [vmem:[#allocation6 + $0x3b8] sm:$0xff]
    %v2214 = vld [vmem:[#allocation6 + $0x3c0] sm:$0xff]
    %v2215 = vld [vmem:[#allocation6 + $0x3c8] sm:$0xff]
    %v2216 = vld [vmem:[#allocation6 + $0x3d0] sm:$0xff]
    %v2217 = vld [vmem:[#allocation6 + $0x3d8] sm:$0xff]
    %v2218 = vld [vmem:[#allocation6 + $0x3e0] sm:$0xff]
    %v2219 = vld [vmem:[#allocation6 + $0x3e8] sm:$0xff]
    %v2220 = vld [vmem:[#allocation6 + $0x3f0] sm:$0xff]
    %v2221 = vld [vmem:[#allocation6 + $0x3f8] sm:$0xff]
    %v2222 = vld [vmem:[#allocation2] sm:$0xff]
    %v2223 = vld [vmem:[#allocation2 + $0x8] sm:$0xff]
    %v2224 = vld [vmem:[#allocation2 + $0x10] sm:$0xff]
    %v2225 = vld [vmem:[#allocation2 + $0x18] sm:$0xff]
    %2226 = vmatprep.subr.mxu0 %v2219
    %2227 = vmatpush1.msra.mxu0 %v2218
    %2228 = vmatprep.subr.mxu0 %v2215
    %2229 = vmatpush1.msra.mxu0 %v2214
    %2230 = vmatprep.subr.mxu0 %v2211
    %2231 = vmatpush1.msra.mxu0 %v2210
    %2232 = vmatprep.subr.mxu0 %v2207
    %2233 = vmatpush1.msra.mxu0 %v2206
    %2234 = vmatprep.subr.mxu0 %v2203
    %2235 = vmatpush1.msra.mxu0 %v2202
    %2236 = vmatprep.subr.mxu0 %v2199
    %2237 = vmatpush1.msra.mxu0 %v2198
    %2238 = vmatprep.subr.mxu0 %v2195
    %2239 = vmatpush1.msra.mxu0 %v2194
    %2240 = vmatprep.subr.mxu0 %v2191
    %2241 = vmatpush1.msra.mxu0 %v2190
    %2242 = vmatprep.subr.mxu0 %v2187
    %2243 = vmatpush1.msra.mxu0 %v2186
    %2244 = vmatprep.subr.mxu0 %v2183
    %2245 = vmatpush1.msra.mxu0 %v2182
    %2246 = vmatprep.subr.mxu0 %v2179
    %2247 = vmatpush1.msra.mxu0 %v2178
    %2248 = vmatprep.subr.mxu0 %v2175
    %2249 = vmatpush1.msra.mxu0 %v2174
    %2250 = vmatprep.subr.mxu0 %v2171
    %2251 = vmatpush1.msra.mxu0 %v2170
    %2252 = vmatprep.subr.mxu0 %v2167
    %2253 = vmatpush1.msra.mxu0 %v2166
    %2254 = vmatprep.subr.mxu0 %v2163
    %2255 = vmatpush1.msra.mxu0 %v2162
    %2256 = vmatprep.subr.mxu0 %v2159
    %2257 = vmatpush1.msra.mxu0 %v2158
    %2258 = vmatprep.subr.mxu0 0.0
    %2259 = vmatpush2.msra.mxu0 0.0
    %2260 = vmatprep.subr.mxu0 0.0
    %2261 = vmatpush2.msra.mxu0 0.0
    %2262 = vmatprep.subr.mxu0 0.0
    %2263 = vmatpush2.msra.mxu0 0.0
    %2264 = vmatprep.subr.mxu0 0.0
    %2265 = vmatpush2.msra.mxu0 0.0
    %2266 = vmatprep.subr.mxu0 0.0
    %2267 = vmatpush2.msra.mxu0 0.0
    %2268 = vmatprep.subr.mxu0 0.0
    %2269 = vmatpush2.msra.mxu0 0.0
    %2270 = vmatprep.subr.mxu0 0.0
    %2271 = vmatpush2.msra.mxu0 0.0
    %2272 = vmatprep.subr.mxu0 0.0
    %2273 = vmatpush2.msra.mxu0 0.0
    %2274 = vmatprep.subr.mxu0 0.0
    %2275 = vmatpush2.msra.mxu0 0.0
    %2276 = vmatprep.subr.mxu0 0.0
    %2277 = vmatpush2.msra.mxu0 0.0
    %2278 = vmatprep.subr.mxu0 0.0
    %2279 = vmatpush2.msra.mxu0 0.0
    %2280 = vmatprep.subr.mxu0 0.0
    %2281 = vmatpush2.msra.mxu0 0.0
    %2282 = vmatprep.subr.mxu0 0.0
    %2283 = vmatpush2.msra.mxu0 0.0
    %2284 = vmatprep.subr.mxu0 0.0
    %2285 = vmatpush2.msra.mxu0 0.0
    %2286 = vmatprep.subr.mxu0 0.0
    %2287 = vmatpush2.msra.mxu0 0.0
    %2288 = vmatprep.subr.mxu0 0.0
    %2289 = vmatpush2.msra.mxu0 0.0
    %2290 = vmatprep.mubr.f32.mxu0 0.0
    %2291 = vmatmul.mubr.f32.gmra.mxu0 0.0
    %v2292 = vpop.f32.mrf.mxu0
    %v2293 = vadd.f32 0.0, %v2292
    %v2294 = vpop.f32.mrf.mxu0
    %v2295 = vadd.f32 0.0, %v2294
    %2296 = vdwg.mxu0
    %2297 = vmatprep.subr.mxu0 %v2221
    %2298 = vmatpush1.msra.mxu0 %v2220
    %2299 = vmatprep.subr.mxu0 %v2217
    %2300 = vmatpush1.msra.mxu0 %v2216
    %2301 = vmatprep.subr.mxu0 %v2213
    %2302 = vmatpush1.msra.mxu0 %v2212
    %2303 = vmatprep.subr.mxu0 %v2209
    %2304 = vmatpush1.msra.mxu0 %v2208
    %2305 = vmatprep.subr.mxu0 %v2205
    %2306 = vmatpush1.msra.mxu0 %v2204
    %2307 = vmatprep.subr.mxu0 %v2201
    %2308 = vmatpush1.msra.mxu0 %v2200
    %2309 = vmatprep.subr.mxu0 %v2197
    %2310 = vmatpush1.msra.mxu0 %v2196
    %2311 = vmatprep.subr.mxu0 %v2193
    %2312 = vmatpush1.msra.mxu0 %v2192
    %2313 = vmatprep.subr.mxu0 %v2189
    %2314 = vmatpush1.msra.mxu0 %v2188
    %2315 = vmatprep.subr.mxu0 %v2185
    %2316 = vmatpush1.msra.mxu0 %v2184
    %2317 = vmatprep.subr.mxu0 %v2181
    %2318 = vmatpush1.msra.mxu0 %v2180
    %2319 = vmatprep.subr.mxu0 %v2177
    %2320 = vmatpush1.msra.mxu0 %v2176
    %2321 = vmatprep.subr.mxu0 %v2173
    %2322 = vmatpush1.msra.mxu0 %v2172
    %2323 = vmatprep.subr.mxu0 %v2169
    %2324 = vmatpush1.msra.mxu0 %v2168
    %2325 = vmatprep.subr.mxu0 %v2165
    %2326 = vmatpush1.msra.mxu0 %v2164
    %2327 = vmatprep.subr.mxu0 %v2161
    %2328 = vmatpush1.msra.mxu0 %v2160
    %2329 = vmatprep.subr.mxu0 0.0
    %2330 = vmatpush2.msra.mxu0 0.0
    %2331 = vmatprep.subr.mxu0 0.0
    %2332 = vmatpush2.msra.mxu0 0.0
    %2333 = vmatprep.subr.mxu0 0.0
    %2334 = vmatpush2.msra.mxu0 0.0
    %2335 = vmatprep.subr.mxu0 0.0
    %2336 = vmatpush2.msra.mxu0 0.0
    %2337 = vmatprep.subr.mxu0 0.0
    %2338 = vmatpush2.msra.mxu0 0.0
    %2339 = vmatprep.subr.mxu0 0.0
    %2340 = vmatpush2.msra.mxu0 0.0
    %2341 = vmatprep.subr.mxu0 0.0
    %2342 = vmatpush2.msra.mxu0 0.0
    %2343 = vmatprep.subr.mxu0 0.0
    %2344 = vmatpush2.msra.mxu0 0.0
    %2345 = vmatprep.subr.mxu0 0.0
    %2346 = vmatpush2.msra.mxu0 0.0
    %2347 = vmatprep.subr.mxu0 0.0
    %2348 = vmatpush2.msra.mxu0 0.0
    %2349 = vmatprep.subr.mxu0 0.0
    %2350 = vmatpush2.msra.mxu0 0.0
    %2351 = vmatprep.subr.mxu0 0.0
    %2352 = vmatpush2.msra.mxu0 0.0
    %2353 = vmatprep.subr.mxu0 0.0
    %2354 = vmatpush2.msra.mxu0 0.0
    %2355 = vmatprep.subr.mxu0 0.0
    %2356 = vmatpush2.msra.mxu0 0.0
    %2357 = vmatprep.subr.mxu0 0.0
    %2358 = vmatpush2.msra.mxu0 0.0
    %2359 = vmatprep.subr.mxu0 0.0
    %2360 = vmatpush2.msra.mxu0 0.0
    %2361 = vmatprep.mubr.f32.mxu0 0.0
    %2362 = vmatmul.mubr.f32.gmra.mxu0 0.0
    %v2363 = vpop.f32.mrf.mxu0
    %v2364 = vadd.f32 0.0, %v2363
    %v2365 = vpop.f32.mrf.mxu0
    %v2366 = vadd.f32 0.0, %v2365
    %2367 = vdwg.mxu0
    %v2368 = vadd.f32 %v2222, %v2293
    %v2369 = vadd.f32 %v2223, %v2295
    %v2370 = vadd.f32 %v2224, %v2364
    %v2371 = vadd.f32 %v2225, %v2366
    %v2372 = vsub.f32 0.0, %v2368
    %v2373 = vsub.f32 0.0, %v2369
    %v2374 = vsub.f32 0.0, %v2370
    %v2375 = vmul.f32 %v2372, 1.442695
    %v2376 = vpow.pop %v2375
    %v2377 = vmul.f32 %v2373, 1.442695
    %v2378 = vpow.pop %v2377
    %v2379 = vmul.f32 %v2374, 1.442695
    %v2380 = vpow.pop %v2379
    %v2381 = vadd.f32 %v2376, 1.0
    %v2382 = vadd.f32 %v2378, 1.0
    %v2383 = vadd.f32 %v2380, 1.0
    %v2384 = vrcp.pop %v2381
    %v2385 = vrcp.pop %v2382
    %v2386 = vrcp.pop %v2383
    %v2387 = vtanh.pop %v2371
    %v2388 = vmul.f32 %v2385, 0.0
    %v2389 = vmul.f32 %v2384, %v2387
    %v2390 = vadd.f32 %v2388, %v2389
    %v2391 = vtanh.pop %v2390
    %v2392 = vmul.f32 %v2386, %v2391
    %v2393 = vld [vmem:[#allocation2 + $0x20] sm:$0xff]
    %v2394 = vld [vmem:[#allocation2 + $0x28] sm:$0xff]
    %v2395 = vld [vmem:[#allocation2 + $0x30] sm:$0xff]
    %v2396 = vld [vmem:[#allocation2 + $0x38] sm:$0xff]
    %2397 = vmatprep.subr.mxu0 %v2219
    %2398 = vmatpush1.msra.mxu0 %v2218
    %2399 = vmatprep.subr.mxu0 %v2215
    %2400 = vmatpush1.msra.mxu0 %v2214
    %2401 = vmatprep.subr.mxu0 %v2211
    %2402 = vmatpush1.msra.mxu0 %v2210
    %2403 = vmatprep.subr.mxu0 %v2207
    %2404 = vmatpush1.msra.mxu0 %v2206
    %2405 = vmatprep.subr.mxu0 %v2203
    %2406 = vmatpush1.msra.mxu0 %v2202
    %2407 = vmatprep.subr.mxu0 %v2199
    %2408 = vmatpush1.msra.mxu0 %v2198
    %2409 = vmatprep.subr.mxu0 %v2195
    %2410 = vmatpush1.msra.mxu0 %v2194
    %2411 = vmatprep.subr.mxu0 %v2191
    %2412 = vmatpush1.msra.mxu0 %v2190
    %2413 = vmatprep.subr.mxu0 %v2187
    %2414 = vmatpush1.msra.mxu0 %v2186
    %2415 = vmatprep.subr.mxu0 %v2183
    %2416 = vmatpush1.msra.mxu0 %v2182
    %2417 = vmatprep.subr.mxu0 %v2179
    %2418 = vmatpush1.msra.mxu0 %v2178
    %2419 = vmatprep.subr.mxu0 %v2175
    %2420 = vmatpush1.msra.mxu0 %v2174
    %2421 = vmatprep.subr.mxu0 %v2171
    %2422 = vmatpush1.msra.mxu0 %v2170
    %2423 = vmatprep.subr.mxu0 %v2167
    %2424 = vmatpush1.msra.mxu0 %v2166
    %2425 = vmatprep.subr.mxu0 %v2163
    %2426 = vmatpush1.msra.mxu0 %v2162
    %2427 = vmatprep.subr.mxu0 %v2159
    %2428 = vmatpush1.msra.mxu0 %v2158
    %2429 = vmatprep.subr.mxu0 0.0
    %2430 = vmatpush2.msra.mxu0 0.0
    %2431 = vmatprep.subr.mxu0 0.0
    %2432 = vmatpush2.msra.mxu0 0.0
    %2433 = vmatprep.subr.mxu0 0.0
    %2434 = vmatpush2.msra.mxu0 0.0
    %2435 = vmatprep.subr.mxu0 0.0
    %2436 = vmatpush2.msra.mxu0 0.0
    %2437 = vmatprep.subr.mxu0 0.0
    %2438 = vmatpush2.msra.mxu0 0.0
    %2439 = vmatprep.subr.mxu0 0.0
    %2440 = vmatpush2.msra.mxu0 0.0
    %2441 = vmatprep.subr.mxu0 0.0
    %2442 = vmatpush2.msra.mxu0 0.0
    %2443 = vmatprep.subr.mxu0 0.0
    %2444 = vmatpush2.msra.mxu0 0.0
    %2445 = vmatprep.subr.mxu0 0.0
    %2446 = vmatpush2.msra.mxu0 0.0
    %2447 = vmatprep.subr.mxu0 0.0
    %2448 = vmatpush2.msra.mxu0 0.0
    %2449 = vmatprep.subr.mxu0 0.0
    %2450 = vmatpush2.msra.mxu0 0.0
    %2451 = vmatprep.subr.mxu0 0.0
    %2452 = vmatpush2.msra.mxu0 0.0
    %2453 = vmatprep.subr.mxu0 0.0
    %2454 = vmatpush2.msra.mxu0 0.0
    %2455 = vmatprep.subr.mxu0 0.0
    %2456 = vmatpush2.msra.mxu0 0.0
    %2457 = vmatprep.subr.mxu0 0.0
    %2458 = vmatpush2.msra.mxu0 0.0
    %2459 = vmatprep.subr.mxu0 0.0
    %2460 = vmatpush2.msra.mxu0 0.0
    %2461 = vmatprep.mubr.f32.mxu0 0.0
    %2462 = vmatmul.mubr.f32.gmra.mxu0 %v2392
    %v2463 = vpop.f32.mrf.mxu0
    %v2464 = vadd.f32 0.0, %v2463
    %v2465 = vpop.f32.mrf.mxu0
    %v2466 = vadd.f32 0.0, %v2465
    %2467 = vdwg.mxu0
    %2468 = vmatprep.subr.mxu0 %v2221
    %2469 = vmatpush1.msra.mxu0 %v2220
    %2470 = vmatprep.subr.mxu0 %v2217
    %2471 = vmatpush1.msra.mxu0 %v2216
    %2472 = vmatprep.subr.mxu0 %v2213
    %2473 = vmatpush1.msra.mxu0 %v2212
    %2474 = vmatprep.subr.mxu0 %v2209
    %2475 = vmatpush1.msra.mxu0 %v2208
    %2476 = vmatprep.subr.mxu0 %v2205
    %2477 = vmatpush1.msra.mxu0 %v2204
    %2478 = vmatprep.subr.mxu0 %v2201
    %2479 = vmatpush1.msra.mxu0 %v2200
    %2480 = vmatprep.subr.mxu0 %v2197
    %2481 = vmatpush1.msra.mxu0 %v2196
    %2482 = vmatprep.subr.mxu0 %v2193
    %2483 = vmatpush1.msra.mxu0 %v2192
    %2484 = vmatprep.subr.mxu0 %v2189
    %2485 = vmatpush1.msra.mxu0 %v2188
    %2486 = vmatprep.subr.mxu0 %v2185
    %2487 = vmatpush1.msra.mxu0 %v2184
    %2488 = vmatprep.subr.mxu0 %v2181
    %2489 = vmatpush1.msra.mxu0 %v2180
    %2490 = vmatprep.subr.mxu0 %v2177
    %2491 = vmatpush1.msra.mxu0 %v2176
    %2492 = vmatprep.subr.mxu0 %v2173
    %2493 = vmatpush1.msra.mxu0 %v2172
    %2494 = vmatprep.subr.mxu0 %v2169
    %2495 = vmatpush1.msra.mxu0 %v2168
    %2496 = vmatprep.subr.mxu0 %v2165
    %2497 = vmatpush1.msra.mxu0 %v2164
    %2498 = vmatprep.subr.mxu0 %v2161
    %2499 = vmatpush1.msra.mxu0 %v2160
    %2500 = vmatprep.subr.mxu0 0.0
    %2501 = vmatpush2.msra.mxu0 0.0
    %2502 = vmatprep.subr.mxu0 0.0
    %2503 = vmatpush2.msra.mxu0 0.0
    %2504 = vmatprep.subr.mxu0 0.0
    %2505 = vmatpush2.msra.mxu0 0.0
    %2506 = vmatprep.subr.mxu0 0.0
    %2507 = vmatpush2.msra.mxu0 0.0
    %2508 = vmatprep.subr.mxu0 0.0
    %2509 = vmatpush2.msra.mxu0 0.0
    %2510 = vmatprep.subr.mxu0 0.0
    %2511 = vmatpush2.msra.mxu0 0.0
    %2512 = vmatprep.subr.mxu0 0.0
    %2513 = vmatpush2.msra.mxu0 0.0
    %2514 = vmatprep.subr.mxu0 0.0
    %2515 = vmatpush2.msra.mxu0 0.0
    %2516 = vmatprep.subr.mxu0 0.0
    %2517 = vmatpush2.msra.mxu0 0.0
    %2518 = vmatprep.subr.mxu0 0.0
    %2519 = vmatpush2.msra.mxu0 0.0
    %2520 = vmatprep.subr.mxu0 0.0
    %2521 = vmatpush2.msra.mxu0 0.0
    %2522 = vmatprep.subr.mxu0 0.0
    %2523 = vmatpush2.msra.mxu0 0.0
    %2524 = vmatprep.subr.mxu0 0.0
    %2525 = vmatpush2.msra.mxu0 0.0
    %2526 = vmatprep.subr.mxu0 0.0
    %2527 = vmatpush2.msra.mxu0 0.0
    %2528 = vmatprep.subr.mxu0 0.0
    %2529 = vmatpush2.msra.mxu0 0.0
    %2530 = vmatprep.subr.mxu0 0.0
    %2531 = vmatpush2.msra.mxu0 0.0
    %2532 = vmatprep.mubr.f32.mxu0 0.0
    %2533 = vmatmul.mubr.f32.gmra.mxu0 %v2392
    %v2534 = vpop.f32.mrf.mxu0
    %v2535 = vadd.f32 0.0, %v2534
    %v2536 = vpop.f32.mrf.mxu0
    %v2537 = vadd.f32 0.0, %v2536
    %2538 = vdwg.mxu0
    %v2539 = vadd.f32 %v2393, %v2464
    %v2540 = vadd.f32 %v2394, %v2466
    %v2541 = vadd.f32 %v2395, %v2535
    %v2542 = vadd.f32 %v2396, %v2537
    %v2543 = vsub.f32 0.0, %v2539
    %v2544 = vsub.f32 0.0, %v2540
    %v2545 = vsub.f32 0.0, %v2541
    %v2546 = vmul.f32 %v2543, 1.442695
    %v2547 = vpow.pop %v2546
    %v2548 = vmul.f32 %v2544, 1.442695
    %v2549 = vpow.pop %v2548
    %v2550 = vmul.f32 %v2545, 1.442695
    %v2551 = vpow.pop %v2550
    %v2552 = vadd.f32 %v2547, 1.0
    %v2553 = vadd.f32 %v2549, 1.0
    %v2554 = vadd.f32 %v2551, 1.0
    %v2555 = vrcp.pop %v2552
    %v2556 = vrcp.pop %v2553
    %v2557 = vrcp.pop %v2554
    %v2558 = vtanh.pop %v2542
    %v2559 = vmul.f32 %v2556, %v2390
    %v2560 = vmul.f32 %v2555, %v2558
    %v2561 = vadd.f32 %v2559, %v2560
    %v2562 = vtanh.pop %v2561
    %v2563 = vmul.f32 %v2557, %v2562
    %v2564 = vld [vmem:[#allocation2 + $0x40] sm:$0xff]
    %v2565 = vld [vmem:[#allocation2 + $0x48] sm:$0xff]
    %v2566 = vld [vmem:[#allocation2 + $0x50] sm:$0xff]
    %v2567 = vld [vmem:[#allocation2 + $0x58] sm:$0xff]
    %2568 = vmatprep.subr.mxu0 %v2219
    %2569 = vmatpush1.msra.mxu0 %v2218
    %2570 = vmatprep.subr.mxu0 %v2215
    %2571 = vmatpush1.msra.mxu0 %v2214
    %2572 = vmatprep.subr.mxu0 %v2211
    %2573 = vmatpush1.msra.mxu0 %v2210
    %2574 = vmatprep.subr.mxu0 %v2207
    %2575 = vmatpush1.msra.mxu0 %v2206
    %2576 = vmatprep.subr.mxu0 %v2203
    %2577 = vmatpush1.msra.mxu0 %v2202
    %2578 = vmatprep.subr.mxu0 %v2199
    %2579 = vmatpush1.msra.mxu0 %v2198
    %2580 = vmatprep.subr.mxu0 %v2195
    %2581 = vmatpush1.msra.mxu0 %v2194
    %2582 = vmatprep.subr.mxu0 %v2191
    %2583 = vmatpush1.msra.mxu0 %v2190
    %2584 = vmatprep.subr.mxu0 %v2187
    %2585 = vmatpush1.msra.mxu0 %v2186
    %2586 = vmatprep.subr.mxu0 %v2183
    %2587 = vmatpush1.msra.mxu0 %v2182
    %2588 = vmatprep.subr.mxu0 %v2179
    %2589 = vmatpush1.msra.mxu0 %v2178
    %2590 = vmatprep.subr.mxu0 %v2175
    %2591 = vmatpush1.msra.mxu0 %v2174
    %2592 = vmatprep.subr.mxu0 %v2171
    %2593 = vmatpush1.msra.mxu0 %v2170
    %2594 = vmatprep.subr.mxu0 %v2167
    %2595 = vmatpush1.msra.mxu0 %v2166
    %2596 = vmatprep.subr.mxu0 %v2163
    %2597 = vmatpush1.msra.mxu0 %v2162
    %2598 = vmatprep.subr.mxu0 %v2159
    %2599 = vmatpush1.msra.mxu0 %v2158
    %2600 = vmatprep.subr.mxu0 0.0
    %2601 = vmatpush2.msra.mxu0 0.0
    %2602 = vmatprep.subr.mxu0 0.0
    %2603 = vmatpush2.msra.mxu0 0.0
    %2604 = vmatprep.subr.mxu0 0.0
    %2605 = vmatpush2.msra.mxu0 0.0
    %2606 = vmatprep.subr.mxu0 0.0
    %2607 = vmatpush2.msra.mxu0 0.0
    %2608 = vmatprep.subr.mxu0 0.0
    %2609 = vmatpush2.msra.mxu0 0.0
    %2610 = vmatprep.subr.mxu0 0.0
    %2611 = vmatpush2.msra.mxu0 0.0
    %2612 = vmatprep.subr.mxu0 0.0
    %2613 = vmatpush2.msra.mxu0 0.0
    %2614 = vmatprep.subr.mxu0 0.0
    %2615 = vmatpush2.msra.mxu0 0.0
    %2616 = vmatprep.subr.mxu0 0.0
    %2617 = vmatpush2.msra.mxu0 0.0
    %2618 = vmatprep.subr.mxu0 0.0
    %2619 = vmatpush2.msra.mxu0 0.0
    %2620 = vmatprep.subr.mxu0 0.0
    %2621 = vmatpush2.msra.mxu0 0.0
    %2622 = vmatprep.subr.mxu0 0.0
    %2623 = vmatpush2.msra.mxu0 0.0
    %2624 = vmatprep.subr.mxu0 0.0
    %2625 = vmatpush2.msra.mxu0 0.0
    %2626 = vmatprep.subr.mxu0 0.0
    %2627 = vmatpush2.msra.mxu0 0.0
    %2628 = vmatprep.subr.mxu0 0.0
    %2629 = vmatpush2.msra.mxu0 0.0
    %2630 = vmatprep.subr.mxu0 0.0
    %2631 = vmatpush2.msra.mxu0 0.0
    %2632 = vmatprep.mubr.f32.mxu0 0.0
    %2633 = vmatmul.mubr.f32.gmra.mxu0 %v2563
    %v2634 = vpop.f32.mrf.mxu0
    %v2635 = vadd.f32 0.0, %v2634
    %v2636 = vpop.f32.mrf.mxu0
    %v2637 = vadd.f32 0.0, %v2636
    %2638 = vdwg.mxu0
    %2639 = vmatprep.subr.mxu0 %v2221
    %2640 = vmatpush1.msra.mxu0 %v2220
    %2641 = vmatprep.subr.mxu0 %v2217
    %2642 = vmatpush1.msra.mxu0 %v2216
    %2643 = vmatprep.subr.mxu0 %v2213
    %2644 = vmatpush1.msra.mxu0 %v2212
    %2645 = vmatprep.subr.mxu0 %v2209
    %2646 = vmatpush1.msra.mxu0 %v2208
    %2647 = vmatprep.subr.mxu0 %v2205
    %2648 = vmatpush1.msra.mxu0 %v2204
    %2649 = vmatprep.subr.mxu0 %v2201
    %2650 = vmatpush1.msra.mxu0 %v2200
    %2651 = vmatprep.subr.mxu0 %v2197
    %2652 = vmatpush1.msra.mxu0 %v2196
    %2653 = vmatprep.subr.mxu0 %v2193
    %2654 = vmatpush1.msra.mxu0 %v2192
    %2655 = vmatprep.subr.mxu0 %v2189
    %2656 = vmatpush1.msra.mxu0 %v2188
    %2657 = vmatprep.subr.mxu0 %v2185
    %2658 = vmatpush1.msra.mxu0 %v2184
    %2659 = vmatprep.subr.mxu0 %v2181
    %2660 = vmatpush1.msra.mxu0 %v2180
    %2661 = vmatprep.subr.mxu0 %v2177
    %2662 = vmatpush1.msra.mxu0 %v2176
    %2663 = vmatprep.subr.mxu0 %v2173
    %2664 = vmatpush1.msra.mxu0 %v2172
    %2665 = vmatprep.subr.mxu0 %v2169
    %2666 = vmatpush1.msra.mxu0 %v2168
    %2667 = vmatprep.subr.mxu0 %v2165
    %2668 = vmatpush1.msra.mxu0 %v2164
    %2669 = vmatprep.subr.mxu0 %v2161
    %2670 = vmatpush1.msra.mxu0 %v2160
    %2671 = vmatprep.subr.mxu0 0.0
    %2672 = vmatpush2.msra.mxu0 0.0
    %2673 = vmatprep.subr.mxu0 0.0
    %2674 = vmatpush2.msra.mxu0 0.0
    %2675 = vmatprep.subr.mxu0 0.0
    %2676 = vmatpush2.msra.mxu0 0.0
    %2677 = vmatprep.subr.mxu0 0.0
    %2678 = vmatpush2.msra.mxu0 0.0
    %2679 = vmatprep.subr.mxu0 0.0
    %2680 = vmatpush2.msra.mxu0 0.0
    %2681 = vmatprep.subr.mxu0 0.0
    %2682 = vmatpush2.msra.mxu0 0.0
    %2683 = vmatprep.subr.mxu0 0.0
    %2684 = vmatpush2.msra.mxu0 0.0
    %2685 = vmatprep.subr.mxu0 0.0
    %2686 = vmatpush2.msra.mxu0 0.0
    %2687 = vmatprep.subr.mxu0 0.0
    %2688 = vmatpush2.msra.mxu0 0.0
    %2689 = vmatprep.subr.mxu0 0.0
    %2690 = vmatpush2.msra.mxu0 0.0
    %2691 = vmatprep.subr.mxu0 0.0
    %2692 = vmatpush2.msra.mxu0 0.0
    %2693 = vmatprep.subr.mxu0 0.0
    %2694 = vmatpush2.msra.mxu0 0.0
    %2695 = vmatprep.subr.mxu0 0.0
    %2696 = vmatpush2.msra.mxu0 0.0
    %2697 = vmatprep.subr.mxu0 0.0
    %2698 = vmatpush2.msra.mxu0 0.0
    %2699 = vmatprep.subr.mxu0 0.0
    %2700 = vmatpush2.msra.mxu0 0.0
    %2701 = vmatprep.subr.mxu0 0.0
    %2702 = vmatpush2.msra.mxu0 0.0
    %2703 = vmatprep.mubr.f32.mxu0 0.0
    %2704 = vmatmul.mubr.f32.gmra.mxu0 %v2563
    %v2705 = vpop.f32.mrf.mxu0
    %v2706 = vadd.f32 0.0, %v2705
    %v2707 = vpop.f32.mrf.mxu0
    %v2708 = vadd.f32 0.0, %v2707
    %2709 = vdwg.mxu0
    %v2710 = vadd.f32 %v2564, %v2635
    %v2711 = vadd.f32 %v2565, %v2637
    %v2712 = vadd.f32 %v2566, %v2706
    %v2713 = vadd.f32 %v2567, %v2708
    %v2714 = vsub.f32 0.0, %v2710
    %v2715 = vsub.f32 0.0, %v2711
    %v2716 = vsub.f32 0.0, %v2712
    %v2717 = vmul.f32 %v2714, 1.442695
    %v2718 = vpow.pop %v2717
    %v2719 = vmul.f32 %v2715, 1.442695
    %v2720 = vpow.pop %v2719
    %v2721 = vmul.f32 %v2716, 1.442695
    %v2722 = vpow.pop %v2721
    %v2723 = vadd.f32 %v2718, 1.0
    %v2724 = vadd.f32 %v2720, 1.0
    %v2725 = vadd.f32 %v2722, 1.0
    %v2726 = vrcp.pop %v2723
    %v2727 = vrcp.pop %v2724
    %v2728 = vrcp.pop %v2725
    %v2729 = vtanh.pop %v2713
    %v2730 = vmul.f32 %v2727, %v2561
    %v2731 = vmul.f32 %v2726, %v2729
    %v2732 = vadd.f32 %v2730, %v2731
    %v2733 = vtanh.pop %v2732
    %v2734 = vmul.f32 %v2728, %v2733
    %v2735 = vld [vmem:[#allocation2 + $0x60] sm:$0xff]
    %v2736 = vld [vmem:[#allocation2 + $0x68] sm:$0xff]
    %v2737 = vld [vmem:[#allocation2 + $0x70] sm:$0xff]
    %v2738 = vld [vmem:[#allocation2 + $0x78] sm:$0xff]
    %2739 = vmatprep.subr.mxu0 %v2219
    %2740 = vmatpush1.msra.mxu0 %v2218
    %2741 = vmatprep.subr.mxu0 %v2215
    %2742 = vmatpush1.msra.mxu0 %v2214
    %2743 = vmatprep.subr.mxu0 %v2211
    %2744 = vmatpush1.msra.mxu0 %v2210
    %2745 = vmatprep.subr.mxu0 %v2207
    %2746 = vmatpush1.msra.mxu0 %v2206
    %2747 = vmatprep.subr.mxu0 %v2203
    %2748 = vmatpush1.msra.mxu0 %v2202
    %2749 = vmatprep.subr.mxu0 %v2199
    %2750 = vmatpush1.msra.mxu0 %v2198
    %2751 = vmatprep.subr.mxu0 %v2195
    %2752 = vmatpush1.msra.mxu0 %v2194
    %2753 = vmatprep.subr.mxu0 %v2191
    %2754 = vmatpush1.msra.mxu0 %v2190
    %2755 = vmatprep.subr.mxu0 %v2187
    %2756 = vmatpush1.msra.mxu0 %v2186
    %2757 = vmatprep.subr.mxu0 %v2183
    %2758 = vmatpush1.msra.mxu0 %v2182
    %2759 = vmatprep.subr.mxu0 %v2179
    %2760 = vmatpush1.msra.mxu0 %v2178
    %2761 = vmatprep.subr.mxu0 %v2175
    %2762 = vmatpush1.msra.mxu0 %v2174
    %2763 = vmatprep.subr.mxu0 %v2171
    %2764 = vmatpush1.msra.mxu0 %v2170
    %2765 = vmatprep.subr.mxu0 %v2167
    %2766 = vmatpush1.msra.mxu0 %v2166
    %2767 = vmatprep.subr.mxu0 %v2163
    %2768 = vmatpush1.msra.mxu0 %v2162
    %2769 = vmatprep.subr.mxu0 %v2159
    %2770 = vmatpush1.msra.mxu0 %v2158
    %2771 = vmatprep.subr.mxu0 0.0
    %2772 = vmatpush2.msra.mxu0 0.0
    %2773 = vmatprep.subr.mxu0 0.0
    %2774 = vmatpush2.msra.mxu0 0.0
    %2775 = vmatprep.subr.mxu0 0.0
    %2776 = vmatpush2.msra.mxu0 0.0
    %2777 = vmatprep.subr.mxu0 0.0
    %2778 = vmatpush2.msra.mxu0 0.0
    %2779 = vmatprep.subr.mxu0 0.0
    %2780 = vmatpush2.msra.mxu0 0.0
    %2781 = vmatprep.subr.mxu0 0.0
    %2782 = vmatpush2.msra.mxu0 0.0
    %2783 = vmatprep.subr.mxu0 0.0
    %2784 = vmatpush2.msra.mxu0 0.0
    %2785 = vmatprep.subr.mxu0 0.0
    %2786 = vmatpush2.msra.mxu0 0.0
    %2787 = vmatprep.subr.mxu0 0.0
    %2788 = vmatpush2.msra.mxu0 0.0
    %2789 = vmatprep.subr.mxu0 0.0
    %2790 = vmatpush2.msra.mxu0 0.0
    %2791 = vmatprep.subr.mxu0 0.0
    %2792 = vmatpush2.msra.mxu0 0.0
    %2793 = vmatprep.subr.mxu0 0.0
    %2794 = vmatpush2.msra.mxu0 0.0
    %2795 = vmatprep.subr.mxu0 0.0
    %2796 = vmatpush2.msra.mxu0 0.0
    %2797 = vmatprep.subr.mxu0 0.0
    %2798 = vmatpush2.msra.mxu0 0.0
    %2799 = vmatprep.subr.mxu0 0.0
    %2800 = vmatpush2.msra.mxu0 0.0
    %2801 = vmatprep.subr.mxu0 0.0
    %2802 = vmatpush2.msra.mxu0 0.0
    %2803 = vmatprep.mubr.f32.mxu0 0.0
    %2804 = vmatmul.mubr.f32.gmra.mxu0 %v2734
    %v2805 = vpop.f32.mrf.mxu0
    %v2806 = vadd.f32 0.0, %v2805
    %v2807 = vpop.f32.mrf.mxu0
    %v2808 = vadd.f32 0.0, %v2807
    %2809 = vdwg.mxu0
    %2810 = vmatprep.subr.mxu0 %v2221
    %2811 = vmatpush1.msra.mxu0 %v2220
    %2812 = vmatprep.subr.mxu0 %v2217
    %2813 = vmatpush1.msra.mxu0 %v2216
    %2814 = vmatprep.subr.mxu0 %v2213
    %2815 = vmatpush1.msra.mxu0 %v2212
    %2816 = vmatprep.subr.mxu0 %v2209
    %2817 = vmatpush1.msra.mxu0 %v2208
    %2818 = vmatprep.subr.mxu0 %v2205
    %2819 = vmatpush1.msra.mxu0 %v2204
    %2820 = vmatprep.subr.mxu0 %v2201
    %2821 = vmatpush1.msra.mxu0 %v2200
    %2822 = vmatprep.subr.mxu0 %v2197
    %2823 = vmatpush1.msra.mxu0 %v2196
    %2824 = vmatprep.subr.mxu0 %v2193
    %2825 = vmatpush1.msra.mxu0 %v2192
    %2826 = vmatprep.subr.mxu0 %v2189
    %2827 = vmatpush1.msra.mxu0 %v2188
    %2828 = vmatprep.subr.mxu0 %v2185
    %2829 = vmatpush1.msra.mxu0 %v2184
    %2830 = vmatprep.subr.mxu0 %v2181
    %2831 = vmatpush1.msra.mxu0 %v2180
    %2832 = vmatprep.subr.mxu0 %v2177
    %2833 = vmatpush1.msra.mxu0 %v2176
    %2834 = vmatprep.subr.mxu0 %v2173
    %2835 = vmatpush1.msra.mxu0 %v2172
    %2836 = vmatprep.subr.mxu0 %v2169
    %2837 = vmatpush1.msra.mxu0 %v2168
    %2838 = vmatprep.subr.mxu0 %v2165
    %2839 = vmatpush1.msra.mxu0 %v2164
    %2840 = vmatprep.subr.mxu0 %v2161
    %2841 = vmatpush1.msra.mxu0 %v2160
    %2842 = vmatprep.subr.mxu0 0.0
    %2843 = vmatpush2.msra.mxu0 0.0
    %2844 = vmatprep.subr.mxu0 0.0
    %2845 = vmatpush2.msra.mxu0 0.0
    %2846 = vmatprep.subr.mxu0 0.0
    %2847 = vmatpush2.msra.mxu0 0.0
    %2848 = vmatprep.subr.mxu0 0.0
    %2849 = vmatpush2.msra.mxu0 0.0
    %2850 = vmatprep.subr.mxu0 0.0
    %2851 = vmatpush2.msra.mxu0 0.0
    %2852 = vmatprep.subr.mxu0 0.0
    %2853 = vmatpush2.msra.mxu0 0.0
    %2854 = vmatprep.subr.mxu0 0.0
    %2855 = vmatpush2.msra.mxu0 0.0
    %2856 = vmatprep.subr.mxu0 0.0
    %2857 = vmatpush2.msra.mxu0 0.0
    %2858 = vmatprep.subr.mxu0 0.0
    %2859 = vmatpush2.msra.mxu0 0.0
    %2860 = vmatprep.subr.mxu0 0.0
    %2861 = vmatpush2.msra.mxu0 0.0
    %2862 = vmatprep.subr.mxu0 0.0
    %2863 = vmatpush2.msra.mxu0 0.0
    %2864 = vmatprep.subr.mxu0 0.0
    %2865 = vmatpush2.msra.mxu0 0.0
    %2866 = vmatprep.subr.mxu0 0.0
    %2867 = vmatpush2.msra.mxu0 0.0
    %2868 = vmatprep.subr.mxu0 0.0
    %2869 = vmatpush2.msra.mxu0 0.0
    %2870 = vmatprep.subr.mxu0 0.0
    %2871 = vmatpush2.msra.mxu0 0.0
    %2872 = vmatprep.subr.mxu0 0.0
    %2873 = vmatpush2.msra.mxu0 0.0
    %2874 = vmatprep.mubr.f32.mxu0 0.0
    %2875 = vmatmul.mubr.f32.gmra.mxu0 %v2734
    %v2876 = vpop.f32.mrf.mxu0
    %v2877 = vadd.f32 0.0, %v2876
    %v2878 = vpop.f32.mrf.mxu0
    %v2879 = vadd.f32 0.0, %v2878
    %2880 = vdwg.mxu0
    %v2881 = vadd.f32 %v2735, %v2806
    %v2882 = vadd.f32 %v2736, %v2808
    %v2883 = vadd.f32 %v2737, %v2877
    %v2884 = vadd.f32 %v2738, %v2879
    %v2885 = vsub.f32 0.0, %v2881
    %v2886 = vsub.f32 0.0, %v2882
    %v2887 = vsub.f32 0.0, %v2883
    %v2888 = vmul.f32 %v2885, 1.442695
    %v2889 = vpow.pop %v2888
    %v2890 = vmul.f32 %v2886, 1.442695
    %v2891 = vpow.pop %v2890
    %v2892 = vmul.f32 %v2887, 1.442695
    %v2893 = vpow.pop %v2892
    %v2894 = vadd.f32 %v2889, 1.0
    %v2895 = vadd.f32 %v2891, 1.0
    %v2896 = vadd.f32 %v2893, 1.0
    %v2897 = vrcp.pop %v2894
    %v2898 = vrcp.pop %v2895
    %v2899 = vrcp.pop %v2896
    %v2900 = vtanh.pop %v2884
    %v2901 = vmul.f32 %v2898, %v2732
    %v2902 = vmul.f32 %v2897, %v2900
    %v2903 = vadd.f32 %v2901, %v2902
    %v2904 = vtanh.pop %v2903
    %v2905 = vmul.f32 %v2899, %v2904
    %v2906 = vld [vmem:[#allocation2 + $0x80] sm:$0xff]
    %v2907 = vld [vmem:[#allocation2 + $0x88] sm:$0xff]
    %v2908 = vld [vmem:[#allocation2 + $0x90] sm:$0xff]
    %v2909 = vld [vmem:[#allocation2 + $0x98] sm:$0xff]
    %2910 = vmatprep.subr.mxu0 %v2219
    %2911 = vmatpush1.msra.mxu0 %v2218
    %2912 = vmatprep.subr.mxu0 %v2215
    %2913 = vmatpush1.msra.mxu0 %v2214
    %2914 = vmatprep.subr.mxu0 %v2211
    %2915 = vmatpush1.msra.mxu0 %v2210
    %2916 = vmatprep.subr.mxu0 %v2207
    %2917 = vmatpush1.msra.mxu0 %v2206
    %2918 = vmatprep.subr.mxu0 %v2203
    %2919 = vmatpush1.msra.mxu0 %v2202
    %2920 = vmatprep.subr.mxu0 %v2199
    %2921 = vmatpush1.msra.mxu0 %v2198
    %2922 = vmatprep.subr.mxu0 %v2195
    %2923 = vmatpush1.msra.mxu0 %v2194
    %2924 = vmatprep.subr.mxu0 %v2191
    %2925 = vmatpush1.msra.mxu0 %v2190
    %2926 = vmatprep.subr.mxu0 %v2187
    %2927 = vmatpush1.msra.mxu0 %v2186
    %2928 = vmatprep.subr.mxu0 %v2183
    %2929 = vmatpush1.msra.mxu0 %v2182
    %2930 = vmatprep.subr.mxu0 %v2179
    %2931 = vmatpush1.msra.mxu0 %v2178
    %2932 = vmatprep.subr.mxu0 %v2175
    %2933 = vmatpush1.msra.mxu0 %v2174
    %2934 = vmatprep.subr.mxu0 %v2171
    %2935 = vmatpush1.msra.mxu0 %v2170
    %2936 = vmatprep.subr.mxu0 %v2167
    %2937 = vmatpush1.msra.mxu0 %v2166
    %2938 = vmatprep.subr.mxu0 %v2163
    %2939 = vmatpush1.msra.mxu0 %v2162
    %2940 = vmatprep.subr.mxu0 %v2159
    %2941 = vmatpush1.msra.mxu0 %v2158
    %2942 = vmatprep.subr.mxu0 0.0
    %2943 = vmatpush2.msra.mxu0 0.0
    %2944 = vmatprep.subr.mxu0 0.0
    %2945 = vmatpush2.msra.mxu0 0.0
    %2946 = vmatprep.subr.mxu0 0.0
    %2947 = vmatpush2.msra.mxu0 0.0
    %2948 = vmatprep.subr.mxu0 0.0
    %2949 = vmatpush2.msra.mxu0 0.0
    %2950 = vmatprep.subr.mxu0 0.0
    %2951 = vmatpush2.msra.mxu0 0.0
    %2952 = vmatprep.subr.mxu0 0.0
    %2953 = vmatpush2.msra.mxu0 0.0
    %2954 = vmatprep.subr.mxu0 0.0
    %2955 = vmatpush2.msra.mxu0 0.0
    %2956 = vmatprep.subr.mxu0 0.0
    %2957 = vmatpush2.msra.mxu0 0.0
    %2958 = vmatprep.subr.mxu0 0.0
    %2959 = vmatpush2.msra.mxu0 0.0
    %2960 = vmatprep.subr.mxu0 0.0
    %2961 = vmatpush2.msra.mxu0 0.0
    %2962 = vmatprep.subr.mxu0 0.0
    %2963 = vmatpush2.msra.mxu0 0.0
    %2964 = vmatprep.subr.mxu0 0.0
    %2965 = vmatpush2.msra.mxu0 0.0
    %2966 = vmatprep.subr.mxu0 0.0
    %2967 = vmatpush2.msra.mxu0 0.0
    %2968 = vmatprep.subr.mxu0 0.0
    %2969 = vmatpush2.msra.mxu0 0.0
    %2970 = vmatprep.subr.mxu0 0.0
    %2971 = vmatpush2.msra.mxu0 0.0
    %2972 = vmatprep.subr.mxu0 0.0
    %2973 = vmatpush2.msra.mxu0 0.0
    %2974 = vmatprep.mubr.f32.mxu0 0.0
    %2975 = vmatmul.mubr.f32.gmra.mxu0 %v2905
    %v2976 = vpop.f32.mrf.mxu0
    %v2977 = vadd.f32 0.0, %v2976
    %v2978 = vpop.f32.mrf.mxu0
    %v2979 = vadd.f32 0.0, %v2978
    %2980 = vdwg.mxu0
    %2981 = vmatprep.subr.mxu0 %v2221
    %2982 = vmatpush1.msra.mxu0 %v2220
    %2983 = vmatprep.subr.mxu0 %v2217
    %2984 = vmatpush1.msra.mxu0 %v2216
    %2985 = vmatprep.subr.mxu0 %v2213
    %2986 = vmatpush1.msra.mxu0 %v2212
    %2987 = vmatprep.subr.mxu0 %v2209
    %2988 = vmatpush1.msra.mxu0 %v2208
    %2989 = vmatprep.subr.mxu0 %v2205
    %2990 = vmatpush1.msra.mxu0 %v2204
    %2991 = vmatprep.subr.mxu0 %v2201
    %2992 = vmatpush1.msra.mxu0 %v2200
    %2993 = vmatprep.subr.mxu0 %v2197
    %2994 = vmatpush1.msra.mxu0 %v2196
    %2995 = vmatprep.subr.mxu0 %v2193
    %2996 = vmatpush1.msra.mxu0 %v2192
    %2997 = vmatprep.subr.mxu0 %v2189
    %2998 = vmatpush1.msra.mxu0 %v2188
    %2999 = vmatprep.subr.mxu0 %v2185
    %3000 = vmatpush1.msra.mxu0 %v2184
    %3001 = vmatprep.subr.mxu0 %v2181
    %3002 = vmatpush1.msra.mxu0 %v2180
    %3003 = vmatprep.subr.mxu0 %v2177
    %3004 = vmatpush1.msra.mxu0 %v2176
    %3005 = vmatprep.subr.mxu0 %v2173
    %3006 = vmatpush1.msra.mxu0 %v2172
    %3007 = vmatprep.subr.mxu0 %v2169
    %3008 = vmatpush1.msra.mxu0 %v2168
    %3009 = vmatprep.subr.mxu0 %v2165
    %3010 = vmatpush1.msra.mxu0 %v2164
    %3011 = vmatprep.subr.mxu0 %v2161
    %3012 = vmatpush1.msra.mxu0 %v2160
    %3013 = vmatprep.subr.mxu0 0.0
    %3014 = vmatpush2.msra.mxu0 0.0
    %3015 = vmatprep.subr.mxu0 0.0
    %3016 = vmatpush2.msra.mxu0 0.0
    %3017 = vmatprep.subr.mxu0 0.0
    %3018 = vmatpush2.msra.mxu0 0.0
    %3019 = vmatprep.subr.mxu0 0.0
    %3020 = vmatpush2.msra.mxu0 0.0
    %3021 = vmatprep.subr.mxu0 0.0
    %3022 = vmatpush2.msra.mxu0 0.0
    %3023 = vmatprep.subr.mxu0 0.0
    %3024 = vmatpush2.msra.mxu0 0.0
    %3025 = vmatprep.subr.mxu0 0.0
    %3026 = vmatpush2.msra.mxu0 0.0
    %3027 = vmatprep.subr.mxu0 0.0
    %3028 = vmatpush2.msra.mxu0 0.0
    %3029 = vmatprep.subr.mxu0 0.0
    %3030 = vmatpush2.msra.mxu0 0.0
    %3031 = vmatprep.subr.mxu0 0.0
    %3032 = vmatpush2.msra.mxu0 0.0
    %3033 = vmatprep.subr.mxu0 0.0
    %3034 = vmatpush2.msra.mxu0 0.0
    %3035 = vmatprep.subr.mxu0 0.0
    %3036 = vmatpush2.msra.mxu0 0.0
    %3037 = vmatprep.subr.mxu0 0.0
    %3038 = vmatpush2.msra.mxu0 0.0
    %3039 = vmatprep.subr.mxu0 0.0
    %3040 = vmatpush2.msra.mxu0 0.0
    %3041 = vmatprep.subr.mxu0 0.0
    %3042 = vmatpush2.msra.mxu0 0.0
    %3043 = vmatprep.subr.mxu0 0.0
    %3044 = vmatpush2.msra.mxu0 0.0
    %3045 = vmatprep.mubr.f32.mxu0 0.0
    %3046 = vmatmul.mubr.f32.gmra.mxu0 %v2905
    %v3047 = vpop.f32.mrf.mxu0
    %v3048 = vadd.f32 0.0, %v3047
    %v3049 = vpop.f32.mrf.mxu0
    %v3050 = vadd.f32 0.0, %v3049
    %3051 = vdwg.mxu0
    %v3052 = vadd.f32 %v2906, %v2977
    %v3053 = vadd.f32 %v2907, %v2979
    %v3054 = vadd.f32 %v2908, %v3048
    %v3055 = vadd.f32 %v2909, %v3050
    %v3056 = vsub.f32 0.0, %v3052
    %v3057 = vsub.f32 0.0, %v3053
    %v3058 = vsub.f32 0.0, %v3054
    %v3059 = vmul.f32 %v3056, 1.442695
    %v3060 = vpow.pop %v3059
    %v3061 = vmul.f32 %v3057, 1.442695
    %v3062 = vpow.pop %v3061
    %v3063 = vmul.f32 %v3058, 1.442695
    %v3064 = vpow.pop %v3063
    %v3065 = vadd.f32 %v3060, 1.0
    %v3066 = vadd.f32 %v3062, 1.0
    %v3067 = vadd.f32 %v3064, 1.0
    %v3068 = vrcp.pop %v3065
    %v3069 = vrcp.pop %v3066
    %v3070 = vrcp.pop %v3067
    %v3071 = vtanh.pop %v3055
    %v3072 = vmul.f32 %v3069, %v2903
    %v3073 = vmul.f32 %v3068, %v3071
    %v3074 = vadd.f32 %v3072, %v3073
    %v3075 = vtanh.pop %v3074
    %v3076 = vmul.f32 %v3070, %v3075
    %v3077 = vld [vmem:[#allocation2 + $0xa0] sm:$0xff]
    %v3078 = vld [vmem:[#allocation2 + $0xa8] sm:$0xff]
    %v3079 = vld [vmem:[#allocation2 + $0xb0] sm:$0xff]
    %v3080 = vld [vmem:[#allocation2 + $0xb8] sm:$0xff]
    %3081 = vmatprep.subr.mxu0 %v2219
    %3082 = vmatpush1.msra.mxu0 %v2218
    %3083 = vmatprep.subr.mxu0 %v2215
    %3084 = vmatpush1.msra.mxu0 %v2214
    %3085 = vmatprep.subr.mxu0 %v2211
    %3086 = vmatpush1.msra.mxu0 %v2210
    %3087 = vmatprep.subr.mxu0 %v2207
    %3088 = vmatpush1.msra.mxu0 %v2206
    %3089 = vmatprep.subr.mxu0 %v2203
    %3090 = vmatpush1.msra.mxu0 %v2202
    %3091 = vmatprep.subr.mxu0 %v2199
    %3092 = vmatpush1.msra.mxu0 %v2198
    %3093 = vmatprep.subr.mxu0 %v2195
    %3094 = vmatpush1.msra.mxu0 %v2194
    %3095 = vmatprep.subr.mxu0 %v2191
    %3096 = vmatpush1.msra.mxu0 %v2190
    %3097 = vmatprep.subr.mxu0 %v2187
    %3098 = vmatpush1.msra.mxu0 %v2186
    %3099 = vmatprep.subr.mxu0 %v2183
    %3100 = vmatpush1.msra.mxu0 %v2182
    %3101 = vmatprep.subr.mxu0 %v2179
    %3102 = vmatpush1.msra.mxu0 %v2178
    %3103 = vmatprep.subr.mxu0 %v2175
    %3104 = vmatpush1.msra.mxu0 %v2174
    %3105 = vmatprep.subr.mxu0 %v2171
    %3106 = vmatpush1.msra.mxu0 %v2170
    %3107 = vmatprep.subr.mxu0 %v2167
    %3108 = vmatpush1.msra.mxu0 %v2166
    %3109 = vmatprep.subr.mxu0 %v2163
    %3110 = vmatpush1.msra.mxu0 %v2162
    %3111 = vmatprep.subr.mxu0 %v2159
    %3112 = vmatpush1.msra.mxu0 %v2158
    %3113 = vmatprep.subr.mxu0 0.0
    %3114 = vmatpush2.msra.mxu0 0.0
    %3115 = vmatprep.subr.mxu0 0.0
    %3116 = vmatpush2.msra.mxu0 0.0
    %3117 = vmatprep.subr.mxu0 0.0
    %3118 = vmatpush2.msra.mxu0 0.0
    %3119 = vmatprep.subr.mxu0 0.0
    %3120 = vmatpush2.msra.mxu0 0.0
    %3121 = vmatprep.subr.mxu0 0.0
    %3122 = vmatpush2.msra.mxu0 0.0
    %3123 = vmatprep.subr.mxu0 0.0
    %3124 = vmatpush2.msra.mxu0 0.0
    %3125 = vmatprep.subr.mxu0 0.0
    %3126 = vmatpush2.msra.mxu0 0.0
    %3127 = vmatprep.subr.mxu0 0.0
    %3128 = vmatpush2.msra.mxu0 0.0
    %3129 = vmatprep.subr.mxu0 0.0
    %3130 = vmatpush2.msra.mxu0 0.0
    %3131 = vmatprep.subr.mxu0 0.0
    %3132 = vmatpush2.msra.mxu0 0.0
    %3133 = vmatprep.subr.mxu0 0.0
    %3134 = vmatpush2.msra.mxu0 0.0
    %3135 = vmatprep.subr.mxu0 0.0
    %3136 = vmatpush2.msra.mxu0 0.0
    %3137 = vmatprep.subr.mxu0 0.0
    %3138 = vmatpush2.msra.mxu0 0.0
    %3139 = vmatprep.subr.mxu0 0.0
    %3140 = vmatpush2.msra.mxu0 0.0
    %3141 = vmatprep.subr.mxu0 0.0
    %3142 = vmatpush2.msra.mxu0 0.0
    %3143 = vmatprep.subr.mxu0 0.0
    %3144 = vmatpush2.msra.mxu0 0.0
    %3145 = vmatprep.mubr.f32.mxu0 0.0
    %3146 = vmatmul.mubr.f32.gmra.mxu0 %v3076
    %v3147 = vpop.f32.mrf.mxu0
    %v3148 = vadd.f32 0.0, %v3147
    %v3149 = vpop.f32.mrf.mxu0
    %v3150 = vadd.f32 0.0, %v3149
    %3151 = vdwg.mxu0
    %3152 = vmatprep.subr.mxu0 %v2221
    %3153 = vmatpush1.msra.mxu0 %v2220
    %3154 = vmatprep.subr.mxu0 %v2217
    %3155 = vmatpush1.msra.mxu0 %v2216
    %3156 = vmatprep.subr.mxu0 %v2213
    %3157 = vmatpush1.msra.mxu0 %v2212
    %3158 = vmatprep.subr.mxu0 %v2209
    %3159 = vmatpush1.msra.mxu0 %v2208
    %3160 = vmatprep.subr.mxu0 %v2205
    %3161 = vmatpush1.msra.mxu0 %v2204
    %3162 = vmatprep.subr.mxu0 %v2201
    %3163 = vmatpush1.msra.mxu0 %v2200
    %3164 = vmatprep.subr.mxu0 %v2197
    %3165 = vmatpush1.msra.mxu0 %v2196
    %3166 = vmatprep.subr.mxu0 %v2193
    %3167 = vmatpush1.msra.mxu0 %v2192
    %3168 = vmatprep.subr.mxu0 %v2189
    %3169 = vmatpush1.msra.mxu0 %v2188
    %3170 = vmatprep.subr.mxu0 %v2185
    %3171 = vmatpush1.msra.mxu0 %v2184
    %3172 = vmatprep.subr.mxu0 %v2181
    %3173 = vmatpush1.msra.mxu0 %v2180
    %3174 = vmatprep.subr.mxu0 %v2177
    %3175 = vmatpush1.msra.mxu0 %v2176
    %3176 = vmatprep.subr.mxu0 %v2173
    %3177 = vmatpush1.msra.mxu0 %v2172
    %3178 = vmatprep.subr.mxu0 %v2169
    %3179 = vmatpush1.msra.mxu0 %v2168
    %3180 = vmatprep.subr.mxu0 %v2165
    %3181 = vmatpush1.msra.mxu0 %v2164
    %3182 = vmatprep.subr.mxu0 %v2161
    %3183 = vmatpush1.msra.mxu0 %v2160
    %3184 = vmatprep.subr.mxu0 0.0
    %3185 = vmatpush2.msra.mxu0 0.0
    %3186 = vmatprep.subr.mxu0 0.0
    %3187 = vmatpush2.msra.mxu0 0.0
    %3188 = vmatprep.subr.mxu0 0.0
    %3189 = vmatpush2.msra.mxu0 0.0
    %3190 = vmatprep.subr.mxu0 0.0
    %3191 = vmatpush2.msra.mxu0 0.0
    %3192 = vmatprep.subr.mxu0 0.0
    %3193 = vmatpush2.msra.mxu0 0.0
    %3194 = vmatprep.subr.mxu0 0.0
    %3195 = vmatpush2.msra.mxu0 0.0
    %3196 = vmatprep.subr.mxu0 0.0
    %3197 = vmatpush2.msra.mxu0 0.0
    %3198 = vmatprep.subr.mxu0 0.0
    %3199 = vmatpush2.msra.mxu0 0.0
    %3200 = vmatprep.subr.mxu0 0.0
    %3201 = vmatpush2.msra.mxu0 0.0
    %3202 = vmatprep.subr.mxu0 0.0
    %3203 = vmatpush2.msra.mxu0 0.0
    %3204 = vmatprep.subr.mxu0 0.0
    %3205 = vmatpush2.msra.mxu0 0.0
    %3206 = vmatprep.subr.mxu0 0.0
    %3207 = vmatpush2.msra.mxu0 0.0
    %3208 = vmatprep.subr.mxu0 0.0
    %3209 = vmatpush2.msra.mxu0 0.0
    %3210 = vmatprep.subr.mxu0 0.0
    %3211 = vmatpush2.msra.mxu0 0.0
    %3212 = vmatprep.subr.mxu0 0.0
    %3213 = vmatpush2.msra.mxu0 0.0
    %3214 = vmatprep.subr.mxu0 0.0
    %3215 = vmatpush2.msra.mxu0 0.0
    %3216 = vmatprep.mubr.f32.mxu0 0.0
    %3217 = vmatmul.mubr.f32.gmra.mxu0 %v3076
    %v3218 = vpop.f32.mrf.mxu0
    %v3219 = vadd.f32 0.0, %v3218
    %v3220 = vpop.f32.mrf.mxu0
    %v3221 = vadd.f32 0.0, %v3220
    %3222 = vdwg.mxu0
    %v3223 = vadd.f32 %v3077, %v3148
    %v3224 = vadd.f32 %v3078, %v3150
    %v3225 = vadd.f32 %v3079, %v3219
    %v3226 = vadd.f32 %v3080, %v3221
    %v3227 = vsub.f32 0.0, %v3223
    %v3228 = vsub.f32 0.0, %v3224
    %v3229 = vsub.f32 0.0, %v3225
    %v3230 = vmul.f32 %v3227, 1.442695
    %v3231 = vpow.pop %v3230
    %v3232 = vmul.f32 %v3228, 1.442695
    %v3233 = vpow.pop %v3232
    %v3234 = vmul.f32 %v3229, 1.442695
    %v3235 = vpow.pop %v3234
    %v3236 = vadd.f32 %v3231, 1.0
    %v3237 = vadd.f32 %v3233, 1.0
    %v3238 = vadd.f32 %v3235, 1.0
    %v3239 = vrcp.pop %v3236
    %v3240 = vrcp.pop %v3237
    %v3241 = vrcp.pop %v3238
    %v3242 = vtanh.pop %v3226
    %v3243 = vmul.f32 %v3240, %v3074
    %v3244 = vmul.f32 %v3239, %v3242
    %v3245 = vadd.f32 %v3243, %v3244
    %v3246 = vtanh.pop %v3245
    %v3247 = vmul.f32 %v3241, %v3246
    %v3248 = vld [vmem:[#allocation2 + $0xc0] sm:$0xff]
    %v3249 = vld [vmem:[#allocation2 + $0xc8] sm:$0xff]
    %v3250 = vld [vmem:[#allocation2 + $0xd0] sm:$0xff]
    %v3251 = vld [vmem:[#allocation2 + $0xd8] sm:$0xff]
    %3252 = vmatprep.subr.mxu0 %v2219
    %3253 = vmatpush1.msra.mxu0 %v2218
    %3254 = vmatprep.subr.mxu0 %v2215
    %3255 = vmatpush1.msra.mxu0 %v2214
    %3256 = vmatprep.subr.mxu0 %v2211
    %3257 = vmatpush1.msra.mxu0 %v2210
    %3258 = vmatprep.subr.mxu0 %v2207
    %3259 = vmatpush1.msra.mxu0 %v2206
    %3260 = vmatprep.subr.mxu0 %v2203
    %3261 = vmatpush1.msra.mxu0 %v2202
    %3262 = vmatprep.subr.mxu0 %v2199
    %3263 = vmatpush1.msra.mxu0 %v2198
    %3264 = vmatprep.subr.mxu0 %v2195
    %3265 = vmatpush1.msra.mxu0 %v2194
    %3266 = vmatprep.subr.mxu0 %v2191
    %3267 = vmatpush1.msra.mxu0 %v2190
    %3268 = vmatprep.subr.mxu0 %v2187
    %3269 = vmatpush1.msra.mxu0 %v2186
    %3270 = vmatprep.subr.mxu0 %v2183
    %3271 = vmatpush1.msra.mxu0 %v2182
    %3272 = vmatprep.subr.mxu0 %v2179
    %3273 = vmatpush1.msra.mxu0 %v2178
    %3274 = vmatprep.subr.mxu0 %v2175
    %3275 = vmatpush1.msra.mxu0 %v2174
    %3276 = vmatprep.subr.mxu0 %v2171
    %3277 = vmatpush1.msra.mxu0 %v2170
    %3278 = vmatprep.subr.mxu0 %v2167
    %3279 = vmatpush1.msra.mxu0 %v2166
    %3280 = vmatprep.subr.mxu0 %v2163
    %3281 = vmatpush1.msra.mxu0 %v2162
    %3282 = vmatprep.subr.mxu0 %v2159
    %3283 = vmatpush1.msra.mxu0 %v2158
    %3284 = vmatprep.subr.mxu0 0.0
    %3285 = vmatpush2.msra.mxu0 0.0
    %3286 = vmatprep.subr.mxu0 0.0
    %3287 = vmatpush2.msra.mxu0 0.0
    %3288 = vmatprep.subr.mxu0 0.0
    %3289 = vmatpush2.msra.mxu0 0.0
    %3290 = vmatprep.subr.mxu0 0.0
    %3291 = vmatpush2.msra.mxu0 0.0
    %3292 = vmatprep.subr.mxu0 0.0
    %3293 = vmatpush2.msra.mxu0 0.0
    %3294 = vmatprep.subr.mxu0 0.0
    %3295 = vmatpush2.msra.mxu0 0.0
    %3296 = vmatprep.subr.mxu0 0.0
    %3297 = vmatpush2.msra.mxu0 0.0
    %3298 = vmatprep.subr.mxu0 0.0
    %3299 = vmatpush2.msra.mxu0 0.0
    %3300 = vmatprep.subr.mxu0 0.0
    %3301 = vmatpush2.msra.mxu0 0.0
    %3302 = vmatprep.subr.mxu0 0.0
    %3303 = vmatpush2.msra.mxu0 0.0
    %3304 = vmatprep.subr.mxu0 0.0
    %3305 = vmatpush2.msra.mxu0 0.0
    %3306 = vmatprep.subr.mxu0 0.0
    %3307 = vmatpush2.msra.mxu0 0.0
    %3308 = vmatprep.subr.mxu0 0.0
    %3309 = vmatpush2.msra.mxu0 0.0
    %3310 = vmatprep.subr.mxu0 0.0
    %3311 = vmatpush2.msra.mxu0 0.0
    %3312 = vmatprep.subr.mxu0 0.0
    %3313 = vmatpush2.msra.mxu0 0.0
    %3314 = vmatprep.subr.mxu0 0.0
    %3315 = vmatpush2.msra.mxu0 0.0
    %3316 = vmatprep.mubr.f32.mxu0 0.0
    %3317 = vmatmul.mubr.f32.gmra.mxu0 %v3247
    %v3318 = vpop.f32.mrf.mxu0
    %v3319 = vadd.f32 0.0, %v3318
    %v3320 = vpop.f32.mrf.mxu0
    %v3321 = vadd.f32 0.0, %v3320
    %3322 = vdwg.mxu0
    %3323 = vmatprep.subr.mxu0 %v2221
    %3324 = vmatpush1.msra.mxu0 %v2220
    %3325 = vmatprep.subr.mxu0 %v2217
    %3326 = vmatpush1.msra.mxu0 %v2216
    %3327 = vmatprep.subr.mxu0 %v2213
    %3328 = vmatpush1.msra.mxu0 %v2212
    %3329 = vmatprep.subr.mxu0 %v2209
    %3330 = vmatpush1.msra.mxu0 %v2208
    %3331 = vmatprep.subr.mxu0 %v2205
    %3332 = vmatpush1.msra.mxu0 %v2204
    %3333 = vmatprep.subr.mxu0 %v2201
    %3334 = vmatpush1.msra.mxu0 %v2200
    %3335 = vmatprep.subr.mxu0 %v2197
    %3336 = vmatpush1.msra.mxu0 %v2196
    %3337 = vmatprep.subr.mxu0 %v2193
    %3338 = vmatpush1.msra.mxu0 %v2192
    %3339 = vmatprep.subr.mxu0 %v2189
    %3340 = vmatpush1.msra.mxu0 %v2188
    %3341 = vmatprep.subr.mxu0 %v2185
    %3342 = vmatpush1.msra.mxu0 %v2184
    %3343 = vmatprep.subr.mxu0 %v2181
    %3344 = vmatpush1.msra.mxu0 %v2180
    %3345 = vmatprep.subr.mxu0 %v2177
    %3346 = vmatpush1.msra.mxu0 %v2176
    %3347 = vmatprep.subr.mxu0 %v2173
    %3348 = vmatpush1.msra.mxu0 %v2172
    %3349 = vmatprep.subr.mxu0 %v2169
    %3350 = vmatpush1.msra.mxu0 %v2168
    %3351 = vmatprep.subr.mxu0 %v2165
    %3352 = vmatpush1.msra.mxu0 %v2164
    %3353 = vmatprep.subr.mxu0 %v2161
    %3354 = vmatpush1.msra.mxu0 %v2160
    %3355 = vmatprep.subr.mxu0 0.0
    %3356 = vmatpush2.msra.mxu0 0.0
    %3357 = vmatprep.subr.mxu0 0.0
    %3358 = vmatpush2.msra.mxu0 0.0
    %3359 = vmatprep.subr.mxu0 0.0
    %3360 = vmatpush2.msra.mxu0 0.0
    %3361 = vmatprep.subr.mxu0 0.0
    %3362 = vmatpush2.msra.mxu0 0.0
    %3363 = vmatprep.subr.mxu0 0.0
    %3364 = vmatpush2.msra.mxu0 0.0
    %3365 = vmatprep.subr.mxu0 0.0
    %3366 = vmatpush2.msra.mxu0 0.0
    %3367 = vmatprep.subr.mxu0 0.0
    %3368 = vmatpush2.msra.mxu0 0.0
    %3369 = vmatprep.subr.mxu0 0.0
    %3370 = vmatpush2.msra.mxu0 0.0
    %3371 = vmatprep.subr.mxu0 0.0
    %3372 = vmatpush2.msra.mxu0 0.0
    %3373 = vmatprep.subr.mxu0 0.0
    %3374 = vmatpush2.msra.mxu0 0.0
    %3375 = vmatprep.subr.mxu0 0.0
    %3376 = vmatpush2.msra.mxu0 0.0
    %3377 = vmatprep.subr.mxu0 0.0
    %3378 = vmatpush2.msra.mxu0 0.0
    %3379 = vmatprep.subr.mxu0 0.0
    %3380 = vmatpush2.msra.mxu0 0.0
    %3381 = vmatprep.subr.mxu0 0.0
    %3382 = vmatpush2.msra.mxu0 0.0
    %3383 = vmatprep.subr.mxu0 0.0
    %3384 = vmatpush2.msra.mxu0 0.0
    %3385 = vmatprep.subr.mxu0 0.0
    %3386 = vmatpush2.msra.mxu0 0.0
    %3387 = vmatprep.mubr.f32.mxu0 0.0
    %3388 = vmatmul.mubr.f32.gmra.mxu0 %v3247
    %v3389 = vpop.f32.mrf.mxu0
    %v3390 = vadd.f32 0.0, %v3389
    %v3391 = vpop.f32.mrf.mxu0
    %v3392 = vadd.f32 0.0, %v3391
    %3393 = vdwg.mxu0
    %v3394 = vadd.f32 %v3248, %v3319
    %v3395 = vadd.f32 %v3249, %v3321
    %v3396 = vadd.f32 %v3250, %v3390
    %v3397 = vadd.f32 %v3251, %v3392
    %v3398 = vsub.f32 0.0, %v3394
    %v3399 = vsub.f32 0.0, %v3395
    %v3400 = vsub.f32 0.0, %v3396
    %v3401 = vmul.f32 %v3398, 1.442695
    %v3402 = vpow.pop %v3401
    %v3403 = vmul.f32 %v3399, 1.442695
    %v3404 = vpow.pop %v3403
    %v3405 = vmul.f32 %v3400, 1.442695
    %v3406 = vpow.pop %v3405
    %v3407 = vadd.f32 %v3402, 1.0
    %v3408 = vadd.f32 %v3404, 1.0
    %v3409 = vadd.f32 %v3406, 1.0
    %v3410 = vrcp.pop %v3407
    %v3411 = vrcp.pop %v3408
    %v3412 = vrcp.pop %v3409
    %v3413 = vtanh.pop %v3397
    %v3414 = vmul.f32 %v3411, %v3245
    %v3415 = vmul.f32 %v3410, %v3413
    %v3416 = vadd.f32 %v3414, %v3415
    %v3417 = vtanh.pop %v3416
    %v3418 = vmul.f32 %v3412, %v3417
    %v3419 = vld [vmem:[#allocation2 + $0xe0] sm:$0xff]
    %v3420 = vld [vmem:[#allocation2 + $0xe8] sm:$0xff]
    %v3421 = vld [vmem:[#allocation2 + $0xf0] sm:$0xff]
    %v3422 = vld [vmem:[#allocation2 + $0xf8] sm:$0xff]
    %3423 = vmatprep.subr.mxu0 %v2219
    %3424 = vmatpush1.msra.mxu0 %v2218
    %3425 = vmatprep.subr.mxu0 %v2215
    %3426 = vmatpush1.msra.mxu0 %v2214
    %3427 = vmatprep.subr.mxu0 %v2211
    %3428 = vmatpush1.msra.mxu0 %v2210
    %3429 = vmatprep.subr.mxu0 %v2207
    %3430 = vmatpush1.msra.mxu0 %v2206
    %3431 = vmatprep.subr.mxu0 %v2203
    %3432 = vmatpush1.msra.mxu0 %v2202
    %3433 = vmatprep.subr.mxu0 %v2199
    %3434 = vmatpush1.msra.mxu0 %v2198
    %3435 = vmatprep.subr.mxu0 %v2195
    %3436 = vmatpush1.msra.mxu0 %v2194
    %3437 = vmatprep.subr.mxu0 %v2191
    %3438 = vmatpush1.msra.mxu0 %v2190
    %3439 = vmatprep.subr.mxu0 %v2187
    %3440 = vmatpush1.msra.mxu0 %v2186
    %3441 = vmatprep.subr.mxu0 %v2183
    %3442 = vmatpush1.msra.mxu0 %v2182
    %3443 = vmatprep.subr.mxu0 %v2179
    %3444 = vmatpush1.msra.mxu0 %v2178
    %3445 = vmatprep.subr.mxu0 %v2175
    %3446 = vmatpush1.msra.mxu0 %v2174
    %3447 = vmatprep.subr.mxu0 %v2171
    %3448 = vmatpush1.msra.mxu0 %v2170
    %3449 = vmatprep.subr.mxu0 %v2167
    %3450 = vmatpush1.msra.mxu0 %v2166
    %3451 = vmatprep.subr.mxu0 %v2163
    %3452 = vmatpush1.msra.mxu0 %v2162
    %3453 = vmatprep.subr.mxu0 %v2159
    %3454 = vmatpush1.msra.mxu0 %v2158
    %3455 = vmatprep.subr.mxu0 0.0
    %3456 = vmatpush2.msra.mxu0 0.0
    %3457 = vmatprep.subr.mxu0 0.0
    %3458 = vmatpush2.msra.mxu0 0.0
    %3459 = vmatprep.subr.mxu0 0.0
    %3460 = vmatpush2.msra.mxu0 0.0
    %3461 = vmatprep.subr.mxu0 0.0
    %3462 = vmatpush2.msra.mxu0 0.0
    %3463 = vmatprep.subr.mxu0 0.0
    %3464 = vmatpush2.msra.mxu0 0.0
    %3465 = vmatprep.subr.mxu0 0.0
    %3466 = vmatpush2.msra.mxu0 0.0
    %3467 = vmatprep.subr.mxu0 0.0
    %3468 = vmatpush2.msra.mxu0 0.0
    %3469 = vmatprep.subr.mxu0 0.0
    %3470 = vmatpush2.msra.mxu0 0.0
    %3471 = vmatprep.subr.mxu0 0.0
    %3472 = vmatpush2.msra.mxu0 0.0
    %3473 = vmatprep.subr.mxu0 0.0
    %3474 = vmatpush2.msra.mxu0 0.0
    %3475 = vmatprep.subr.mxu0 0.0
    %3476 = vmatpush2.msra.mxu0 0.0
    %3477 = vmatprep.subr.mxu0 0.0
    %3478 = vmatpush2.msra.mxu0 0.0
    %3479 = vmatprep.subr.mxu0 0.0
    %3480 = vmatpush2.msra.mxu0 0.0
    %3481 = vmatprep.subr.mxu0 0.0
    %3482 = vmatpush2.msra.mxu0 0.0
    %3483 = vmatprep.subr.mxu0 0.0
    %3484 = vmatpush2.msra.mxu0 0.0
    %3485 = vmatprep.subr.mxu0 0.0
    %3486 = vmatpush2.msra.mxu0 0.0
    %3487 = vmatprep.mubr.f32.mxu0 0.0
    %3488 = vmatmul.mubr.f32.gmra.mxu0 %v3418
    %v3489 = vpop.f32.mrf.mxu0
    %v3490 = vadd.f32 0.0, %v3489
    %v3491 = vpop.f32.mrf.mxu0
    %v3492 = vadd.f32 0.0, %v3491
    %3493 = vdwg.mxu0
    %3494 = vmatprep.subr.mxu0 %v2221
    %3495 = vmatpush1.msra.mxu0 %v2220
    %3496 = vmatprep.subr.mxu0 %v2217
    %3497 = vmatpush1.msra.mxu0 %v2216
    %3498 = vmatprep.subr.mxu0 %v2213
    %3499 = vmatpush1.msra.mxu0 %v2212
    %3500 = vmatprep.subr.mxu0 %v2209
    %3501 = vmatpush1.msra.mxu0 %v2208
    %3502 = vmatprep.subr.mxu0 %v2205
    %3503 = vmatpush1.msra.mxu0 %v2204
    %3504 = vmatprep.subr.mxu0 %v2201
    %3505 = vmatpush1.msra.mxu0 %v2200
    %3506 = vmatprep.subr.mxu0 %v2197
    %3507 = vmatpush1.msra.mxu0 %v2196
    %3508 = vmatprep.subr.mxu0 %v2193
    %3509 = vmatpush1.msra.mxu0 %v2192
    %3510 = vmatprep.subr.mxu0 %v2189
    %3511 = vmatpush1.msra.mxu0 %v2188
    %3512 = vmatprep.subr.mxu0 %v2185
    %3513 = vmatpush1.msra.mxu0 %v2184
    %3514 = vmatprep.subr.mxu0 %v2181
    %3515 = vmatpush1.msra.mxu0 %v2180
    %3516 = vmatprep.subr.mxu0 %v2177
    %3517 = vmatpush1.msra.mxu0 %v2176
    %3518 = vmatprep.subr.mxu0 %v2173
    %3519 = vmatpush1.msra.mxu0 %v2172
    %3520 = vmatprep.subr.mxu0 %v2169
    %3521 = vmatpush1.msra.mxu0 %v2168
    %3522 = vmatprep.subr.mxu0 %v2165
    %3523 = vmatpush1.msra.mxu0 %v2164
    %3524 = vmatprep.subr.mxu0 %v2161
    %3525 = vmatpush1.msra.mxu0 %v2160
    %3526 = vmatprep.subr.mxu0 0.0
    %3527 = vmatpush2.msra.mxu0 0.0
    %3528 = vmatprep.subr.mxu0 0.0
    %3529 = vmatpush2.msra.mxu0 0.0
    %3530 = vmatprep.subr.mxu0 0.0
    %3531 = vmatpush2.msra.mxu0 0.0
    %3532 = vmatprep.subr.mxu0 0.0
    %3533 = vmatpush2.msra.mxu0 0.0
    %3534 = vmatprep.subr.mxu0 0.0
    %3535 = vmatpush2.msra.mxu0 0.0
    %3536 = vmatprep.subr.mxu0 0.0
    %3537 = vmatpush2.msra.mxu0 0.0
    %3538 = vmatprep.subr.mxu0 0.0
    %3539 = vmatpush2.msra.mxu0 0.0
    %3540 = vmatprep.subr.mxu0 0.0
    %3541 = vmatpush2.msra.mxu0 0.0
    %3542 = vmatprep.subr.mxu0 0.0
    %3543 = vmatpush2.msra.mxu0 0.0
    %3544 = vmatprep.subr.mxu0 0.0
    %3545 = vmatpush2.msra.mxu0 0.0
    %3546 = vmatprep.subr.mxu0 0.0
    %3547 = vmatpush2.msra.mxu0 0.0
    %3548 = vmatprep.subr.mxu0 0.0
    %3549 = vmatpush2.msra.mxu0 0.0
    %3550 = vmatprep.subr.mxu0 0.0
    %3551 = vmatpush2.msra.mxu0 0.0
    %3552 = vmatprep.subr.mxu0 0.0
    %3553 = vmatpush2.msra.mxu0 0.0
    %3554 = vmatprep.subr.mxu0 0.0
    %3555 = vmatpush2.msra.mxu0 0.0
    %3556 = vmatprep.subr.mxu0 0.0
    %3557 = vmatpush2.msra.mxu0 0.0
    %3558 = vmatprep.mubr.f32.mxu0 0.0
    %3559 = vmatmul.mubr.f32.gmra.mxu0 %v3418
    %v3560 = vpop.f32.mrf.mxu0
    %v3561 = vadd.f32 0.0, %v3560
    %v3562 = vpop.f32.mrf.mxu0
    %v3563 = vadd.f32 0.0, %v3562
    %3564 = vdwg.mxu0
    %v3565 = vadd.f32 %v3419, %v3490
    %v3566 = vadd.f32 %v3420, %v3492
    %v3567 = vadd.f32 %v3421, %v3561
    %v3568 = vadd.f32 %v3422, %v3563
    %v3569 = vsub.f32 0.0, %v3565
    %v3570 = vsub.f32 0.0, %v3566
    %v3571 = vsub.f32 0.0, %v3567
    %v3572 = vmul.f32 %v3569, 1.442695
    %v3573 = vpow.pop %v3572
    %v3574 = vmul.f32 %v3570, 1.442695
    %v3575 = vpow.pop %v3574
    %v3576 = vmul.f32 %v3571, 1.442695
    %v3577 = vpow.pop %v3576
    %v3578 = vadd.f32 %v3573, 1.0
    %v3579 = vadd.f32 %v3575, 1.0
    %v3580 = vadd.f32 %v3577, 1.0
    %v3581 = vrcp.pop %v3578
    %v3582 = vrcp.pop %v3579
    %v3583 = vrcp.pop %v3580
    %v3584 = vtanh.pop %v3568
    %v3585 = vmul.f32 %v3582, %v3416
    %v3586 = vmul.f32 %v3581, %v3584
    %v3587 = vadd.f32 %v3585, %v3586
    %v3588 = vtanh.pop %v3587
    %v3589 = vmul.f32 %v3583, %v3588
    %v3590 = vld [vmem:[%s4] sm:$0x1]
    %v3591 = vlaneseq
    %v3592 = vshrl.u32 %v3591, 7
    %v3593 = vsub.s32 0, %v3592
    %v3594 = vrot.slane %v3590, %v3593
    %v3595 = vmul.f32 %v3589, %v3594
    %3596 = vadd.xlane.f32.xlu0 %v3595
    %v3597 = vpop.xlane.xlu0 %3596
    %v3598 = vld [vmem:[%s4 + $0x1] sm:$0x1]
    %v3599 = vlaneseq
    %v3600 = vshrl.u32 %v3599, 7
    %v3601 = vsub.s32 0, %v3600
    %v3602 = vrot.slane %v3598, %v3601
    %v3603 = vadd.f32 %v3597, %v3602
    %vm3604 = vcmask 7168
    %3605 = vst.msk [vmem:[%s5] sm:$0xff] %vm3604, %v3603
    // Predicated region
    $region30: #{tpu_custom_call.1} parent=1 // pred_check
      _
    $region31: #{tpu_custom_call.1} parent=1 // pred_check_branch
      %3607 = sbr.rel (0) target = $region33
    $region32: #{tpu_custom_call.1} parent=1 // pred_region
      _
    $region33: #{tpu_custom_call.1} parent=1 // pred_fallthru
      _
    // Predicated region
    $region34: #{tpu_custom_call.1} parent=1 // pred_check
      _
    $region35: #{tpu_custom_call.1} parent=1 // pred_check_branch
      %3609 = sbr.rel (0) target = $region37
    $region36: #{tpu_custom_call.1} parent=1 // pred_region
      _
    $region37: #{tpu_custom_call.1} parent=1 // pred_fallthru
      _
    %3610 = vsyncpa [#allocation5], 1
    %3611 = vsyncpa [#allocation7], 1

</llo_original>
